<compile_context>
chip_gen: v7x
topology: tpu7x:2x2x1
jax: 0.10.0
libtpu: 0.0.40
codegen_flags: <defaults>
</compile_context>

<pallas_src>
import functools

import jax
import jax.numpy as jnp
from jax import lax
from jax.experimental import pallas as pl
from jax.experimental.pallas import tpu as pltpu

COMPUTE_DTYPE = jnp.bfloat16     # MXU operand dtype (accumulation is f32)
NEG_SLOPE = 0.2                  # LeakyReLU slope


def _largest_divisor_leq(n, t):
    t = max(1, min(n, t))
    while n % t:
        t -= 1
    return t


def _pick_tile_h(ho, flat_w, cout):
    # Target flattened M in [64, 512] while keeping the f32 accumulator ~<=128 KB.
    target_m = max(64, min(512, (128 * 1024 // 4) // max(cout, 1)))
    return _largest_divisor_leq(ho, max(1, target_m // max(flat_w, 1)))


# ----------------------------- Pallas kernel -------------------------------

def _make_disblock_kernel(*, stride, H, W, cin, cout, shortcut, T1, T2):
    """Fused conv1(3x3,s)+LReLU -> conv2(3x3,1)+LReLU -> +shortcut, one batch/step."""
    W_pad = W + 2
    W_s = W_pad // 2
    ho = H if stride == 1 else H // 2
    wo = W if stride == 1 else W // 2
    Wf1 = W_pad if stride == 1 else W_s        # conv1 flattened-output row width
    W2p = wo + 2                               # padded row width of y1 / conv2
    M1, M2 = T1 * Wf1, T2 * W2p
    Y1OFF = 8                                  # leading zero rows in y1 scratch

    def kernel(*refs):
        x_ref, w1_ref, b1_ref, w2_ref, b2_ref = refs[:5]
        k = 5
        if shortcut == "conv":
            ws_ref, bs_ref = refs[k], refs[k + 1]
            k += 2
        out_ref = refs[k]
        y1_ref = refs[k + 1]
        stage_ref = refs[k + 2] if stride == 2 else None

        # Zero the padded conv1-output scratch: supplies conv2's spatial halo.
        y1_ref[...] = jnp.zeros_like(y1_ref)
        if stride == 2:
            stage_ref[...] = jnp.zeros_like(stage_ref)

        # ---------- phase 1: conv1 (3x3 / stride) + bias + LeakyReLU -------
        for hb in range(ho // T1):
            h0 = hb * T1
            acc = jnp.zeros((M1, cout), jnp.float32)
            if stride == 1:
                # 9 taps, each LHS is a contiguous flat slice of the resident input.
                for it in range(3):
                    for jt in range(3):
                        lhs = x_ref[0, pl.ds((h0 + it) * W_pad + jt, M1), :]
                        acc = acc + jnp.dot(lhs, w1_ref[it * 3 + jt],
                                            preferred_element_type=jnp.float32)
            else:
                # Column stride folded into channels (2*cin super-pixels): 6 deeper
                # dots; row taps staged as contiguous VMEM copies.
                for it in range(3):
                    for t in range(T1):
                        src = (2 * (h0 + t) + it) * W_s
                        stage_ref[pl.ds(t * W_s, W_s), :] = \
                            x_ref[0, pl.ds(src, W_s), :]
                    for bt in range(2):
                        lhs = stage_ref[pl.ds(bt, M1), :]
                        acc = acc + jnp.dot(lhs, w1_ref[it * 2 + bt],
                                            preferred_element_type=jnp.float32)
            acc = acc + b1_ref[...]
            y = jnp.where(acc >= 0, acc, NEG_SLOPE * acc).astype(y1_ref.dtype)
            for t in range(T1):                 # store valid columns into padded y1
                dst = Y1OFF + (1 + h0 + t) * W2p + 1
                y1_ref[pl.ds(dst, wo), :] = y[t * Wf1:t * Wf1 + wo, :]

        # ------ phase 2: conv2 (3x3 / 1) + bias + LeakyReLU + shortcut -----
        for hb in range(ho // T2):
            h0 = hb * T2
            acc = jnp.zeros((M2, cout), jnp.float32)
            for rt in range(3):
                for ct in range(3):
                    lhs = y1_ref[pl.ds(Y1OFF + (h0 + rt) * W2p + ct, M2), :]
                    acc = acc + jnp.dot(lhs, w2_ref[rt * 3 + ct],
                                        preferred_element_type=jnp.float32)
            acc = acc + b2_ref[...]
            y = jnp.where(acc >= 0, acc, NEG_SLOPE * acc)

            if shortcut == "identity":
                sx = x_ref[0, pl.ds((1 + h0) * W_pad + 1, M2), :]
                y = y + sx.astype(jnp.float32)
            elif shortcut == "conv" and stride == 1:
                sx = x_ref[0, pl.ds((1 + h0) * W_pad + 1, M2), :]
                y = y + jnp.dot(sx, ws_ref[...],
                                preferred_element_type=jnp.float32) + bs_ref[...]

            for t in range(T2):
                row = y[t * W2p:t * W2p + wo, :]
                if shortcut == "conv" and stride == 2:
                    # 1x1 stride-2 shortcut: odd-column half of the super-pixel row.
                    sx = x_ref[0, pl.ds((1 + 2 * (h0 + t)) * W_s, wo), :]
                    row = row + jnp.dot(sx, ws_ref[...],
                                        preferred_element_type=jnp.float32) + bs_ref[...]
                out_ref[0, h0 + t, :, :] = row.astype(out_ref.dtype)

    return kernel


# ------------------------------ JAX wrapper --------------------------------

@functools.partial(jax.jit, static_argnames=("stride",))
def dis_block_forward(x_nchw, params, stride=2):
    """Forward of DisBlock; input/output are NCHW like PyTorch."""
    n, cin, H, W = x_nchw.shape
    cout = params["w1"].shape[0]
    assert stride in (1, 2)
    if stride == 2:
        assert H % 2 == 0 and W % 2 == 0, "stride-2 path assumes even H/W"

    ho = H if stride == 1 else H // 2
    wo = W if stride == 1 else W // 2
    W_pad, W_s = W + 2, (W + 2) // 2
    Wf1 = W_pad if stride == 1 else W_s
    W2p = wo + 2
    T1 = _pick_tile_h(ho, Wf1, cout)
    T2 = _pick_tile_h(ho, W2p, cout)
    shortcut = "conv" if (stride != 1 or cin != cout) else "identity"

    # NCHW -> NHWC once; spatial zero-pad (1 extra bottom row as flat-slab slack).
    x = jnp.transpose(x_nchw, (0, 2, 3, 1)).astype(COMPUTE_DTYPE)
    x_pad = jnp.pad(x, ((0, 0), (1, 2), (1, 1), (0, 0)))
    if stride == 1:
        x_flat = x_pad.reshape(n, (H + 3) * W_pad, cin)        # free metadata reshape
        K1 = cin
    else:
        x_flat = x_pad.reshape(n, (H + 3) * W_s, 2 * cin)      # super-pixel view
        K1 = 2 * cin

    # ---- weight re-layout (tiny, plain JAX) --------------------------------
    w1, b1, w2, b2 = params["w1"], params["b1"], params["w2"], params["b2"]
    if stride == 1:
        w1m = jnp.stack([w1[:, :, i, j].T for i in range(3) for j in range(3)])
    else:
        zblk = jnp.zeros((cin, cout), w1.dtype)
        taps = []
        for i in range(3):
            taps.append(jnp.concatenate([w1[:, :, i, 0].T, w1[:, :, i, 1].T], axis=0))
            taps.append(jnp.concatenate([w1[:, :, i, 2].T, zblk], axis=0))
        w1m = jnp.stack(taps)                                   # (6, 2*cin, cout)
    w2m = jnp.stack([w2[:, :, i, j].T for i in range(3) for j in range(3)])
    w1m = w1m.astype(COMPUTE_DTYPE)
    w2m = w2m.astype(COMPUTE_DTYPE)
    b1v = b1.reshape(1, cout).astype(jnp.float32)
    b2v = b2.reshape(1, cout).astype(jnp.float32)

    args = [x_flat, w1m, b1v, w2m, b2v]
    in_specs = [
        pl.BlockSpec((1,) + x_flat.shape[1:], lambda b: (b, 0, 0)),
        pl.BlockSpec(w1m.shape, lambda b: (0, 0, 0)),
        pl.BlockSpec(b1v.shape, lambda b: (0, 0)),
        pl.BlockSpec(w2m.shape, lambda b: (0, 0, 0)),
        pl.BlockSpec(b2v.shape, lambda b: (0, 0)),
    ]
    if shortcut == "conv":
        ws = params["ws"].reshape(cout, cin).T                  # (cin, cout)
        if stride == 2:                                         # odd-column half only
            ws = jnp.concatenate([jnp.zeros_like(ws), ws], axis=0)
        wsm = ws.astype(COMPUTE_DTYPE)
        bsv = params["bs"].reshape(1, cout).astype(jnp.float32)
        args += [wsm, bsv]
        in_specs += [pl.BlockSpec(wsm.shape, lambda b: (0, 0)),
                     pl.BlockSpec(bsv.shape, lambda b: (0, 0))]

    kernel = _make_disblock_kernel(stride=stride, H=H, W=W, cin=cin, cout=cout,
                                   shortcut=shortcut, T1=T1, T2=T2)

    M1 = T1 * Wf1
    Y1TOT = 8 + (ho + 2) * W2p + 8
    scratch = [pltpu.VMEM((Y1TOT, cout), COMPUTE_DTYPE)]        # padded y1 (VMEM only)
    if stride == 2:
        scratch.append(pltpu.VMEM((M1 + 8, K1), COMPUTE_DTYPE))  # row-tap staging

    out_shape = jax.ShapeDtypeStruct((n, ho, wo, cout), jnp.float32)
    out_specs = pl.BlockSpec((1, ho, wo, cout), lambda b: (b, 0, 0, 0))

    # VMEM budget + honest cost hint.
    bpe = jnp.dtype(COMPUTE_DTYPE).itemsize
    per_batch_in = x_flat.shape[1] * x_flat.shape[2] * bpe
    per_batch_out = ho * wo * cout * 4
    w_bytes = sum(int(a.size) * a.dtype.itemsize for a in args[1:])
    scratch_bytes = Y1TOT * max(cout, 128) * bpe + (M1 + 8) * max(K1, 128) * bpe
    vmem_est = 2 * (per_batch_in + per_batch_out + w_bytes) + scratch_bytes + (1 << 20)
    vmem_limit = int(min(max(vmem_est, 16 * 1024 * 1024), 64 * 1024 * 1024))

    flops = 2 * n * ho * wo * cout * (9 * cin + 9 * cout)
    if shortcut == "conv":
        flops += 2 * n * ho * wo * cin * cout
    bytes_accessed = int(n * (per_batch_in + per_batch_out) + w_bytes)

    out = pl.pallas_call(
        kernel,
        out_shape=out_shape,
        grid=(n,),
        in_specs=in_specs,
        out_specs=out_specs,
        scratch_shapes=scratch,
        compiler_params=pltpu.CompilerParams(
            dimension_semantics=("parallel",),
            vmem_limit_bytes=vmem_limit),
        cost_estimate=pl.CostEstimate(flops=flops, transcendentals=0,
                                      bytes_accessed=bytes_accessed),
    )(*args)

    return jnp.transpose(out, (0, 3, 1, 2))                     # back to NCHW (f32)


# ----------------------- init / reference / test ---------------------------

def spectral_normalize(w, key, n_iter=1, eps=1e-12):
    """PyTorch spectral_norm semantics (first forward, n_power_iterations=1)."""
    out_ch = w.shape[0]
    w_mat = w.reshape(out_ch, -1)
    u = jax.random.normal(key, (out_ch,), dtype=w.dtype)
    u = u / (jnp.linalg.norm(u) + eps)
    v = None
    for _ in range(n_iter):
        v = w_mat.T @ u
        v = v / (jnp.linalg.norm(v) + eps)
        u = w_mat @ v
        u = u / (jnp.linalg.norm(u) + eps)
    sigma = u @ (w_mat @ v)
    return w / sigma


def init_disblock_params(key, in_channels, out_channels, stride):
    ks = jax.random.split(key, 9)
    scale = 0.1
    w1 = scale * jax.random.normal(ks[0], (out_channels, in_channels, 3, 3), jnp.float32)
    b1 = scale * jax.random.normal(ks[1], (out_channels,), jnp.float32)
    w2 = scale * jax.random.normal(ks[2], (out_channels, out_channels, 3, 3), jnp.float32)
    b2 = scale * jax.random.normal(ks[3], (out_channels,), jnp.float32)
    params = {
        "w1": spectral_normalize(w1, ks[4]),
        "b1": b1,
        "w2": spectral_normalize(w2, ks[5]),
        "b2": b2,
    }
    if stride != 1 or in_channels != out_channels:
        ws = scale * jax.random.normal(ks[6], (out_channels, in_channels, 1, 1), jnp.float32)
        bs = scale * jax.random.normal(ks[7], (out_channels,), jnp.float32)
        params["ws"] = spectral_normalize(ws, ks[8])
        params["bs"] = bs
    return params


def reference_forward(x_nchw, params, stride=2):
    """Pure-JAX reference (lax.conv) for correctness checking."""
    def conv(x, w, b, s, pad):
        y = lax.conv_general_dilated(
            x, w, window_strides=(s, s), padding=[(pad, pad), (pad, pad)],
            dimension_numbers=("NCHW", "OIHW", "NCHW"))
        return y + b[None, :, None, None]

    def lrelu(x):
        return jnp.where(x >= 0, x, NEG_SLOPE * x)

    y = lrelu(conv(x_nchw, params["w1"], params["b1"], stride, 1))
    y = lrelu(conv(y, params["w2"], params["b2"], 1, 1))
    if "ws" in params:
        sc = conv(x_nchw, params["ws"], params["bs"], stride, 0)
    else:
        sc = x_nchw
    return y + sc


if __name__ == "__main__":
    key = jax.random.PRNGKey(0)
    configs = [
        dict(batch=2, in_ch=4, out_ch=8, spatial=16, stride=2),   # conv shortcut, s=2
        dict(batch=2, in_ch=8, out_ch=8, spatial=16, stride=1),   # identity shortcut
        dict(batch=2, in_ch=4, out_ch=8, spatial=16, stride=1),   # conv shortcut, s=1
    ]
    for cfg in configs:
        key, kx, kp = jax.random.split(key, 3)
        x = jax.random.normal(
            kx, (cfg["batch"], cfg["in_ch"], cfg["spatial"], cfg["spatial"]), jnp.float32)
        params = init_disblock_params(kp, cfg["in_ch"], cfg["out_ch"], cfg["stride"])

        out = jax.block_until_ready(dis_block_forward(x, params, stride=cfg["stride"]))
        ref = reference_forward(x, params, stride=cfg["stride"])

        so = cfg["spatial"] // cfg["stride"]
        assert out.shape == (cfg["batch"], cfg["out_ch"], so, so), out.shape
        # bf16 MXU operands with f32 accumulation -> loosened tolerance vs f32 ref.
        assert jnp.allclose(out, ref, rtol=3e-2, atol=3e-2), (
            f"mismatch vs lax.conv reference for {cfg}, max abs diff = "
            f"{float(jnp.max(jnp.abs(out - ref)))}")

    print("KERNEL_OK")
</pallas_src>

<mosaic_0001>
module attributes {stable_mosaic.version = 11 : i64} {
  func.func @kernel(%arg0: i32, %arg1: memref<1x171x8xbf16, #tpu.memory_space<vmem>>, %arg2: memref<6x8x8xbf16, #tpu.memory_space<vmem>>, %arg3: memref<1x8xf32, #tpu.memory_space<vmem>>, %arg4: memref<9x8x8xbf16, #tpu.memory_space<vmem>>, %arg5: memref<1x8xf32, #tpu.memory_space<vmem>>, %arg6: memref<8x8xbf16, #tpu.memory_space<vmem>>, %arg7: memref<1x8xf32, #tpu.memory_space<vmem>>, %arg8: memref<1x8x8x8xf32, #tpu.memory_space<vmem>>, %arg9: memref<116x8xbf16, #tpu.memory_space<vmem>>, %arg10: memref<80x8xbf16, #tpu.memory_space<vmem>>) attributes {dimension_semantics = [#tpu.dimension_semantics<parallel>], iteration_bounds = array<i64: 2>, scalar_prefetch = 0 : i64, scratch_operands = 2 : i64, tpu.core_type = #tpu.core_type<tc>, window_params = [{transform_indices = @transform_0, window_bounds = array<i64: 1, 171, 8>}, {pipeline_mode = #tpu.pipeline_mode<synchronous>, transform_indices = @transform_1, window_bounds = array<i64: 6, 8, 8>}, {pipeline_mode = #tpu.pipeline_mode<synchronous>, transform_indices = @transform_2, window_bounds = array<i64: 1, 8>}, {pipeline_mode = #tpu.pipeline_mode<synchronous>, transform_indices = @transform_3, window_bounds = array<i64: 9, 8, 8>}, {pipeline_mode = #tpu.pipeline_mode<synchronous>, transform_indices = @transform_4, window_bounds = array<i64: 1, 8>}, {pipeline_mode = #tpu.pipeline_mode<synchronous>, transform_indices = @transform_5, window_bounds = array<i64: 8, 8>}, {pipeline_mode = #tpu.pipeline_mode<synchronous>, transform_indices = @transform_6, window_bounds = array<i64: 1, 8>}, {transform_indices = @transform_7, window_bounds = array<i64: 1, 8, 8, 8>}]} {
    %cst = arith.constant 0.000000e+00 : bf16
    %0 = vector.broadcast %cst : bf16 to vector<116x8xbf16>
    %c0 = arith.constant 0 : index
    %c0_0 = arith.constant 0 : index
    %1 = vector.load %arg9[%c0, %c0_0] : memref<116x8xbf16, #tpu.memory_space<vmem>>, vector<116x8xbf16>
    tpu.vector_store %arg9[%c0, %c0_0], %0 {strides = array<i32>} : memref<116x8xbf16, #tpu.memory_space<vmem>>, vector<116x8xbf16>,
    %cst_1 = arith.constant 0.000000e+00 : bf16
    %2 = vector.broadcast %cst_1 : bf16 to vector<80x8xbf16>
    %c0_2 = arith.constant 0 : index
    %c0_3 = arith.constant 0 : index
    %3 = vector.load %arg10[%c0_2, %c0_3] : memref<80x8xbf16, #tpu.memory_space<vmem>>, vector<80x8xbf16>
    tpu.vector_store %arg10[%c0_2, %c0_3], %2 {strides = array<i32>} : memref<80x8xbf16, #tpu.memory_space<vmem>>, vector<80x8xbf16>,
    %cst_4 = arith.constant 0.000000e+00 : f32
    %4 = vector.broadcast %cst_4 : f32 to vector<72x8xf32>
    %c0_5 = arith.constant 0 : index
    %c0_6 = arith.constant 0 : index
    %c0_7 = arith.constant 0 : index
    %5 = vector.load %arg1[%c0_5, %c0_6, %c0_7] : memref<1x171x8xbf16, #tpu.memory_space<vmem>>, vector<1x9x8xbf16>
    %6 = vector.shape_cast %5 : vector<1x9x8xbf16> to vector<9x8xbf16>
    %c0_8 = arith.constant 0 : index
    %c0_9 = arith.constant 0 : index
    %7 = vector.load %arg10[%c0_8, %c0_9] : memref<80x8xbf16, #tpu.memory_space<vmem>>, vector<9x8xbf16>
    tpu.vector_store %arg10[%c0_8, %c0_9], %6 {strides = array<i32>} : memref<80x8xbf16, #tpu.memory_space<vmem>>, vector<9x8xbf16>,
    %c0_10 = arith.constant 0 : index
    %c18 = arith.constant 18 : index
    %c0_11 = arith.constant 0 : index
    %8 = vector.load %arg1[%c0_10, %c18, %c0_11] : memref<1x171x8xbf16, #tpu.memory_space<vmem>>, vector<1x9x8xbf16>
    %9 = vector.shape_cast %8 : vector<1x9x8xbf16> to vector<9x8xbf16>
    %c9 = arith.constant 9 : index
    %c0_12 = arith.constant 0 : index
    %10 = vector.load %arg10[%c9, %c0_12] : memref<80x8xbf16, #tpu.memory_space<vmem>>, vector<9x8xbf16>
    tpu.vector_store %arg10[%c9, %c0_12], %9 {strides = array<i32>} : memref<80x8xbf16, #tpu.memory_space<vmem>>, vector<9x8xbf16>,
    %c0_13 = arith.constant 0 : index
    %c36 = arith.constant 36 : index
    %c0_14 = arith.constant 0 : index
    %11 = vector.load %arg1[%c0_13, %c36, %c0_14] : memref<1x171x8xbf16, #tpu.memory_space<vmem>>, vector<1x9x8xbf16>
    %12 = vector.shape_cast %11 : vector<1x9x8xbf16> to vector<9x8xbf16>
    %c18_15 = arith.constant 18 : index
    %c0_16 = arith.constant 0 : index
    %13 = vector.load %arg10[%c18_15, %c0_16] : memref<80x8xbf16, #tpu.memory_space<vmem>>, vector<9x8xbf16>
    tpu.vector_store %arg10[%c18_15, %c0_16], %12 {strides = array<i32>} : memref<80x8xbf16, #tpu.memory_space<vmem>>, vector<9x8xbf16>,
    %c0_17 = arith.constant 0 : index
    %c54 = arith.constant 54 : index
    %c0_18 = arith.constant 0 : index
    %14 = vector.load %arg1[%c0_17, %c54, %c0_18] : memref<1x171x8xbf16, #tpu.memory_space<vmem>>, vector<1x9x8xbf16>
    %15 = vector.shape_cast %14 : vector<1x9x8xbf16> to vector<9x8xbf16>
    %c27 = arith.constant 27 : index
    %c0_19 = arith.constant 0 : index
    %16 = vector.load %arg10[%c27, %c0_19] : memref<80x8xbf16, #tpu.memory_space<vmem>>, vector<9x8xbf16>
    tpu.vector_store %arg10[%c27, %c0_19], %15 {strides = array<i32>} : memref<80x8xbf16, #tpu.memory_space<vmem>>, vector<9x8xbf16>,
    %c0_20 = arith.constant 0 : index
    %c72 = arith.constant 72 : index
    %c0_21 = arith.constant 0 : index
    %17 = vector.load %arg1[%c0_20, %c72, %c0_21] : memref<1x171x8xbf16, #tpu.memory_space<vmem>>, vector<1x9x8xbf16>
    %18 = vector.shape_cast %17 : vector<1x9x8xbf16> to vector<9x8xbf16>
    %c36_22 = arith.constant 36 : index
    %c0_23 = arith.constant 0 : index
    %19 = vector.load %arg10[%c36_22, %c0_23] : memref<80x8xbf16, #tpu.memory_space<vmem>>, vector<9x8xbf16>
    tpu.vector_store %arg10[%c36_22, %c0_23], %18 {strides = array<i32>} : memref<80x8xbf16, #tpu.memory_space<vmem>>, vector<9x8xbf16>,
    %c0_24 = arith.constant 0 : index
    %c90 = arith.constant 90 : index
    %c0_25 = arith.constant 0 : index
    %20 = vector.load %arg1[%c0_24, %c90, %c0_25] : memref<1x171x8xbf16, #tpu.memory_space<vmem>>, vector<1x9x8xbf16>
    %21 = vector.shape_cast %20 : vector<1x9x8xbf16> to vector<9x8xbf16>
    %c45 = arith.constant 45 : index
    %c0_26 = arith.constant 0 : index
    %22 = vector.load %arg10[%c45, %c0_26] : memref<80x8xbf16, #tpu.memory_space<vmem>>, vector<9x8xbf16>
    tpu.vector_store %arg10[%c45, %c0_26], %21 {strides = array<i32>} : memref<80x8xbf16, #tpu.memory_space<vmem>>, vector<9x8xbf16>,
    %c0_27 = arith.constant 0 : index
    %c108 = arith.constant 108 : index
    %c0_28 = arith.constant 0 : index
    %23 = vector.load %arg1[%c0_27, %c108, %c0_28] : memref<1x171x8xbf16, #tpu.memory_space<vmem>>, vector<1x9x8xbf16>
    %24 = vector.shape_cast %23 : vector<1x9x8xbf16> to vector<9x8xbf16>
    %c54_29 = arith.constant 54 : index
    %c0_30 = arith.constant 0 : index
    %25 = vector.load %arg10[%c54_29, %c0_30] : memref<80x8xbf16, #tpu.memory_space<vmem>>, vector<9x8xbf16>
    tpu.vector_store %arg10[%c54_29, %c0_30], %24 {strides = array<i32>} : memref<80x8xbf16, #tpu.memory_space<vmem>>, vector<9x8xbf16>,
    %c0_31 = arith.constant 0 : index
    %c126 = arith.constant 126 : index
    %c0_32 = arith.constant 0 : index
    %26 = vector.load %arg1[%c0_31, %c126, %c0_32] : memref<1x171x8xbf16, #tpu.memory_space<vmem>>, vector<1x9x8xbf16>
    %27 = vector.shape_cast %26 : vector<1x9x8xbf16> to vector<9x8xbf16>
    %c63 = arith.constant 63 : index
    %c0_33 = arith.constant 0 : index
    %28 = vector.load %arg10[%c63, %c0_33] : memref<80x8xbf16, #tpu.memory_space<vmem>>, vector<9x8xbf16>
    tpu.vector_store %arg10[%c63, %c0_33], %27 {strides = array<i32>} : memref<80x8xbf16, #tpu.memory_space<vmem>>, vector<9x8xbf16>,
    %c0_34 = arith.constant 0 : index
    %c0_35 = arith.constant 0 : index
    %29 = vector.load %arg10[%c0_34, %c0_35] : memref<80x8xbf16, #tpu.memory_space<vmem>>, vector<72x8xbf16>
    %c0_36 = arith.constant 0 : index
    %c0_37 = arith.constant 0 : index
    %c0_38 = arith.constant 0 : index
    %30 = vector.load %arg2[%c0_36, %c0_37, %c0_38] : memref<6x8x8xbf16, #tpu.memory_space<vmem>>, vector<1x8x8xbf16>
    %31 = vector.shape_cast %30 : vector<1x8x8xbf16> to vector<8x8xbf16>
    %cst_39 = arith.constant dense<0.000000e+00> : vector<72x8xf32>
    %32 = tpu.matmul %29, %31, %cst_39 {dimension_numbers = #tpu.dot_dimension_numbers<[1], [0], [0], [1], [0, 0, 1, 1], [], []>} : vector<72x8xbf16>, vector<8x8xbf16>, vector<72x8xf32> -> vector<72x8xf32>
    %33 = arith.addf %4, %32 : vector<72x8xf32>
    %c1 = arith.constant 1 : index
    %c0_40 = arith.constant 0 : index
    %34 = vector.load %arg10[%c1, %c0_40] : memref<80x8xbf16, #tpu.memory_space<vmem>>, vector<72x8xbf16>
    %c1_41 = arith.constant 1 : index
    %c0_42 = arith.constant 0 : index
    %c0_43 = arith.constant 0 : index
    %35 = vector.load %arg2[%c1_41, %c0_42, %c0_43] : memref<6x8x8xbf16, #tpu.memory_space<vmem>>, vector<1x8x8xbf16>
    %36 = vector.shape_cast %35 : vector<1x8x8xbf16> to vector<8x8xbf16>
    %cst_44 = arith.constant dense<0.000000e+00> : vector<72x8xf32>
    %37 = tpu.matmul %34, %36, %cst_44 {dimension_numbers = #tpu.dot_dimension_numbers<[1], [0], [0], [1], [0, 0, 1, 1], [], []>} : vector<72x8xbf16>, vector<8x8xbf16>, vector<72x8xf32> -> vector<72x8xf32>
    %38 = arith.addf %33, %37 : vector<72x8xf32>
    %c0_45 = arith.constant 0 : index
    %c9_46 = arith.constant 9 : index
    %c0_47 = arith.constant 0 : index
    %39 = vector.load %arg1[%c0_45, %c9_46, %c0_47] : memref<1x171x8xbf16, #tpu.memory_space<vmem>>, vector<1x9x8xbf16>
    %40 = vector.shape_cast %39 : vector<1x9x8xbf16> to vector<9x8xbf16>
    %c0_48 = arith.constant 0 : index
    %c0_49 = arith.constant 0 : index
    %41 = vector.load %arg10[%c0_48, %c0_49] : memref<80x8xbf16, #tpu.memory_space<vmem>>, vector<9x8xbf16>
    tpu.vector_store %arg10[%c0_48, %c0_49], %40 {strides = array<i32>} : memref<80x8xbf16, #tpu.memory_space<vmem>>, vector<9x8xbf16>,
    %c0_50 = arith.constant 0 : index
    %c27_51 = arith.constant 27 : index
    %c0_52 = arith.constant 0 : index
    %42 = vector.load %arg1[%c0_50, %c27_51, %c0_52] : memref<1x171x8xbf16, #tpu.memory_space<vmem>>, vector<1x9x8xbf16>
    %43 = vector.shape_cast %42 : vector<1x9x8xbf16> to vector<9x8xbf16>
    %c9_53 = arith.constant 9 : index
    %c0_54 = arith.constant 0 : index
    %44 = vector.load %arg10[%c9_53, %c0_54] : memref<80x8xbf16, #tpu.memory_space<vmem>>, vector<9x8xbf16>
    tpu.vector_store %arg10[%c9_53, %c0_54], %43 {strides = array<i32>} : memref<80x8xbf16, #tpu.memory_space<vmem>>, vector<9x8xbf16>,
    %c0_55 = arith.constant 0 : index
    %c45_56 = arith.constant 45 : index
    %c0_57 = arith.constant 0 : index
    %45 = vector.load %arg1[%c0_55, %c45_56, %c0_57] : memref<1x171x8xbf16, #tpu.memory_space<vmem>>, vector<1x9x8xbf16>
    %46 = vector.shape_cast %45 : vector<1x9x8xbf16> to vector<9x8xbf16>
    %c18_58 = arith.constant 18 : index
    %c0_59 = arith.constant 0 : index
    %47 = vector.load %arg10[%c18_58, %c0_59] : memref<80x8xbf16, #tpu.memory_space<vmem>>, vector<9x8xbf16>
    tpu.vector_store %arg10[%c18_58, %c0_59], %46 {strides = array<i32>} : memref<80x8xbf16, #tpu.memory_space<vmem>>, vector<9x8xbf16>,
    %c0_60 = arith.constant 0 : index
    %c63_61 = arith.constant 63 : index
    %c0_62 = arith.constant 0 : index
    %48 = vector.load %arg1[%c0_60, %c63_61, %c0_62] : memref<1x171x8xbf16, #tpu.memory_space<vmem>>, vector<1x9x8xbf16>
    %49 = vector.shape_cast %48 : vector<1x9x8xbf16> to vector<9x8xbf16>
    %c27_63 = arith.constant 27 : index
    %c0_64 = arith.constant 0 : index
    %50 = vector.load %arg10[%c27_63, %c0_64] : memref<80x8xbf16, #tpu.memory_space<vmem>>, vector<9x8xbf16>
    tpu.vector_store %arg10[%c27_63, %c0_64], %49 {strides = array<i32>} : memref<80x8xbf16, #tpu.memory_space<vmem>>, vector<9x8xbf16>,
    %c0_65 = arith.constant 0 : index
    %c81 = arith.constant 81 : index
    %c0_66 = arith.constant 0 : index
    %51 = vector.load %arg1[%c0_65, %c81, %c0_66] : memref<1x171x8xbf16, #tpu.memory_space<vmem>>, vector<1x9x8xbf16>
    %52 = vector.shape_cast %51 : vector<1x9x8xbf16> to vector<9x8xbf16>
    %c36_67 = arith.constant 36 : index
    %c0_68 = arith.constant 0 : index
    %53 = vector.load %arg10[%c36_67, %c0_68] : memref<80x8xbf16, #tpu.memory_space<vmem>>, vector<9x8xbf16>
    tpu.vector_store %arg10[%c36_67, %c0_68], %52 {strides = array<i32>} : memref<80x8xbf16, #tpu.memory_space<vmem>>, vector<9x8xbf16>,
    %c0_69 = arith.constant 0 : index
    %c99 = arith.constant 99 : index
    %c0_70 = arith.constant 0 : index
    %54 = vector.load %arg1[%c0_69, %c99, %c0_70] : memref<1x171x8xbf16, #tpu.memory_space<vmem>>, vector<1x9x8xbf16>
    %55 = vector.shape_cast %54 : vector<1x9x8xbf16> to vector<9x8xbf16>
    %c45_71 = arith.constant 45 : index
    %c0_72 = arith.constant 0 : index
    %56 = vector.load %arg10[%c45_71, %c0_72] : memref<80x8xbf16, #tpu.memory_space<vmem>>, vector<9x8xbf16>
    tpu.vector_store %arg10[%c45_71, %c0_72], %55 {strides = array<i32>} : memref<80x8xbf16, #tpu.memory_space<vmem>>, vector<9x8xbf16>,
    %c0_73 = arith.constant 0 : index
    %c117 = arith.constant 117 : index
    %c0_74 = arith.constant 0 : index
    %57 = vector.load %arg1[%c0_73, %c117, %c0_74] : memref<1x171x8xbf16, #tpu.memory_space<vmem>>, vector<1x9x8xbf16>
    %58 = vector.shape_cast %57 : vector<1x9x8xbf16> to vector<9x8xbf16>
    %c54_75 = arith.constant 54 : index
    %c0_76 = arith.constant 0 : index
    %59 = vector.load %arg10[%c54_75, %c0_76] : memref<80x8xbf16, #tpu.memory_space<vmem>>, vector<9x8xbf16>
    tpu.vector_store %arg10[%c54_75, %c0_76], %58 {strides = array<i32>} : memref<80x8xbf16, #tpu.memory_space<vmem>>, vector<9x8xbf16>,
    %c0_77 = arith.constant 0 : index
    %c135 = arith.constant 135 : index
    %c0_78 = arith.constant 0 : index
    %60 = vector.load %arg1[%c0_77, %c135, %c0_78] : memref<1x171x8xbf16, #tpu.memory_space<vmem>>, vector<1x9x8xbf16>
    %61 = vector.shape_cast %60 : vector<1x9x8xbf16> to vector<9x8xbf16>
    %c63_79 = arith.constant 63 : index
    %c0_80 = arith.constant 0 : index
    %62 = vector.load %arg10[%c63_79, %c0_80] : memref<80x8xbf16, #tpu.memory_space<vmem>>, vector<9x8xbf16>
    tpu.vector_store %arg10[%c63_79, %c0_80], %61 {strides = array<i32>} : memref<80x8xbf16, #tpu.memory_space<vmem>>, vector<9x8xbf16>,
    %c0_81 = arith.constant 0 : index
    %c0_82 = arith.constant 0 : index
    %63 = vector.load %arg10[%c0_81, %c0_82] : memref<80x8xbf16, #tpu.memory_space<vmem>>, vector<72x8xbf16>
    %c2 = arith.constant 2 : index
    %c0_83 = arith.constant 0 : index
    %c0_84 = arith.constant 0 : index
    %64 = vector.load %arg2[%c2, %c0_83, %c0_84] : memref<6x8x8xbf16, #tpu.memory_space<vmem>>, vector<1x8x8xbf16>
    %65 = vector.shape_cast %64 : vector<1x8x8xbf16> to vector<8x8xbf16>
    %cst_85 = arith.constant dense<0.000000e+00> : vector<72x8xf32>
    %66 = tpu.matmul %63, %65, %cst_85 {dimension_numbers = #tpu.dot_dimension_numbers<[1], [0], [0], [1], [0, 0, 1, 1], [], []>} : vector<72x8xbf16>, vector<8x8xbf16>, vector<72x8xf32> -> vector<72x8xf32>
    %67 = arith.addf %38, %66 : vector<72x8xf32>
    %c1_86 = arith.constant 1 : index
    %c0_87 = arith.constant 0 : index
    %68 = vector.load %arg10[%c1_86, %c0_87] : memref<80x8xbf16, #tpu.memory_space<vmem>>, vector<72x8xbf16>
    %c3 = arith.constant 3 : index
    %c0_88 = arith.constant 0 : index
    %c0_89 = arith.constant 0 : index
    %69 = vector.load %arg2[%c3, %c0_88, %c0_89] : memref<6x8x8xbf16, #tpu.memory_space<vmem>>, vector<1x8x8xbf16>
    %70 = vector.shape_cast %69 : vector<1x8x8xbf16> to vector<8x8xbf16>
    %cst_90 = arith.constant dense<0.000000e+00> : vector<72x8xf32>
    %71 = tpu.matmul %68, %70, %cst_90 {dimension_numbers = #tpu.dot_dimension_numbers<[1], [0], [0], [1], [0, 0, 1, 1], [], []>} : vector<72x8xbf16>, vector<8x8xbf16>, vector<72x8xf32> -> vector<72x8xf32>
    %72 = arith.addf %67, %71 : vector<72x8xf32>
    %c0_91 = arith.constant 0 : index
    %c18_92 = arith.constant 18 : index
    %c0_93 = arith.constant 0 : index
    %73 = vector.load %arg1[%c0_91, %c18_92, %c0_93] : memref<1x171x8xbf16, #tpu.memory_space<vmem>>, vector<1x9x8xbf16>
    %74 = vector.shape_cast %73 : vector<1x9x8xbf16> to vector<9x8xbf16>
    %c0_94 = arith.constant 0 : index
    %c0_95 = arith.constant 0 : index
    %75 = vector.load %arg10[%c0_94, %c0_95] : memref<80x8xbf16, #tpu.memory_space<vmem>>, vector<9x8xbf16>
    tpu.vector_store %arg10[%c0_94, %c0_95], %74 {strides = array<i32>} : memref<80x8xbf16, #tpu.memory_space<vmem>>, vector<9x8xbf16>,
    %c0_96 = arith.constant 0 : index
    %c36_97 = arith.constant 36 : index
    %c0_98 = arith.constant 0 : index
    %76 = vector.load %arg1[%c0_96, %c36_97, %c0_98] : memref<1x171x8xbf16, #tpu.memory_space<vmem>>, vector<1x9x8xbf16>
    %77 = vector.shape_cast %76 : vector<1x9x8xbf16> to vector<9x8xbf16>
    %c9_99 = arith.constant 9 : index
    %c0_100 = arith.constant 0 : index
    %78 = vector.load %arg10[%c9_99, %c0_100] : memref<80x8xbf16, #tpu.memory_space<vmem>>, vector<9x8xbf16>
    tpu.vector_store %arg10[%c9_99, %c0_100], %77 {strides = array<i32>} : memref<80x8xbf16, #tpu.memory_space<vmem>>, vector<9x8xbf16>,
    %c0_101 = arith.constant 0 : index
    %c54_102 = arith.constant 54 : index
    %c0_103 = arith.constant 0 : index
    %79 = vector.load %arg1[%c0_101, %c54_102, %c0_103] : memref<1x171x8xbf16, #tpu.memory_space<vmem>>, vector<1x9x8xbf16>
    %80 = vector.shape_cast %79 : vector<1x9x8xbf16> to vector<9x8xbf16>
    %c18_104 = arith.constant 18 : index
    %c0_105 = arith.constant 0 : index
    %81 = vector.load %arg10[%c18_104, %c0_105] : memref<80x8xbf16, #tpu.memory_space<vmem>>, vector<9x8xbf16>
    tpu.vector_store %arg10[%c18_104, %c0_105], %80 {strides = array<i32>} : memref<80x8xbf16, #tpu.memory_space<vmem>>, vector<9x8xbf16>,
    %c0_106 = arith.constant 0 : index
    %c72_107 = arith.constant 72 : index
    %c0_108 = arith.constant 0 : index
    %82 = vector.load %arg1[%c0_106, %c72_107, %c0_108] : memref<1x171x8xbf16, #tpu.memory_space<vmem>>, vector<1x9x8xbf16>
    %83 = vector.shape_cast %82 : vector<1x9x8xbf16> to vector<9x8xbf16>
    %c27_109 = arith.constant 27 : index
    %c0_110 = arith.constant 0 : index
    %84 = vector.load %arg10[%c27_109, %c0_110] : memref<80x8xbf16, #tpu.memory_space<vmem>>, vector<9x8xbf16>
    tpu.vector_store %arg10[%c27_109, %c0_110], %83 {strides = array<i32>} : memref<80x8xbf16, #tpu.memory_space<vmem>>, vector<9x8xbf16>,
    %c0_111 = arith.constant 0 : index
    %c90_112 = arith.constant 90 : index
    %c0_113 = arith.constant 0 : index
    %85 = vector.load %arg1[%c0_111, %c90_112, %c0_113] : memref<1x171x8xbf16, #tpu.memory_space<vmem>>, vector<1x9x8xbf16>
    %86 = vector.shape_cast %85 : vector<1x9x8xbf16> to vector<9x8xbf16>
    %c36_114 = arith.constant 36 : index
    %c0_115 = arith.constant 0 : index
    %87 = vector.load %arg10[%c36_114, %c0_115] : memref<80x8xbf16, #tpu.memory_space<vmem>>, vector<9x8xbf16>
    tpu.vector_store %arg10[%c36_114, %c0_115], %86 {strides = array<i32>} : memref<80x8xbf16, #tpu.memory_space<vmem>>, vector<9x8xbf16>,
    %c0_116 = arith.constant 0 : index
    %c108_117 = arith.constant 108 : index
    %c0_118 = arith.constant 0 : index
    %88 = vector.load %arg1[%c0_116, %c108_117, %c0_118] : memref<1x171x8xbf16, #tpu.memory_space<vmem>>, vector<1x9x8xbf16>
    %89 = vector.shape_cast %88 : vector<1x9x8xbf16> to vector<9x8xbf16>
    %c45_119 = arith.constant 45 : index
    %c0_120 = arith.constant 0 : index
    %90 = vector.load %arg10[%c45_119, %c0_120] : memref<80x8xbf16, #tpu.memory_space<vmem>>, vector<9x8xbf16>
    tpu.vector_store %arg10[%c45_119, %c0_120], %89 {strides = array<i32>} : memref<80x8xbf16, #tpu.memory_space<vmem>>, vector<9x8xbf16>,
    %c0_121 = arith.constant 0 : index
    %c126_122 = arith.constant 126 : index
    %c0_123 = arith.constant 0 : index
    %91 = vector.load %arg1[%c0_121, %c126_122, %c0_123] : memref<1x171x8xbf16, #tpu.memory_space<vmem>>, vector<1x9x8xbf16>
    %92 = vector.shape_cast %91 : vector<1x9x8xbf16> to vector<9x8xbf16>
    %c54_124 = arith.constant 54 : index
    %c0_125 = arith.constant 0 : index
    %93 = vector.load %arg10[%c54_124, %c0_125] : memref<80x8xbf16, #tpu.memory_space<vmem>>, vector<9x8xbf16>
    tpu.vector_store %arg10[%c54_124, %c0_125], %92 {strides = array<i32>} : memref<80x8xbf16, #tpu.memory_space<vmem>>, vector<9x8xbf16>,
    %c0_126 = arith.constant 0 : index
    %c144 = arith.constant 144 : index
    %c0_127 = arith.constant 0 : index
    %94 = vector.load %arg1[%c0_126, %c144, %c0_127] : memref<1x171x8xbf16, #tpu.memory_space<vmem>>, vector<1x9x8xbf16>
    %95 = vector.shape_cast %94 : vector<1x9x8xbf16> to vector<9x8xbf16>
    %c63_128 = arith.constant 63 : index
    %c0_129 = arith.constant 0 : index
    %96 = vector.load %arg10[%c63_128, %c0_129] : memref<80x8xbf16, #tpu.memory_space<vmem>>, vector<9x8xbf16>
    tpu.vector_store %arg10[%c63_128, %c0_129], %95 {strides = array<i32>} : memref<80x8xbf16, #tpu.memory_space<vmem>>, vector<9x8xbf16>,
    %c0_130 = arith.constant 0 : index
    %c0_131 = arith.constant 0 : index
    %97 = vector.load %arg10[%c0_130, %c0_131] : memref<80x8xbf16, #tpu.memory_space<vmem>>, vector<72x8xbf16>
    %c4 = arith.constant 4 : index
    %c0_132 = arith.constant 0 : index
    %c0_133 = arith.constant 0 : index
    %98 = vector.load %arg2[%c4, %c0_132, %c0_133] : memref<6x8x8xbf16, #tpu.memory_space<vmem>>, vector<1x8x8xbf16>
    %99 = vector.shape_cast %98 : vector<1x8x8xbf16> to vector<8x8xbf16>
    %cst_134 = arith.constant dense<0.000000e+00> : vector<72x8xf32>
    %100 = tpu.matmul %97, %99, %cst_134 {dimension_numbers = #tpu.dot_dimension_numbers<[1], [0], [0], [1], [0, 0, 1, 1], [], []>} : vector<72x8xbf16>, vector<8x8xbf16>, vector<72x8xf32> -> vector<72x8xf32>
    %101 = arith.addf %72, %100 : vector<72x8xf32>
    %c1_135 = arith.constant 1 : index
    %c0_136 = arith.constant 0 : index
    %102 = vector.load %arg10[%c1_135, %c0_136] : memref<80x8xbf16, #tpu.memory_space<vmem>>, vector<72x8xbf16>
    %c5 = arith.constant 5 : index
    %c0_137 = arith.constant 0 : index
    %c0_138 = arith.constant 0 : index
    %103 = vector.load %arg2[%c5, %c0_137, %c0_138] : memref<6x8x8xbf16, #tpu.memory_space<vmem>>, vector<1x8x8xbf16>
    %104 = vector.shape_cast %103 : vector<1x8x8xbf16> to vector<8x8xbf16>
    %cst_139 = arith.constant dense<0.000000e+00> : vector<72x8xf32>
    %105 = tpu.matmul %102, %104, %cst_139 {dimension_numbers = #tpu.dot_dimension_numbers<[1], [0], [0], [1], [0, 0, 1, 1], [], []>} : vector<72x8xbf16>, vector<8x8xbf16>, vector<72x8xf32> -> vector<72x8xf32>
    %106 = arith.addf %101, %105 : vector<72x8xf32>
    %c0_140 = arith.constant 0 : index
    %c0_141 = arith.constant 0 : index
    %107 = vector.load %arg3[%c0_140, %c0_141] : memref<1x8xf32, #tpu.memory_space<vmem>>, vector<1x8xf32>
    %108 = vector.broadcast %107 : vector<1x8xf32> to vector<72x8xf32>
    %109 = arith.addf %106, %108 : vector<72x8xf32>
    %cst_142 = arith.constant 0.000000e+00 : f32
    %110 = vector.broadcast %cst_142 : f32 to vector<72x8xf32>
    %111 = arith.cmpf oge, %109, %110 : vector<72x8xf32>
    %cst_143 = arith.constant 2.000000e-01 : f32
    %112 = vector.broadcast %cst_143 : f32 to vector<72x8xf32>
    %113 = arith.mulf %112, %109 : vector<72x8xf32>
    %114 = arith.select %111, %109, %113 : vector<72x8xi1>, vector<72x8xf32>
    %115 = arith.truncf %114 : vector<72x8xf32> to vector<72x8xbf16>
    %116 = vector.extract_strided_slice %115 {offsets = [0, 0], sizes = [8, 8], strides = [1, 1]} : vector<72x8xbf16> to vector<8x8xbf16>
    %c19 = arith.constant 19 : index
    %c0_144 = arith.constant 0 : index
    %117 = vector.load %arg9[%c19, %c0_144] : memref<116x8xbf16, #tpu.memory_space<vmem>>, vector<8x8xbf16>
    tpu.vector_store %arg9[%c19, %c0_144], %116 {strides = array<i32>} : memref<116x8xbf16, #tpu.memory_space<vmem>>, vector<8x8xbf16>,
    %118 = vector.extract_strided_slice %115 {offsets = [9, 0], sizes = [8, 8], strides = [1, 1]} : vector<72x8xbf16> to vector<8x8xbf16>
    %c29 = arith.constant 29 : index
    %c0_145 = arith.constant 0 : index
    %119 = vector.load %arg9[%c29, %c0_145] : memref<116x8xbf16, #tpu.memory_space<vmem>>, vector<8x8xbf16>
    tpu.vector_store %arg9[%c29, %c0_145], %118 {strides = array<i32>} : memref<116x8xbf16, #tpu.memory_space<vmem>>, vector<8x8xbf16>,
    %120 = vector.extract_strided_slice %115 {offsets = [18, 0], sizes = [8, 8], strides = [1, 1]} : vector<72x8xbf16> to vector<8x8xbf16>
    %c39 = arith.constant 39 : index
    %c0_146 = arith.constant 0 : index
    %121 = vector.load %arg9[%c39, %c0_146] : memref<116x8xbf16, #tpu.memory_space<vmem>>, vector<8x8xbf16>
    tpu.vector_store %arg9[%c39, %c0_146], %120 {strides = array<i32>} : memref<116x8xbf16, #tpu.memory_space<vmem>>, vector<8x8xbf16>,
    %122 = vector.extract_strided_slice %115 {offsets = [27, 0], sizes = [8, 8], strides = [1, 1]} : vector<72x8xbf16> to vector<8x8xbf16>
    %c49 = arith.constant 49 : index
    %c0_147 = arith.constant 0 : index
    %123 = vector.load %arg9[%c49, %c0_147] : memref<116x8xbf16, #tpu.memory_space<vmem>>, vector<8x8xbf16>
    tpu.vector_store %arg9[%c49, %c0_147], %122 {strides = array<i32>} : memref<116x8xbf16, #tpu.memory_space<vmem>>, vector<8x8xbf16>,
    %124 = vector.extract_strided_slice %115 {offsets = [36, 0], sizes = [8, 8], strides = [1, 1]} : vector<72x8xbf16> to vector<8x8xbf16>
    %c59 = arith.constant 59 : index
    %c0_148 = arith.constant 0 : index
    %125 = vector.load %arg9[%c59, %c0_148] : memref<116x8xbf16, #tpu.memory_space<vmem>>, vector<8x8xbf16>
    tpu.vector_store %arg9[%c59, %c0_148], %124 {strides = array<i32>} : memref<116x8xbf16, #tpu.memory_space<vmem>>, vector<8x8xbf16>,
    %126 = vector.extract_strided_slice %115 {offsets = [45, 0], sizes = [8, 8], strides = [1, 1]} : vector<72x8xbf16> to vector<8x8xbf16>
    %c69 = arith.constant 69 : index
    %c0_149 = arith.constant 0 : index
    %127 = vector.load %arg9[%c69, %c0_149] : memref<116x8xbf16, #tpu.memory_space<vmem>>, vector<8x8xbf16>
    tpu.vector_store %arg9[%c69, %c0_149], %126 {strides = array<i32>} : memref<116x8xbf16, #tpu.memory_space<vmem>>, vector<8x8xbf16>,
    %128 = vector.extract_strided_slice %115 {offsets = [54, 0], sizes = [8, 8], strides = [1, 1]} : vector<72x8xbf16> to vector<8x8xbf16>
    %c79 = arith.constant 79 : index
    %c0_150 = arith.constant 0 : index
    %129 = vector.load %arg9[%c79, %c0_150] : memref<116x8xbf16, #tpu.memory_space<vmem>>, vector<8x8xbf16>
    tpu.vector_store %arg9[%c79, %c0_150], %128 {strides = array<i32>} : memref<116x8xbf16, #tpu.memory_space<vmem>>, vector<8x8xbf16>,
    %130 = vector.extract_strided_slice %115 {offsets = [63, 0], sizes = [8, 8], strides = [1, 1]} : vector<72x8xbf16> to vector<8x8xbf16>
    %c89 = arith.constant 89 : index
    %c0_151 = arith.constant 0 : index
    %131 = vector.load %arg9[%c89, %c0_151] : memref<116x8xbf16, #tpu.memory_space<vmem>>, vector<8x8xbf16>
    tpu.vector_store %arg9[%c89, %c0_151], %130 {strides = array<i32>} : memref<116x8xbf16, #tpu.memory_space<vmem>>, vector<8x8xbf16>,
    %cst_152 = arith.constant 0.000000e+00 : f32
    %132 = vector.broadcast %cst_152 : f32 to vector<80x8xf32>
    %c8 = arith.constant 8 : index
    %c0_153 = arith.constant 0 : index
    %133 = vector.load %arg9[%c8, %c0_153] : memref<116x8xbf16, #tpu.memory_space<vmem>>, vector<80x8xbf16>
    %c0_154 = arith.constant 0 : index
    %c0_155 = arith.constant 0 : index
    %c0_156 = arith.constant 0 : index
    %134 = vector.load %arg4[%c0_154, %c0_155, %c0_156] : memref<9x8x8xbf16, #tpu.memory_space<vmem>>, vector<1x8x8xbf16>
    %135 = vector.shape_cast %134 : vector<1x8x8xbf16> to vector<8x8xbf16>
    %cst_157 = arith.constant dense<0.000000e+00> : vector<80x8xf32>
    %136 = tpu.matmul %133, %135, %cst_157 {dimension_numbers = #tpu.dot_dimension_numbers<[1], [0], [0], [1], [0, 0, 1, 1], [], []>} : vector<80x8xbf16>, vector<8x8xbf16>, vector<80x8xf32> -> vector<80x8xf32>
    %137 = arith.addf %132, %136 : vector<80x8xf32>
    %c9_158 = arith.constant 9 : index
    %c0_159 = arith.constant 0 : index
    %138 = vector.load %arg9[%c9_158, %c0_159] : memref<116x8xbf16, #tpu.memory_space<vmem>>, vector<80x8xbf16>
    %c1_160 = arith.constant 1 : index
    %c0_161 = arith.constant 0 : index
    %c0_162 = arith.constant 0 : index
    %139 = vector.load %arg4[%c1_160, %c0_161, %c0_162] : memref<9x8x8xbf16, #tpu.memory_space<vmem>>, vector<1x8x8xbf16>
    %140 = vector.shape_cast %139 : vector<1x8x8xbf16> to vector<8x8xbf16>
    %cst_163 = arith.constant dense<0.000000e+00> : vector<80x8xf32>
    %141 = tpu.matmul %138, %140, %cst_163 {dimension_numbers = #tpu.dot_dimension_numbers<[1], [0], [0], [1], [0, 0, 1, 1], [], []>} : vector<80x8xbf16>, vector<8x8xbf16>, vector<80x8xf32> -> vector<80x8xf32>
    %142 = arith.addf %137, %141 : vector<80x8xf32>
    %c10 = arith.constant 10 : index
    %c0_164 = arith.constant 0 : index
    %143 = vector.load %arg9[%c10, %c0_164] : memref<116x8xbf16, #tpu.memory_space<vmem>>, vector<80x8xbf16>
    %c2_165 = arith.constant 2 : index
    %c0_166 = arith.constant 0 : index
    %c0_167 = arith.constant 0 : index
    %144 = vector.load %arg4[%c2_165, %c0_166, %c0_167] : memref<9x8x8xbf16, #tpu.memory_space<vmem>>, vector<1x8x8xbf16>
    %145 = vector.shape_cast %144 : vector<1x8x8xbf16> to vector<8x8xbf16>
    %cst_168 = arith.constant dense<0.000000e+00> : vector<80x8xf32>
    %146 = tpu.matmul %143, %145, %cst_168 {dimension_numbers = #tpu.dot_dimension_numbers<[1], [0], [0], [1], [0, 0, 1, 1], [], []>} : vector<80x8xbf16>, vector<8x8xbf16>, vector<80x8xf32> -> vector<80x8xf32>
    %147 = arith.addf %142, %146 : vector<80x8xf32>
    %c18_169 = arith.constant 18 : index
    %c0_170 = arith.constant 0 : index
    %148 = vector.load %arg9[%c18_169, %c0_170] : memref<116x8xbf16, #tpu.memory_space<vmem>>, vector<80x8xbf16>
    %c3_171 = arith.constant 3 : index
    %c0_172 = arith.constant 0 : index
    %c0_173 = arith.constant 0 : index
    %149 = vector.load %arg4[%c3_171, %c0_172, %c0_173] : memref<9x8x8xbf16, #tpu.memory_space<vmem>>, vector<1x8x8xbf16>
    %150 = vector.shape_cast %149 : vector<1x8x8xbf16> to vector<8x8xbf16>
    %cst_174 = arith.constant dense<0.000000e+00> : vector<80x8xf32>
    %151 = tpu.matmul %148, %150, %cst_174 {dimension_numbers = #tpu.dot_dimension_numbers<[1], [0], [0], [1], [0, 0, 1, 1], [], []>} : vector<80x8xbf16>, vector<8x8xbf16>, vector<80x8xf32> -> vector<80x8xf32>
    %152 = arith.addf %147, %151 : vector<80x8xf32>
    %c19_175 = arith.constant 19 : index
    %c0_176 = arith.constant 0 : index
    %153 = vector.load %arg9[%c19_175, %c0_176] : memref<116x8xbf16, #tpu.memory_space<vmem>>, vector<80x8xbf16>
    %c4_177 = arith.constant 4 : index
    %c0_178 = arith.constant 0 : index
    %c0_179 = arith.constant 0 : index
    %154 = vector.load %arg4[%c4_177, %c0_178, %c0_179] : memref<9x8x8xbf16, #tpu.memory_space<vmem>>, vector<1x8x8xbf16>
    %155 = vector.shape_cast %154 : vector<1x8x8xbf16> to vector<8x8xbf16>
    %cst_180 = arith.constant dense<0.000000e+00> : vector<80x8xf32>
    %156 = tpu.matmul %153, %155, %cst_180 {dimension_numbers = #tpu.dot_dimension_numbers<[1], [0], [0], [1], [0, 0, 1, 1], [], []>} : vector<80x8xbf16>, vector<8x8xbf16>, vector<80x8xf32> -> vector<80x8xf32>
    %157 = arith.addf %152, %156 : vector<80x8xf32>
    %c20 = arith.constant 20 : index
    %c0_181 = arith.constant 0 : index
    %158 = vector.load %arg9[%c20, %c0_181] : memref<116x8xbf16, #tpu.memory_space<vmem>>, vector<80x8xbf16>
    %c5_182 = arith.constant 5 : index
    %c0_183 = arith.constant 0 : index
    %c0_184 = arith.constant 0 : index
    %159 = vector.load %arg4[%c5_182, %c0_183, %c0_184] : memref<9x8x8xbf16, #tpu.memory_space<vmem>>, vector<1x8x8xbf16>
    %160 = vector.shape_cast %159 : vector<1x8x8xbf16> to vector<8x8xbf16>
    %cst_185 = arith.constant dense<0.000000e+00> : vector<80x8xf32>
    %161 = tpu.matmul %158, %160, %cst_185 {dimension_numbers = #tpu.dot_dimension_numbers<[1], [0], [0], [1], [0, 0, 1, 1], [], []>} : vector<80x8xbf16>, vector<8x8xbf16>, vector<80x8xf32> -> vector<80x8xf32>
    %162 = arith.addf %157, %161 : vector<80x8xf32>
    %c28 = arith.constant 28 : index
    %c0_186 = arith.constant 0 : index
    %163 = vector.load %arg9[%c28, %c0_186] : memref<116x8xbf16, #tpu.memory_space<vmem>>, vector<80x8xbf16>
    %c6 = arith.constant 6 : index
    %c0_187 = arith.constant 0 : index
    %c0_188 = arith.constant 0 : index
    %164 = vector.load %arg4[%c6, %c0_187, %c0_188] : memref<9x8x8xbf16, #tpu.memory_space<vmem>>, vector<1x8x8xbf16>
    %165 = vector.shape_cast %164 : vector<1x8x8xbf16> to vector<8x8xbf16>
    %cst_189 = arith.constant dense<0.000000e+00> : vector<80x8xf32>
    %166 = tpu.matmul %163, %165, %cst_189 {dimension_numbers = #tpu.dot_dimension_numbers<[1], [0], [0], [1], [0, 0, 1, 1], [], []>} : vector<80x8xbf16>, vector<8x8xbf16>, vector<80x8xf32> -> vector<80x8xf32>
    %167 = arith.addf %162, %166 : vector<80x8xf32>
    %c29_190 = arith.constant 29 : index
    %c0_191 = arith.constant 0 : index
    %168 = vector.load %arg9[%c29_190, %c0_191] : memref<116x8xbf16, #tpu.memory_space<vmem>>, vector<80x8xbf16>
    %c7 = arith.constant 7 : index
    %c0_192 = arith.constant 0 : index
    %c0_193 = arith.constant 0 : index
    %169 = vector.load %arg4[%c7, %c0_192, %c0_193] : memref<9x8x8xbf16, #tpu.memory_space<vmem>>, vector<1x8x8xbf16>
    %170 = vector.shape_cast %169 : vector<1x8x8xbf16> to vector<8x8xbf16>
    %cst_194 = arith.constant dense<0.000000e+00> : vector<80x8xf32>
    %171 = tpu.matmul %168, %170, %cst_194 {dimension_numbers = #tpu.dot_dimension_numbers<[1], [0], [0], [1], [0, 0, 1, 1], [], []>} : vector<80x8xbf16>, vector<8x8xbf16>, vector<80x8xf32> -> vector<80x8xf32>
    %172 = arith.addf %167, %171 : vector<80x8xf32>
    %c30 = arith.constant 30 : index
    %c0_195 = arith.constant 0 : index
    %173 = vector.load %arg9[%c30, %c0_195] : memref<116x8xbf16, #tpu.memory_space<vmem>>, vector<80x8xbf16>
    %c8_196 = arith.constant 8 : index
    %c0_197 = arith.constant 0 : index
    %c0_198 = arith.constant 0 : index
    %174 = vector.load %arg4[%c8_196, %c0_197, %c0_198] : memref<9x8x8xbf16, #tpu.memory_space<vmem>>, vector<1x8x8xbf16>
    %175 = vector.shape_cast %174 : vector<1x8x8xbf16> to vector<8x8xbf16>
    %cst_199 = arith.constant dense<0.000000e+00> : vector<80x8xf32>
    %176 = tpu.matmul %173, %175, %cst_199 {dimension_numbers = #tpu.dot_dimension_numbers<[1], [0], [0], [1], [0, 0, 1, 1], [], []>} : vector<80x8xbf16>, vector<8x8xbf16>, vector<80x8xf32> -> vector<80x8xf32>
    %177 = arith.addf %172, %176 : vector<80x8xf32>
    %c0_200 = arith.constant 0 : index
    %c0_201 = arith.constant 0 : index
    %178 = vector.load %arg5[%c0_200, %c0_201] : memref<1x8xf32, #tpu.memory_space<vmem>>, vector<1x8xf32>
    %179 = vector.broadcast %178 : vector<1x8xf32> to vector<80x8xf32>
    %180 = arith.addf %177, %179 : vector<80x8xf32>
    %cst_202 = arith.constant 0.000000e+00 : f32
    %181 = vector.broadcast %cst_202 : f32 to vector<80x8xf32>
    %182 = arith.cmpf oge, %180, %181 : vector<80x8xf32>
    %cst_203 = arith.constant 2.000000e-01 : f32
    %183 = vector.broadcast %cst_203 : f32 to vector<80x8xf32>
    %184 = arith.mulf %183, %180 : vector<80x8xf32>
    %185 = arith.select %182, %180, %184 : vector<80x8xi1>, vector<80x8xf32>
    %186 = vector.extract_strided_slice %185 {offsets = [0, 0], sizes = [8, 8], strides = [1, 1]} : vector<80x8xf32> to vector<8x8xf32>
    %c0_204 = arith.constant 0 : index
    %c9_205 = arith.constant 9 : index
    %c0_206 = arith.constant 0 : index
    %187 = vector.load %arg1[%c0_204, %c9_205, %c0_206] : memref<1x171x8xbf16, #tpu.memory_space<vmem>>, vector<1x8x8xbf16>
    %188 = vector.shape_cast %187 : vector<1x8x8xbf16> to vector<8x8xbf16>
    %c0_207 = arith.constant 0 : index
    %c0_208 = arith.constant 0 : index
    %189 = vector.load %arg6[%c0_207, %c0_208] : memref<8x8xbf16, #tpu.memory_space<vmem>>, vector<8x8xbf16>
    %cst_209 = arith.constant dense<0.000000e+00> : vector<8x8xf32>
    %190 = tpu.matmul %188, %189, %cst_209 {dimension_numbers = #tpu.dot_dimension_numbers<[1], [0], [0], [1], [0, 0, 1, 1], [], []>} : vector<8x8xbf16>, vector<8x8xbf16>, vector<8x8xf32> -> vector<8x8xf32>
    %191 = arith.addf %186, %190 : vector<8x8xf32>
    %c0_210 = arith.constant 0 : index
    %c0_211 = arith.constant 0 : index
    %192 = vector.load %arg7[%c0_210, %c0_211] : memref<1x8xf32, #tpu.memory_space<vmem>>, vector<1x8xf32>
    %193 = vector.broadcast %192 : vector<1x8xf32> to vector<8x8xf32>
    %194 = arith.addf %191, %193 : vector<8x8xf32>
    %c0_212 = arith.constant 0 : index
    %c0_213 = arith.constant 0 : index
    %c0_214 = arith.constant 0 : index
    %c0_215 = arith.constant 0 : index
    %195 = vector.load %arg8[%c0_212, %c0_213, %c0_214, %c0_215] : memref<1x8x8x8xf32, #tpu.memory_space<vmem>>, vector<1x1x8x8xf32>
    %196 = vector.shape_cast %195 : vector<1x1x8x8xf32> to vector<8x8xf32>
    %197 = vector.shape_cast %194 : vector<8x8xf32> to vector<1x1x8x8xf32>
    tpu.vector_store %arg8[%c0_212, %c0_213, %c0_214, %c0_215], %197 {strides = array<i32>} : memref<1x8x8x8xf32, #tpu.memory_space<vmem>>, vector<1x1x8x8xf32>,
    %198 = vector.extract_strided_slice %185 {offsets = [10, 0], sizes = [8, 8], strides = [1, 1]} : vector<80x8xf32> to vector<8x8xf32>
    %c0_216 = arith.constant 0 : index
    %c27_217 = arith.constant 27 : index
    %c0_218 = arith.constant 0 : index
    %199 = vector.load %arg1[%c0_216, %c27_217, %c0_218] : memref<1x171x8xbf16, #tpu.memory_space<vmem>>, vector<1x8x8xbf16>
    %200 = vector.shape_cast %199 : vector<1x8x8xbf16> to vector<8x8xbf16>
    %c0_219 = arith.constant 0 : index
    %c0_220 = arith.constant 0 : index
    %201 = vector.load %arg6[%c0_219, %c0_220] : memref<8x8xbf16, #tpu.memory_space<vmem>>, vector<8x8xbf16>
    %cst_221 = arith.constant dense<0.000000e+00> : vector<8x8xf32>
    %202 = tpu.matmul %200, %201, %cst_221 {dimension_numbers = #tpu.dot_dimension_numbers<[1], [0], [0], [1], [0, 0, 1, 1], [], []>} : vector<8x8xbf16>, vector<8x8xbf16>, vector<8x8xf32> -> vector<8x8xf32>
    %203 = arith.addf %198, %202 : vector<8x8xf32>
    %c0_222 = arith.constant 0 : index
    %c0_223 = arith.constant 0 : index
    %204 = vector.load %arg7[%c0_222, %c0_223] : memref<1x8xf32, #tpu.memory_space<vmem>>, vector<1x8xf32>
    %205 = vector.broadcast %204 : vector<1x8xf32> to vector<8x8xf32>
    %206 = arith.addf %203, %205 : vector<8x8xf32>
    %c0_224 = arith.constant 0 : index
    %c1_225 = arith.constant 1 : index
    %c0_226 = arith.constant 0 : index
    %c0_227 = arith.constant 0 : index
    %207 = vector.load %arg8[%c0_224, %c1_225, %c0_226, %c0_227] : memref<1x8x8x8xf32, #tpu.memory_space<vmem>>, vector<1x1x8x8xf32>
    %208 = vector.shape_cast %207 : vector<1x1x8x8xf32> to vector<8x8xf32>
    %209 = vector.shape_cast %206 : vector<8x8xf32> to vector<1x1x8x8xf32>
    tpu.vector_store %arg8[%c0_224, %c1_225, %c0_226, %c0_227], %209 {strides = array<i32>} : memref<1x8x8x8xf32, #tpu.memory_space<vmem>>, vector<1x1x8x8xf32>,
    %210 = vector.extract_strided_slice %185 {offsets = [20, 0], sizes = [8, 8], strides = [1, 1]} : vector<80x8xf32> to vector<8x8xf32>
    %c0_228 = arith.constant 0 : index
    %c45_229 = arith.constant 45 : index
    %c0_230 = arith.constant 0 : index
    %211 = vector.load %arg1[%c0_228, %c45_229, %c0_230] : memref<1x171x8xbf16, #tpu.memory_space<vmem>>, vector<1x8x8xbf16>
    %212 = vector.shape_cast %211 : vector<1x8x8xbf16> to vector<8x8xbf16>
    %c0_231 = arith.constant 0 : index
    %c0_232 = arith.constant 0 : index
    %213 = vector.load %arg6[%c0_231, %c0_232] : memref<8x8xbf16, #tpu.memory_space<vmem>>, vector<8x8xbf16>
    %cst_233 = arith.constant dense<0.000000e+00> : vector<8x8xf32>
    %214 = tpu.matmul %212, %213, %cst_233 {dimension_numbers = #tpu.dot_dimension_numbers<[1], [0], [0], [1], [0, 0, 1, 1], [], []>} : vector<8x8xbf16>, vector<8x8xbf16>, vector<8x8xf32> -> vector<8x8xf32>
    %215 = arith.addf %210, %214 : vector<8x8xf32>
    %c0_234 = arith.constant 0 : index
    %c0_235 = arith.constant 0 : index
    %216 = vector.load %arg7[%c0_234, %c0_235] : memref<1x8xf32, #tpu.memory_space<vmem>>, vector<1x8xf32>
    %217 = vector.broadcast %216 : vector<1x8xf32> to vector<8x8xf32>
    %218 = arith.addf %215, %217 : vector<8x8xf32>
    %c0_236 = arith.constant 0 : index
    %c2_237 = arith.constant 2 : index
    %c0_238 = arith.constant 0 : index
    %c0_239 = arith.constant 0 : index
    %219 = vector.load %arg8[%c0_236, %c2_237, %c0_238, %c0_239] : memref<1x8x8x8xf32, #tpu.memory_space<vmem>>, vector<1x1x8x8xf32>
    %220 = vector.shape_cast %219 : vector<1x1x8x8xf32> to vector<8x8xf32>
    %221 = vector.shape_cast %218 : vector<8x8xf32> to vector<1x1x8x8xf32>
    tpu.vector_store %arg8[%c0_236, %c2_237, %c0_238, %c0_239], %221 {strides = array<i32>} : memref<1x8x8x8xf32, #tpu.memory_space<vmem>>, vector<1x1x8x8xf32>,
    %222 = vector.extract_strided_slice %185 {offsets = [30, 0], sizes = [8, 8], strides = [1, 1]} : vector<80x8xf32> to vector<8x8xf32>
    %c0_240 = arith.constant 0 : index
    %c63_241 = arith.constant 63 : index
    %c0_242 = arith.constant 0 : index
    %223 = vector.load %arg1[%c0_240, %c63_241, %c0_242] : memref<1x171x8xbf16, #tpu.memory_space<vmem>>, vector<1x8x8xbf16>
    %224 = vector.shape_cast %223 : vector<1x8x8xbf16> to vector<8x8xbf16>
    %c0_243 = arith.constant 0 : index
    %c0_244 = arith.constant 0 : index
    %225 = vector.load %arg6[%c0_243, %c0_244] : memref<8x8xbf16, #tpu.memory_space<vmem>>, vector<8x8xbf16>
    %cst_245 = arith.constant dense<0.000000e+00> : vector<8x8xf32>
    %226 = tpu.matmul %224, %225, %cst_245 {dimension_numbers = #tpu.dot_dimension_numbers<[1], [0], [0], [1], [0, 0, 1, 1], [], []>} : vector<8x8xbf16>, vector<8x8xbf16>, vector<8x8xf32> -> vector<8x8xf32>
    %227 = arith.addf %222, %226 : vector<8x8xf32>
    %c0_246 = arith.constant 0 : index
    %c0_247 = arith.constant 0 : index
    %228 = vector.load %arg7[%c0_246, %c0_247] : memref<1x8xf32, #tpu.memory_space<vmem>>, vector<1x8xf32>
    %229 = vector.broadcast %228 : vector<1x8xf32> to vector<8x8xf32>
    %230 = arith.addf %227, %229 : vector<8x8xf32>
    %c0_248 = arith.constant 0 : index
    %c3_249 = arith.constant 3 : index
    %c0_250 = arith.constant 0 : index
    %c0_251 = arith.constant 0 : index
    %231 = vector.load %arg8[%c0_248, %c3_249, %c0_250, %c0_251] : memref<1x8x8x8xf32, #tpu.memory_space<vmem>>, vector<1x1x8x8xf32>
    %232 = vector.shape_cast %231 : vector<1x1x8x8xf32> to vector<8x8xf32>
    %233 = vector.shape_cast %230 : vector<8x8xf32> to vector<1x1x8x8xf32>
    tpu.vector_store %arg8[%c0_248, %c3_249, %c0_250, %c0_251], %233 {strides = array<i32>} : memref<1x8x8x8xf32, #tpu.memory_space<vmem>>, vector<1x1x8x8xf32>,
    %234 = vector.extract_strided_slice %185 {offsets = [40, 0], sizes = [8, 8], strides = [1, 1]} : vector<80x8xf32> to vector<8x8xf32>
    %c0_252 = arith.constant 0 : index
    %c81_253 = arith.constant 81 : index
    %c0_254 = arith.constant 0 : index
    %235 = vector.load %arg1[%c0_252, %c81_253, %c0_254] : memref<1x171x8xbf16, #tpu.memory_space<vmem>>, vector<1x8x8xbf16>
    %236 = vector.shape_cast %235 : vector<1x8x8xbf16> to vector<8x8xbf16>
    %c0_255 = arith.constant 0 : index
    %c0_256 = arith.constant 0 : index
    %237 = vector.load %arg6[%c0_255, %c0_256] : memref<8x8xbf16, #tpu.memory_space<vmem>>, vector<8x8xbf16>
    %cst_257 = arith.constant dense<0.000000e+00> : vector<8x8xf32>
    %238 = tpu.matmul %236, %237, %cst_257 {dimension_numbers = #tpu.dot_dimension_numbers<[1], [0], [0], [1], [0, 0, 1, 1], [], []>} : vector<8x8xbf16>, vector<8x8xbf16>, vector<8x8xf32> -> vector<8x8xf32>
    %239 = arith.addf %234, %238 : vector<8x8xf32>
    %c0_258 = arith.constant 0 : index
    %c0_259 = arith.constant 0 : index
    %240 = vector.load %arg7[%c0_258, %c0_259] : memref<1x8xf32, #tpu.memory_space<vmem>>, vector<1x8xf32>
    %241 = vector.broadcast %240 : vector<1x8xf32> to vector<8x8xf32>
    %242 = arith.addf %239, %241 : vector<8x8xf32>
    %c0_260 = arith.constant 0 : index
    %c4_261 = arith.constant 4 : index
    %c0_262 = arith.constant 0 : index
    %c0_263 = arith.constant 0 : index
    %243 = vector.load %arg8[%c0_260, %c4_261, %c0_262, %c0_263] : memref<1x8x8x8xf32, #tpu.memory_space<vmem>>, vector<1x1x8x8xf32>
    %244 = vector.shape_cast %243 : vector<1x1x8x8xf32> to vector<8x8xf32>
    %245 = vector.shape_cast %242 : vector<8x8xf32> to vector<1x1x8x8xf32>
    tpu.vector_store %arg8[%c0_260, %c4_261, %c0_262, %c0_263], %245 {strides = array<i32>} : memref<1x8x8x8xf32, #tpu.memory_space<vmem>>, vector<1x1x8x8xf32>,
    %246 = vector.extract_strided_slice %185 {offsets = [50, 0], sizes = [8, 8], strides = [1, 1]} : vector<80x8xf32> to vector<8x8xf32>
    %c0_264 = arith.constant 0 : index
    %c99_265 = arith.constant 99 : index
    %c0_266 = arith.constant 0 : index
    %247 = vector.load %arg1[%c0_264, %c99_265, %c0_266] : memref<1x171x8xbf16, #tpu.memory_space<vmem>>, vector<1x8x8xbf16>
    %248 = vector.shape_cast %247 : vector<1x8x8xbf16> to vector<8x8xbf16>
    %c0_267 = arith.constant 0 : index
    %c0_268 = arith.constant 0 : index
    %249 = vector.load %arg6[%c0_267, %c0_268] : memref<8x8xbf16, #tpu.memory_space<vmem>>, vector<8x8xbf16>
    %cst_269 = arith.constant dense<0.000000e+00> : vector<8x8xf32>
    %250 = tpu.matmul %248, %249, %cst_269 {dimension_numbers = #tpu.dot_dimension_numbers<[1], [0], [0], [1], [0, 0, 1, 1], [], []>} : vector<8x8xbf16>, vector<8x8xbf16>, vector<8x8xf32> -> vector<8x8xf32>
    %251 = arith.addf %246, %250 : vector<8x8xf32>
    %c0_270 = arith.constant 0 : index
    %c0_271 = arith.constant 0 : index
    %252 = vector.load %arg7[%c0_270, %c0_271] : memref<1x8xf32, #tpu.memory_space<vmem>>, vector<1x8xf32>
    %253 = vector.broadcast %252 : vector<1x8xf32> to vector<8x8xf32>
    %254 = arith.addf %251, %253 : vector<8x8xf32>
    %c0_272 = arith.constant 0 : index
    %c5_273 = arith.constant 5 : index
    %c0_274 = arith.constant 0 : index
    %c0_275 = arith.constant 0 : index
    %255 = vector.load %arg8[%c0_272, %c5_273, %c0_274, %c0_275] : memref<1x8x8x8xf32, #tpu.memory_space<vmem>>, vector<1x1x8x8xf32>
    %256 = vector.shape_cast %255 : vector<1x1x8x8xf32> to vector<8x8xf32>
    %257 = vector.shape_cast %254 : vector<8x8xf32> to vector<1x1x8x8xf32>
    tpu.vector_store %arg8[%c0_272, %c5_273, %c0_274, %c0_275], %257 {strides = array<i32>} : memref<1x8x8x8xf32, #tpu.memory_space<vmem>>, vector<1x1x8x8xf32>,
    %258 = vector.extract_strided_slice %185 {offsets = [60, 0], sizes = [8, 8], strides = [1, 1]} : vector<80x8xf32> to vector<8x8xf32>
    %c0_276 = arith.constant 0 : index
    %c117_277 = arith.constant 117 : index
    %c0_278 = arith.constant 0 : index
    %259 = vector.load %arg1[%c0_276, %c117_277, %c0_278] : memref<1x171x8xbf16, #tpu.memory_space<vmem>>, vector<1x8x8xbf16>
    %260 = vector.shape_cast %259 : vector<1x8x8xbf16> to vector<8x8xbf16>
    %c0_279 = arith.constant 0 : index
    %c0_280 = arith.constant 0 : index
    %261 = vector.load %arg6[%c0_279, %c0_280] : memref<8x8xbf16, #tpu.memory_space<vmem>>, vector<8x8xbf16>
    %cst_281 = arith.constant dense<0.000000e+00> : vector<8x8xf32>
    %262 = tpu.matmul %260, %261, %cst_281 {dimension_numbers = #tpu.dot_dimension_numbers<[1], [0], [0], [1], [0, 0, 1, 1], [], []>} : vector<8x8xbf16>, vector<8x8xbf16>, vector<8x8xf32> -> vector<8x8xf32>
    %263 = arith.addf %258, %262 : vector<8x8xf32>
    %c0_282 = arith.constant 0 : index
    %c0_283 = arith.constant 0 : index
    %264 = vector.load %arg7[%c0_282, %c0_283] : memref<1x8xf32, #tpu.memory_space<vmem>>, vector<1x8xf32>
    %265 = vector.broadcast %264 : vector<1x8xf32> to vector<8x8xf32>
    %266 = arith.addf %263, %265 : vector<8x8xf32>
    %c0_284 = arith.constant 0 : index
    %c6_285 = arith.constant 6 : index
    %c0_286 = arith.constant 0 : index
    %c0_287 = arith.constant 0 : index
    %267 = vector.load %arg8[%c0_284, %c6_285, %c0_286, %c0_287] : memref<1x8x8x8xf32, #tpu.memory_space<vmem>>, vector<1x1x8x8xf32>
    %268 = vector.shape_cast %267 : vector<1x1x8x8xf32> to vector<8x8xf32>
    %269 = vector.shape_cast %266 : vector<8x8xf32> to vector<1x1x8x8xf32>
    tpu.vector_store %arg8[%c0_284, %c6_285, %c0_286, %c0_287], %269 {strides = array<i32>} : memref<1x8x8x8xf32, #tpu.memory_space<vmem>>, vector<1x1x8x8xf32>,
    %270 = vector.extract_strided_slice %185 {offsets = [70, 0], sizes = [8, 8], strides = [1, 1]} : vector<80x8xf32> to vector<8x8xf32>
    %c0_288 = arith.constant 0 : index
    %c135_289 = arith.constant 135 : index
    %c0_290 = arith.constant 0 : index
    %271 = vector.load %arg1[%c0_288, %c135_289, %c0_290] : memref<1x171x8xbf16, #tpu.memory_space<vmem>>, vector<1x8x8xbf16>
    %272 = vector.shape_cast %271 : vector<1x8x8xbf16> to vector<8x8xbf16>
    %c0_291 = arith.constant 0 : index
    %c0_292 = arith.constant 0 : index
    %273 = vector.load %arg6[%c0_291, %c0_292] : memref<8x8xbf16, #tpu.memory_space<vmem>>, vector<8x8xbf16>
    %cst_293 = arith.constant dense<0.000000e+00> : vector<8x8xf32>
    %274 = tpu.matmul %272, %273, %cst_293 {dimension_numbers = #tpu.dot_dimension_numbers<[1], [0], [0], [1], [0, 0, 1, 1], [], []>} : vector<8x8xbf16>, vector<8x8xbf16>, vector<8x8xf32> -> vector<8x8xf32>
    %275 = arith.addf %270, %274 : vector<8x8xf32>
    %c0_294 = arith.constant 0 : index
    %c0_295 = arith.constant 0 : index
    %276 = vector.load %arg7[%c0_294, %c0_295] : memref<1x8xf32, #tpu.memory_space<vmem>>, vector<1x8xf32>
    %277 = vector.broadcast %276 : vector<1x8xf32> to vector<8x8xf32>
    %278 = arith.addf %275, %277 : vector<8x8xf32>
    %c0_296 = arith.constant 0 : index
    %c7_297 = arith.constant 7 : index
    %c0_298 = arith.constant 0 : index
    %c0_299 = arith.constant 0 : index
    %279 = vector.load %arg8[%c0_296, %c7_297, %c0_298, %c0_299] : memref<1x8x8x8xf32, #tpu.memory_space<vmem>>, vector<1x1x8x8xf32>
    %280 = vector.shape_cast %279 : vector<1x1x8x8xf32> to vector<8x8xf32>
    %281 = vector.shape_cast %278 : vector<8x8xf32> to vector<1x1x8x8xf32>
    tpu.vector_store %arg8[%c0_296, %c7_297, %c0_298, %c0_299], %281 {strides = array<i32>} : memref<1x8x8x8xf32, #tpu.memory_space<vmem>>, vector<1x1x8x8xf32>,
    return
  }
  func.func @transform_0(%arg0: i32) -> (i32, i32, i32) {
    %c0_i32 = arith.constant 0 : i32
    %c0_i32_0 = arith.constant 0 : i32
    %c0_i32_1 = arith.constant 0 : i32
    return %arg0, %c0_i32, %c0_i32_0 : i32, i32, i32
  }
  func.func @transform_1(%arg0: i32) -> (i32, i32, i32) {
    %c0_i32 = arith.constant 0 : i32
    %c0_i32_0 = arith.constant 0 : i32
    %c0_i32_1 = arith.constant 0 : i32
    %c0_i32_2 = arith.constant 0 : i32
    return %c0_i32, %c0_i32_0, %c0_i32_1 : i32, i32, i32
  }
  func.func @transform_2(%arg0: i32) -> (i32, i32) {
    %c0_i32 = arith.constant 0 : i32
    %c0_i32_0 = arith.constant 0 : i32
    %c0_i32_1 = arith.constant 0 : i32
    return %c0_i32, %c0_i32_0 : i32, i32
  }
  func.func @transform_3(%arg0: i32) -> (i32, i32, i32) {
    %c0_i32 = arith.constant 0 : i32
    %c0_i32_0 = arith.constant 0 : i32
    %c0_i32_1 = arith.constant 0 : i32
    %c0_i32_2 = arith.constant 0 : i32
    return %c0_i32, %c0_i32_0, %c0_i32_1 : i32, i32, i32
  }
  func.func @transform_4(%arg0: i32) -> (i32, i32) {
    %c0_i32 = arith.constant 0 : i32
    %c0_i32_0 = arith.constant 0 : i32
    %c0_i32_1 = arith.constant 0 : i32
    return %c0_i32, %c0_i32_0 : i32, i32
  }
  func.func @transform_5(%arg0: i32) -> (i32, i32) {
    %c0_i32 = arith.constant 0 : i32
    %c0_i32_0 = arith.constant 0 : i32
    %c0_i32_1 = arith.constant 0 : i32
    return %c0_i32, %c0_i32_0 : i32, i32
  }
  func.func @transform_6(%arg0: i32) -> (i32, i32) {
    %c0_i32 = arith.constant 0 : i32
    %c0_i32_0 = arith.constant 0 : i32
    %c0_i32_1 = arith.constant 0 : i32
    return %c0_i32, %c0_i32_0 : i32, i32
  }
  func.func @transform_7(%arg0: i32) -> (i32, i32, i32, i32) {
    %c0_i32 = arith.constant 0 : i32
    %c0_i32_0 = arith.constant 0 : i32
    %c0_i32_1 = arith.constant 0 : i32
    %c0_i32_2 = arith.constant 0 : i32
    return %arg0, %c0_i32, %c0_i32_0, %c0_i32_1 : i32, i32, i32, i32
  }
}

</mosaic_0001>

<llo_original>
// kernel: dis_block_forward.1
$region0: #{dis_block_forward.1}
  #allocation0 [shape = 'u32[]', space=smem, size = 0x4, offset = 0x4, fixed_abs, tag = 'smem constant byte address 0x4 - core index']
  #allocation1 [shape = 'u32[144,128]{1,0:T(1,128)}', space=vmem, size = 0x12000, scoped, tag = 'internal scratch']
  #allocation2 [shape = 'bf16[116,8]{1,0:T(8,128)(2,1)}', space=vmem, size = 0x7800, scoped, tag = 'scratch operand']
  #allocation3 [shape = 'bf16[80,8]{1,0:T(16,128)(2,1)}', space=vmem, size = 0x5000, scoped, tag = 'scratch operand']
  %s0 = inlined_call_operand.vmem [shape: bf16[2,171,8], index: 0, kind: input, shape index: {}]
  %s1 = inlined_call_operand.vmem [shape: bf16[6,8,8], index: 1, kind: input, shape index: {}]
  %s2 = inlined_call_operand.vmem [shape: f32[1,8], index: 2, kind: input, shape index: {}]
  %s3 = inlined_call_operand.vmem [shape: bf16[9,8,8], index: 3, kind: input, shape index: {}]
  %s4 = inlined_call_operand.vmem [shape: f32[1,8], index: 4, kind: input, shape index: {}]
  %s5 = inlined_call_operand.vmem [shape: bf16[8,8], index: 5, kind: input, shape index: {}]
  %s6 = inlined_call_operand.vmem [shape: f32[1,8], index: 6, kind: input, shape index: {}]
  %s7 = inlined_call_operand.vmem [shape: f32[2,8,8,8], index: 7, kind: output, shape index: {}]
  %s8 = sld [smem:[#allocation0]]
  $region61: #{dis_block_forward.1} parent=0
    _
  %s10 = ssub.s32 1, %s8
  %s11 = scalar_select 0, %s10, %s8
  loop: start=0, step=1, limit=4
  $region2: #{dis_block_forward.1} parent=0 // loop_pre_header
    _
  $region3: #{dis_block_forward.1} parent=0 // loop_header
    %s13 = sphi 0, %s17
    %p14 = scmp.ge.s32.totalorder %s13, 4
    %s23 = sphi 0, %s25
    %s26 = sphi 0, %s23
    %s27 = sphi 0, %s26
    %s43 = sphi 0, %s27
    %s47 = sphi 0, %s47
    %s49 = sphi 0, %s47
    %s50 = sphi 0, %s49
    %s64 = sphi 0, %s50
    %s68 = sphi 0, %s68
    %s70 = sphi 0, %s68
    %s71 = sphi 0, %s70
    %s85 = sphi 0, %s71
    %s89 = sphi 0, %s89
    %s91 = sphi 0, %s89
    %s92 = sphi 0, %s91
    %s106 = sphi 0, %s92
    %s110 = sphi 0, %s110
    %s112 = sphi 0, %s110
    %s113 = sphi 0, %s112
    %s127 = sphi 0, %s113
    %s131 = sphi 0, %s131
    %s133 = sphi 0, %s131
    %s134 = sphi 0, %s133
    %s148 = sphi 0, %s134
    %s152 = sphi 0, %s152
    %s154 = sphi 0, %s152
    %s155 = sphi 0, %s154
    %s169 = sphi 0, %s155
    %s175 = sphi 0, %s177
    %s178 = sphi 0, %s175
    %s179 = sphi 0, %s178
    %s195 = sphi 0, %s179
  $region4: #{dis_block_forward.1} parent=0 // loop_header_branch
    %16 = sbr.rel (%p14) target = $region8
  $region5: #{dis_block_forward.1} parent=0 // loop_body
    %s18 = ssub.s32 %s13, 1
    %s19 = ssub.s32 %s13, 2
    %s20 = sadd.s32 %s13, 1
    %s21 = ssub.s32 %s13, %s20
    %p22 = scmp.eq.s32.totalorder %s21, 0
    %s24 = sadd.s32 %s23, 1
    %s25 = scalar_select %p22, %s23, %s24
    %p28 = pneg %p22
    %p29 = scmp.eq.s32.totalorder %s13, 1
    %p30 = por %p28, %p29
    %p31 = scmp.ne.s32.totalorder %s23, %s26
    %p32 = scmp.eq.s32.totalorder %s13, 0
    %p33 = por %p31, %p32
    %p34 = scmp.ne.s32.totalorder %s23, %s26
    %p35 = scmp.eq.s32.totalorder %s18, 1
    %p36 = por %p34, %p35
    %p37 = scmp.ne.s32.totalorder %s26, %s27
    %p38 = scmp.eq.s32.totalorder %s18, 0
    %p39 = por %p37, %p38
    %p40 = scmp.ne.s32.totalorder %s26, %s27
    %p41 = scmp.eq.s32.totalorder %s19, 1
    %p42 = por %p40, %p41
    %p44 = scmp.ne.s32.totalorder %s27, %s43
    %p45 = scmp.eq.s32.totalorder %s19, 0
    %p46 = por %p44, %p45
    %s48 = sadd.s32 %s47, 1
    %p51 = scmp.eq.s32.totalorder %s13, 1
    %p52 = scmp.ne.s32.totalorder %s47, %s49
    %p53 = scmp.eq.s32.totalorder %s13, 0
    %p54 = por %p52, %p53
    %p55 = scmp.ne.s32.totalorder %s47, %s49
    %p56 = scmp.eq.s32.totalorder %s18, 1
    %p57 = por %p55, %p56
    %p58 = scmp.ne.s32.totalorder %s49, %s50
    %p59 = scmp.eq.s32.totalorder %s18, 0
    %p60 = por %p58, %p59
    %p61 = scmp.ne.s32.totalorder %s49, %s50
    %p62 = scmp.eq.s32.totalorder %s19, 1
    %p63 = por %p61, %p62
    %p65 = scmp.ne.s32.totalorder %s50, %s64
    %p66 = scmp.eq.s32.totalorder %s19, 0
    %p67 = por %p65, %p66
    %s69 = sadd.s32 %s68, 1
    %p72 = scmp.eq.s32.totalorder %s13, 1
    %p73 = scmp.ne.s32.totalorder %s68, %s70
    %p74 = scmp.eq.s32.totalorder %s13, 0
    %p75 = por %p73, %p74
    %p76 = scmp.ne.s32.totalorder %s68, %s70
    %p77 = scmp.eq.s32.totalorder %s18, 1
    %p78 = por %p76, %p77
    %p79 = scmp.ne.s32.totalorder %s70, %s71
    %p80 = scmp.eq.s32.totalorder %s18, 0
    %p81 = por %p79, %p80
    %p82 = scmp.ne.s32.totalorder %s70, %s71
    %p83 = scmp.eq.s32.totalorder %s19, 1
    %p84 = por %p82, %p83
    %p86 = scmp.ne.s32.totalorder %s71, %s85
    %p87 = scmp.eq.s32.totalorder %s19, 0
    %p88 = por %p86, %p87
    %s90 = sadd.s32 %s89, 1
    %p93 = scmp.eq.s32.totalorder %s13, 1
    %p94 = scmp.ne.s32.totalorder %s89, %s91
    %p95 = scmp.eq.s32.totalorder %s13, 0
    %p96 = por %p94, %p95
    %p97 = scmp.ne.s32.totalorder %s89, %s91
    %p98 = scmp.eq.s32.totalorder %s18, 1
    %p99 = por %p97, %p98
    %p100 = scmp.ne.s32.totalorder %s91, %s92
    %p101 = scmp.eq.s32.totalorder %s18, 0
    %p102 = por %p100, %p101
    %p103 = scmp.ne.s32.totalorder %s91, %s92
    %p104 = scmp.eq.s32.totalorder %s19, 1
    %p105 = por %p103, %p104
    %p107 = scmp.ne.s32.totalorder %s92, %s106
    %p108 = scmp.eq.s32.totalorder %s19, 0
    %p109 = por %p107, %p108
    %s111 = sadd.s32 %s110, 1
    %p114 = scmp.eq.s32.totalorder %s13, 1
    %p115 = scmp.ne.s32.totalorder %s110, %s112
    %p116 = scmp.eq.s32.totalorder %s13, 0
    %p117 = por %p115, %p116
    %p118 = scmp.ne.s32.totalorder %s110, %s112
    %p119 = scmp.eq.s32.totalorder %s18, 1
    %p120 = por %p118, %p119
    %p121 = scmp.ne.s32.totalorder %s112, %s113
    %p122 = scmp.eq.s32.totalorder %s18, 0
    %p123 = por %p121, %p122
    %p124 = scmp.ne.s32.totalorder %s112, %s113
    %p125 = scmp.eq.s32.totalorder %s19, 1
    %p126 = por %p124, %p125
    %p128 = scmp.ne.s32.totalorder %s113, %s127
    %p129 = scmp.eq.s32.totalorder %s19, 0
    %p130 = por %p128, %p129
    %s132 = sadd.s32 %s131, 1
    %p135 = scmp.eq.s32.totalorder %s13, 1
    %p136 = scmp.ne.s32.totalorder %s131, %s133
    %p137 = scmp.eq.s32.totalorder %s13, 0
    %p138 = por %p136, %p137
    %p139 = scmp.ne.s32.totalorder %s131, %s133
    %p140 = scmp.eq.s32.totalorder %s18, 1
    %p141 = por %p139, %p140
    %p142 = scmp.ne.s32.totalorder %s133, %s134
    %p143 = scmp.eq.s32.totalorder %s18, 0
    %p144 = por %p142, %p143
    %p145 = scmp.ne.s32.totalorder %s133, %s134
    %p146 = scmp.eq.s32.totalorder %s19, 1
    %p147 = por %p145, %p146
    %p149 = scmp.ne.s32.totalorder %s134, %s148
    %p150 = scmp.eq.s32.totalorder %s19, 0
    %p151 = por %p149, %p150
    %s153 = sadd.s32 %s152, 1
    %p156 = scmp.eq.s32.totalorder %s13, 1
    %p157 = scmp.ne.s32.totalorder %s152, %s154
    %p158 = scmp.eq.s32.totalorder %s13, 0
    %p159 = por %p157, %p158
    %p160 = scmp.ne.s32.totalorder %s152, %s154
    %p161 = scmp.eq.s32.totalorder %s18, 1
    %p162 = por %p160, %p161
    %p163 = scmp.ne.s32.totalorder %s154, %s155
    %p164 = scmp.eq.s32.totalorder %s18, 0
    %p165 = por %p163, %p164
    %p166 = scmp.ne.s32.totalorder %s154, %s155
    %p167 = scmp.eq.s32.totalorder %s19, 1
    %p168 = por %p166, %p167
    %p170 = scmp.ne.s32.totalorder %s155, %s169
    %p171 = scmp.eq.s32.totalorder %s19, 0
    %p172 = por %p170, %p171
    %s173 = ssub.s32 %s13, %s20
    %p174 = scmp.eq.s32.totalorder %s173, 0
    %s176 = sadd.s32 %s175, 1
    %s177 = scalar_select %p174, %s175, %s176
    %p180 = pneg %p174
    %p181 = scmp.eq.s32.totalorder %s13, 1
    %p182 = por %p180, %p181
    %p183 = scmp.ne.s32.totalorder %s175, %s178
    %p184 = scmp.eq.s32.totalorder %s13, 0
    %p185 = por %p183, %p184
    %p186 = scmp.ne.s32.totalorder %s175, %s178
    %p187 = scmp.eq.s32.totalorder %s18, 1
    %p188 = por %p186, %p187
    %p189 = scmp.ne.s32.totalorder %s178, %s179
    %p190 = scmp.eq.s32.totalorder %s18, 0
    %p191 = por %p189, %p190
    %p192 = scmp.ne.s32.totalorder %s178, %s179
    %p193 = scmp.eq.s32.totalorder %s19, 1
    %p194 = por %p192, %p193
    %p196 = scmp.ne.s32.totalorder %s179, %s195
    %p197 = scmp.eq.s32.totalorder %s19, 0
    %p198 = por %p196, %p197
    %p199 = scmp.le.s32.totalorder 1, %s13
    %p200 = scmp.lt.s32.totalorder %s13, 3
    %p201 = pnand %p199, %p200
    %p202 = pneg %p201
    // Predicated region
    $region9: #{dis_block_forward.1} parent=5 // pred_check
      _
    $region10: #{dis_block_forward.1} parent=5 // pred_check_branch
      %204 = sbr.rel (%p201) target = $region12
    $region11: #{dis_block_forward.1} parent=5 // pred_region
      %s205 = ssub.s32 %s13, 1
      // Predicated region
      $region13: #{dis_block_forward.1} parent=11 // pred_check
        %p206 = pneg %p60
      $region14: #{dis_block_forward.1} parent=11 // pred_check_branch
        %208 = sbr.rel (%p206) target = $region16
      $region15: #{dis_block_forward.1} parent=11 // pred_region
        _
      $region16: #{dis_block_forward.1} parent=11 // pred_fallthru
        _
      // Predicated region
      $region17: #{dis_block_forward.1} parent=11 // pred_check
        %p209 = pneg %p81
      $region18: #{dis_block_forward.1} parent=11 // pred_check_branch
        %211 = sbr.rel (%p209) target = $region20
      $region19: #{dis_block_forward.1} parent=11 // pred_region
        _
      $region20: #{dis_block_forward.1} parent=11 // pred_fallthru
        _
      // Predicated region
      $region21: #{dis_block_forward.1} parent=11 // pred_check
        %p212 = pneg %p102
      $region22: #{dis_block_forward.1} parent=11 // pred_check_branch
        %214 = sbr.rel (%p212) target = $region24
      $region23: #{dis_block_forward.1} parent=11 // pred_region
        _
      $region24: #{dis_block_forward.1} parent=11 // pred_fallthru
        _
      // Predicated region
      $region25: #{dis_block_forward.1} parent=11 // pred_check
        %p215 = pneg %p123
      $region26: #{dis_block_forward.1} parent=11 // pred_check_branch
        %217 = sbr.rel (%p215) target = $region28
      $region27: #{dis_block_forward.1} parent=11 // pred_region
        _
      $region28: #{dis_block_forward.1} parent=11 // pred_fallthru
        _
      // Predicated region
      $region29: #{dis_block_forward.1} parent=11 // pred_check
        %p218 = pneg %p144
      $region30: #{dis_block_forward.1} parent=11 // pred_check_branch
        %220 = sbr.rel (%p218) target = $region32
      $region31: #{dis_block_forward.1} parent=11 // pred_region
        _
      $region32: #{dis_block_forward.1} parent=11 // pred_fallthru
        _
      // Predicated region
      $region33: #{dis_block_forward.1} parent=11 // pred_check
        %p221 = pneg %p165
      $region34: #{dis_block_forward.1} parent=11 // pred_check_branch
        %223 = sbr.rel (%p221) target = $region36
      $region35: #{dis_block_forward.1} parent=11 // pred_region
        _
      $region36: #{dis_block_forward.1} parent=11 // pred_fallthru
        _
    $region12: #{dis_block_forward.1} parent=5 // pred_fallthru
      _
    %p224 = scmp.lt.s32.totalorder %s13, 2
    // Predicated region
    $region37: #{dis_block_forward.1} parent=5 // pred_check
      %p225 = pneg %p224
    $region38: #{dis_block_forward.1} parent=5 // pred_check_branch
      %227 = sbr.rel (%p225) target = $region40
    $region39: #{dis_block_forward.1} parent=5 // pred_region
      // Predicated region
      $region41: #{dis_block_forward.1} parent=39 // pred_check
        %p228 = pneg %p33
      $region42: #{dis_block_forward.1} parent=39 // pred_check_branch
        %230 = sbr.rel (%p228) target = $region44
      $region43: #{dis_block_forward.1} parent=39 // pred_region
        %p231 = scmp.lt.s32.totalorder %s13, 1
        %s232 = scalar_select %p231, %s13, 1
        %s233 = smul.addr %s232, 22
        %s234 = smul.addr %s233, 4
        %s235 = scalar_lea.vmem %s0, %s234
      $region44: #{dis_block_forward.1} parent=39 // pred_fallthru
        _
    $region40: #{dis_block_forward.1} parent=5 // pred_fallthru
      _
    %p236 = scmp.le.s32.totalorder 1, %s13
    %p237 = scmp.lt.s32.totalorder %s13, 3
    %p238 = pnand %p236, %p237
    %p239 = pneg %p238
    // Predicated region
    $region45: #{dis_block_forward.1} parent=5 // pred_check
      _
    $region46: #{dis_block_forward.1} parent=5 // pred_check_branch
      %241 = sbr.rel (%p238) target = $region48
    $region47: #{dis_block_forward.1} parent=5 // pred_region
      %s242 = ssub.s32 %s13, 1
      %p243 = scmp.lt.s32.totalorder %s18, 1
      %s244 = scalar_select %p243, %s18, 1
      %s245 = smul.addr %s244, 22
      %s246 = smul.addr %s245, 4
      %s247 = scalar_lea.vmem %s0, %s246
      %p248 = pneg %p39
      %p249 = pneg %p36
      %p250 = pneg %p60
      %p251 = pneg %p57
      %p252 = pneg %p81
      %p253 = pneg %p78
      %p254 = pneg %p102
      %p255 = pneg %p99
      %p256 = pneg %p123
      %p257 = pneg %p120
      %p258 = pneg %p144
      %p259 = pneg %p141
      %p260 = pneg %p165
      %p261 = pneg %p162
      %p262 = pneg %p191
      %p263 = pneg %p188
      %p264 = scmp.lt.s32.totalorder %s18, 1
      %s265 = scalar_select %p264, %s18, 1
      %s266 = smul.addr %s265, 8
      %s267 = smul.addr %s266, 8
      %s268 = scalar_lea.vmem %s7, %s267
      %p269 = scmp.lt.s32.totalorder %s18, 1
      %s270 = scalar_select %p269, %s18, 1
      %s271 = smul.addr %s270, 22
      %s272 = smul.addr %s271, 4
      %s273 = scalar_lea.vmem %s0, %s272
      %p274 = scmp.lt.s32.totalorder %s18, 1
      %s275 = scalar_select %p274, %s18, 1
      %s276 = smul.addr %s275, 8
      %s277 = smul.addr %s276, 8
      %s278 = scalar_lea.vmem %s7, %s277
      %vm280 = vcmask 60416
      %281 = vst.msk [vmem:[#allocation2] sm:$0xf] %vm280, 0
      %282 = vst.msk [vmem:[#allocation2 + $0x4] sm:$0xf] %vm280, 0
      %283 = vst.msk [vmem:[#allocation2 + $0x8] sm:$0xf] %vm280, 0
      %284 = vst.msk [vmem:[#allocation2 + $0xc] sm:$0xf] %vm280, 0
      %285 = vst.msk [vmem:[#allocation2 + $0x10] sm:$0xf] %vm280, 0
      %286 = vst.msk [vmem:[#allocation2 + $0x14] sm:$0xf] %vm280, 0
      %287 = vst.msk [vmem:[#allocation2 + $0x18] sm:$0xf] %vm280, 0
      %288 = vst.msk [vmem:[#allocation2 + $0x1c] sm:$0xf] %vm280, 0
      %289 = vst.msk [vmem:[#allocation2 + $0x20] sm:$0xf] %vm280, 0
      %290 = vst.msk [vmem:[#allocation2 + $0x24] sm:$0xf] %vm280, 0
      %291 = vst.msk [vmem:[#allocation2 + $0x28] sm:$0xf] %vm280, 0
      %292 = vst.msk [vmem:[#allocation2 + $0x2c] sm:$0xf] %vm280, 0
      %293 = vst.msk [vmem:[#allocation2 + $0x30] sm:$0xf] %vm280, 0
      %294 = vst.msk [vmem:[#allocation2 + $0x34] sm:$0xf] %vm280, 0
      %vm295 = vcmask 58368
      %296 = vst.msk [vmem:[#allocation2 + $0x38] sm:$0x3] %vm295, 0
      %vm297 = vcmask 64512
      %298 = vst.msk [vmem:[#allocation3] sm:$0xff] %vm297, 0
      %299 = vst.msk [vmem:[#allocation3 + $0x8] sm:$0xff] %vm297, 0
      %300 = vst.msk [vmem:[#allocation3 + $0x10] sm:$0xff] %vm297, 0
      %301 = vst.msk [vmem:[#allocation3 + $0x18] sm:$0xff] %vm297, 0
      %302 = vst.msk [vmem:[#allocation3 + $0x20] sm:$0xff] %vm297, 0
      %v303 = vld [vmem:[%s273] sm:$0xf]
      %v304 = vld [vmem:[%s273 + $0x4] sm:$0x1]
      %v307 = vunpack.c.l.b16 %v303
      %v308 = vunpack.c.l.b16 %v304
      %v309 = vpack.c.b16 %v308, %v307
      %vm311 = vcmask 61440
      %vm312 = vsmask.f32 4352
      %vm313 = vmand %vm311, %vm312
      %v314 = vld [vmem:[#allocation3] sm:$0x1f]
      %v315 = vsel %vm313, %v309, %v314
      %316 = vst [vmem:[#allocation3] sm:$0x1f] %v315
      %v317 = vld [vmem:[%s273 + $0x8] sm:$0xe]
      %v318 = vld [vmem:[%s273 + $0xc] sm:$0x3]
      %v321 = vunpack.c.l.b16 %v317
      %v322 = vunpack.c.l.b16 %v318
      %v323 = vpack.c.b16 %v322, %v321
      %v325 = vshrl.u32 %v323, 16
      %v327 = vrot.slane %v325, 4
      %v328 = vshll.u32 %v323, 16
      %v330 = vrot.slane %v328, 5
      %v331 = vor.u32 %v327, %v330
      %vm333 = vcmask 64516
      %vm334 = vsmask.f32 7954
      %vm335 = vmand %vm333, %vm334
      %v336 = vld [vmem:[#allocation3] sm:$0xf0]
      %v337 = vsel %vm335, %v331, %v336
      %338 = vst [vmem:[#allocation3] sm:$0xf0] %v337
      %vm339 = vcmask 57344
      %340 = vst.msk [vmem:[#allocation3 + $0x8] sm:$0x1] %vm339, %v331
      %v341 = vld [vmem:[%s273 + $0x10] sm:$0xc]
      %v342 = vld [vmem:[%s273 + $0x14] sm:$0x7]
      %v345 = vunpack.c.l.b16 %v341
      %v346 = vunpack.c.l.b16 %v342
      %v347 = vpack.c.b16 %v346, %v345
      %v348 = vrot.slane %v347, 1
      %vm350 = vcmask 62465
      %vm351 = vsmask.f32 5376
      %vm352 = vmand %vm350, %vm351
      %v353 = vld [vmem:[#allocation3 + $0x8] sm:$0x3e]
      %v354 = vsel %vm352, %v348, %v353
      %355 = vst [vmem:[#allocation3 + $0x8] sm:$0x3e] %v354
      %v356 = vld [vmem:[%s273 + $0x18] sm:$0x8]
      %v357 = vld [vmem:[%s273 + $0x1c] sm:$0xf]
      %v360 = vunpack.c.l.b16 %v356
      %v361 = vunpack.c.l.b16 %v357
      %v362 = vpack.c.b16 %v361, %v360
      %v364 = vshrl.u32 %v362, 16
      %v366 = vrot.slane %v364, 5
      %v367 = vshll.u32 %v362, 16
      %v369 = vrot.slane %v367, 6
      %v370 = vor.u32 %v366, %v369
      %vm372 = vcmask 64517
      %vm373 = vsmask.f32 7958
      %vm374 = vmand %vm372, %vm373
      %v375 = vld [vmem:[#allocation3 + $0x8] sm:$0xe0]
      %v376 = vsel %vm374, %v370, %v375
      %377 = vst [vmem:[#allocation3 + $0x8] sm:$0xe0] %v376
      %378 = vst.msk [vmem:[#allocation3 + $0x10] sm:$0x3] %vm295, %v370
      %v379 = vld [vmem:[%s273 + $0x24] sm:$0xf]
      %v380 = vld [vmem:[%s273 + $0x28] sm:$0x1]
      %v383 = vunpack.c.l.b16 %v379
      %v384 = vunpack.c.l.b16 %v380
      %v385 = vpack.c.b16 %v384, %v383
      %v386 = vrot.slane %v385, 6
      %vm388 = vcmask 63490
      %vm389 = vsmask.f32 6400
      %vm390 = vmand %vm388, %vm389
      %v391 = vld [vmem:[#allocation3 + $0x10] sm:$0x7c]
      %v392 = vsel %vm390, %v386, %v391
      %393 = vst [vmem:[#allocation3 + $0x10] sm:$0x7c] %v392
      %v394 = vld [vmem:[%s273 + $0x2c] sm:$0xe]
      %v395 = vld [vmem:[%s273 + $0x30] sm:$0x3]
      %v398 = vunpack.c.l.b16 %v394
      %v399 = vunpack.c.l.b16 %v395
      %v400 = vpack.c.b16 %v399, %v398
      %v402 = vshrl.u32 %v400, 16
      %v404 = vrot.slane %v402, 2
      %v405 = vshll.u32 %v400, 16
      %v407 = vrot.slane %v405, 3
      %v408 = vor.u32 %v404, %v407
      %vm410 = vcmask 64518
      %vm411 = vsmask.f32 7962
      %vm412 = vmand %vm410, %vm411
      %v413 = vld [vmem:[#allocation3 + $0x10] sm:$0xc0]
      %v414 = vsel %vm412, %v408, %v413
      %415 = vst [vmem:[#allocation3 + $0x10] sm:$0xc0] %v414
      %vm416 = vcmask 59392
      %417 = vst.msk [vmem:[#allocation3 + $0x18] sm:$0x7] %vm416, %v408
      %v418 = vld [vmem:[%s273 + $0x34] sm:$0xc]
      %v419 = vld [vmem:[%s273 + $0x38] sm:$0x7]
      %v422 = vunpack.c.l.b16 %v418
      %v423 = vunpack.c.l.b16 %v419
      %v424 = vpack.c.b16 %v423, %v422
      %v425 = vrot.slane %v424, 7
      %vm427 = vcmask 64515
      %vm428 = vsmask.f32 7424
      %vm429 = vmand %vm427, %vm428
      %v430 = vld [vmem:[#allocation3 + $0x18] sm:$0xf8]
      %v431 = vsel %vm429, %v425, %v430
      %432 = vst [vmem:[#allocation3 + $0x18] sm:$0xf8] %v431
      %v433 = vld [vmem:[%s273 + $0x3c] sm:$0x8]
      %v434 = vld [vmem:[%s273 + $0x40] sm:$0xf]
      %v437 = vunpack.c.l.b16 %v433
      %v438 = vunpack.c.l.b16 %v434
      %v439 = vpack.c.b16 %v438, %v437
      %v441 = vshll.u32 %v439, 16
      %v443 = vrot.slane %v441, 4
      %v444 = vshrl.u32 %v439, 16
      %v446 = vrot.slane %v444, 3
      %v447 = vor.u32 %v446, %v443
      %vm450 = vcmask 64519
      %vm451 = vsmask.f32 7966
      %vm452 = vmand %vm450, %vm451
      %v453 = vld [vmem:[#allocation3 + $0x18] sm:$0x80]
      %v454 = vsel %vm452, %v443, %v453
      %455 = vst [vmem:[#allocation3 + $0x18] sm:$0x80] %v454
      %456 = vst.msk [vmem:[#allocation3 + $0x20] sm:$0xf] %vm280, %v447
      %v457 = vld [vmem:[#allocation3] sm:$0xff]
      %v458 = vld [vmem:[#allocation3 + $0x8] sm:$0xff]
      %v459 = vld [vmem:[#allocation3 + $0x10] sm:$0xff]
      %v460 = vld [vmem:[#allocation3 + $0x18] sm:$0xff]
      %v461 = vld [vmem:[#allocation3 + $0x20] sm:$0xf]
      %v462 = vld [vmem:[%s1] sm:$0xf]
      %v463 = vld [vmem:[#allocation3 + $0x20] sm:$0x1f]
      %s464 = scalar_lea.vmem %s1, 4
      %v465 = vld [vmem:[%s464] sm:$0xf]
      %v467 = vshrl.u32 %v457, 16
      %v469 = vshll.u32 %v457, 16
      %v471 = vrot.slane %v469, 1
      %v472 = vor.u32 %v467, %v471
      %v474 = vshll.u32 %v458, 16
      %v476 = vrot.slane %v474, 1
      %v477 = vsel %vm428, %v472, %v476
      %v478 = vshrl.u32 %v458, 16
      %v480 = vor.u32 %v478, %v476
      %v482 = vshll.u32 %v459, 16
      %v484 = vrot.slane %v482, 1
      %v485 = vsel %vm428, %v480, %v484
      %v486 = vshrl.u32 %v459, 16
      %v488 = vor.u32 %v486, %v484
      %v490 = vshll.u32 %v460, 16
      %v492 = vrot.slane %v490, 1
      %v493 = vsel %vm428, %v488, %v492
      %v494 = vshrl.u32 %v460, 16
      %v496 = vor.u32 %v494, %v492
      %v498 = vshll.u32 %v463, 16
      %v500 = vrot.slane %v498, 1
      %v501 = vsel %vm428, %v496, %v500
      %v502 = vshrl.u32 %v463, 16
      %v504 = vor.u32 %v502, %v500
      %v506 = vsel %vm297, %v477, 0
      %v509 = vsel %vm297, %v485, 0
      %v512 = vsel %vm297, %v493, 0
      %v515 = vsel %vm297, %v501, 0
      %v518 = vsel %vm297, %v504, 0
      %vm520 = vcmask 1043456
      %v522 = vsel %vm520, %v465, 0
      %524 = vmatprep.subr.bf16.mxu0 0
      %525 = vmatpush1.bf16.msra.mxu0 %v522
      %526 = vmatprep.subr.bf16.mxu0 0
      %527 = vmatpush1.bf16.msra.mxu0 0
      %528 = vmatprep.subr.bf16.mxu0 0
      %529 = vmatpush1.bf16.msra.mxu0 0
      %530 = vmatprep.subr.bf16.mxu0 0
      %531 = vmatpush1.bf16.msra.mxu0 0
      %532 = vmatprep.subr.bf16.mxu0 0
      %533 = vmatpush1.bf16.msra.mxu0 0
      %534 = vmatprep.subr.bf16.mxu0 0
      %535 = vmatpush1.bf16.msra.mxu0 0
      %536 = vmatprep.subr.bf16.mxu0 0
      %537 = vmatpush1.bf16.msra.mxu0 0
      %538 = vmatprep.subr.bf16.mxu0 0
      %539 = vmatpush1.bf16.msra.mxu0 0
      %540 = vmatprep.subr.bf16.mxu0 0
      %541 = vmatpush1.bf16.msra.mxu0 0
      %542 = vmatprep.subr.bf16.mxu0 0
      %543 = vmatpush1.bf16.msra.mxu0 0
      %544 = vmatprep.subr.bf16.mxu0 0
      %545 = vmatpush1.bf16.msra.mxu0 0
      %546 = vmatprep.subr.bf16.mxu0 0
      %547 = vmatpush1.bf16.msra.mxu0 0
      %548 = vmatprep.subr.bf16.mxu0 0
      %549 = vmatpush1.bf16.msra.mxu0 0
      %550 = vmatprep.subr.bf16.mxu0 0
      %551 = vmatpush1.bf16.msra.mxu0 0
      %552 = vmatprep.subr.bf16.mxu0 0
      %553 = vmatpush1.bf16.msra.mxu0 0
      %554 = vmatprep.subr.bf16.mxu0 0
      %555 = vmatpush1.bf16.msra.mxu0 0
      %556 = vmatprep.mubr.bf16.mxu0 0
      %557 = vmatmul.mubr.bf16.gmra.mrb[0].mxu0 %v506
      %v558 = vpop.f32.mrb[0].mxu0
      %v559 = vadd.f32 0.0, %v558
      %v560 = vpop.f32.mrb[0].mxu0
      %v561 = vpop.f32.mrb[0].mxu0
      %v562 = vadd.f32 0.0, %v561
      %v563 = vpop.f32.mrb[0].mxu0
      %564 = vmatprep.mubr.bf16.mxu0 0
      %565 = vmatmul.mubr.bf16.gmra.mrb[0].mxu0 %v509
      %v566 = vpop.f32.mrb[0].mxu0
      %v567 = vadd.f32 0.0, %v566
      %v568 = vpop.f32.mrb[0].mxu0
      %v569 = vpop.f32.mrb[0].mxu0
      %v570 = vadd.f32 0.0, %v569
      %v571 = vpop.f32.mrb[0].mxu0
      %572 = vmatprep.mubr.bf16.mxu0 0
      %573 = vmatmul.mubr.bf16.gmra.mrb[0].mxu0 %v512
      %v574 = vpop.f32.mrb[0].mxu0
      %v575 = vadd.f32 0.0, %v574
      %v576 = vpop.f32.mrb[0].mxu0
      %v577 = vpop.f32.mrb[0].mxu0
      %v578 = vadd.f32 0.0, %v577
      %v579 = vpop.f32.mrb[0].mxu0
      %580 = vmatprep.mubr.bf16.mxu0 0
      %581 = vmatmul.mubr.bf16.gmra.mrb[0].mxu0 %v515
      %v582 = vpop.f32.mrb[0].mxu0
      %v583 = vadd.f32 0.0, %v582
      %v584 = vpop.f32.mrb[0].mxu0
      %v585 = vpop.f32.mrb[0].mxu0
      %v586 = vadd.f32 0.0, %v585
      %v587 = vpop.f32.mrb[0].mxu0
      %588 = vmatprep.mubr.bf16.mxu0 0
      %589 = vmatmul.mubr.bf16.gmra.mrb[0].mxu0 %v518
      %v590 = vpop.f32.mrb[0].mxu0
      %v591 = vadd.f32 0.0, %v590
      %v592 = vpop.f32.mrb[0].mxu0
      %v593 = vpop.f32.mrb[0].mxu0
      %v594 = vpop.f32.mrb[0].mxu0
      %595 = vdwg.mxu0
      %v596 = vsel %vm297, %v457, 0
      %v598 = vsel %vm297, %v458, 0
      %v600 = vsel %vm297, %v459, 0
      %v602 = vsel %vm297, %v460, 0
      %v605 = vsel %vm297, %v461, 0
      %v608 = vsel %vm520, %v462, 0
      %610 = vmatprep.subr.bf16.mxu0 0
      %611 = vmatpush1.bf16.msra.mxu0 %v608
      %612 = vmatprep.subr.bf16.mxu0 0
      %613 = vmatpush1.bf16.msra.mxu0 0
      %614 = vmatprep.subr.bf16.mxu0 0
      %615 = vmatpush1.bf16.msra.mxu0 0
      %616 = vmatprep.subr.bf16.mxu0 0
      %617 = vmatpush1.bf16.msra.mxu0 0
      %618 = vmatprep.subr.bf16.mxu0 0
      %619 = vmatpush1.bf16.msra.mxu0 0
      %620 = vmatprep.subr.bf16.mxu0 0
      %621 = vmatpush1.bf16.msra.mxu0 0
      %622 = vmatprep.subr.bf16.mxu0 0
      %623 = vmatpush1.bf16.msra.mxu0 0
      %624 = vmatprep.subr.bf16.mxu0 0
      %625 = vmatpush1.bf16.msra.mxu0 0
      %626 = vmatprep.subr.bf16.mxu0 0
      %627 = vmatpush1.bf16.msra.mxu0 0
      %628 = vmatprep.subr.bf16.mxu0 0
      %629 = vmatpush1.bf16.msra.mxu0 0
      %630 = vmatprep.subr.bf16.mxu0 0
      %631 = vmatpush1.bf16.msra.mxu0 0
      %632 = vmatprep.subr.bf16.mxu0 0
      %633 = vmatpush1.bf16.msra.mxu0 0
      %634 = vmatprep.subr.bf16.mxu0 0
      %635 = vmatpush1.bf16.msra.mxu0 0
      %636 = vmatprep.subr.bf16.mxu0 0
      %637 = vmatpush1.bf16.msra.mxu0 0
      %638 = vmatprep.subr.bf16.mxu0 0
      %639 = vmatpush1.bf16.msra.mxu0 0
      %640 = vmatprep.subr.bf16.mxu0 0
      %641 = vmatpush1.bf16.msra.mxu0 0
      %642 = vmatprep.mubr.bf16.mxu0 0
      %643 = vmatmul.mubr.bf16.gmra.mrb[0].mxu0 %v596
      %v644 = vpop.f32.mrb[0].mxu0
      %v645 = vadd.f32 %v559, %v644
      %v646 = vpop.f32.mrb[0].mxu0
      %v647 = vpop.f32.mrb[0].mxu0
      %v648 = vadd.f32 %v562, %v647
      %v649 = vpop.f32.mrb[0].mxu0
      %650 = vmatprep.mubr.bf16.mxu0 0
      %651 = vmatmul.mubr.bf16.gmra.mrb[0].mxu0 %v598
      %v652 = vpop.f32.mrb[0].mxu0
      %v653 = vadd.f32 %v567, %v652
      %v654 = vpop.f32.mrb[0].mxu0
      %v655 = vpop.f32.mrb[0].mxu0
      %v656 = vadd.f32 %v570, %v655
      %v657 = vpop.f32.mrb[0].mxu0
      %658 = vmatprep.mubr.bf16.mxu0 0
      %659 = vmatmul.mubr.bf16.gmra.mrb[0].mxu0 %v600
      %v660 = vpop.f32.mrb[0].mxu0
      %v661 = vadd.f32 %v575, %v660
      %v662 = vpop.f32.mrb[0].mxu0
      %v663 = vpop.f32.mrb[0].mxu0
      %v664 = vadd.f32 %v578, %v663
      %v665 = vpop.f32.mrb[0].mxu0
      %666 = vmatprep.mubr.bf16.mxu0 0
      %667 = vmatmul.mubr.bf16.gmra.mrb[0].mxu0 %v602
      %v668 = vpop.f32.mrb[0].mxu0
      %v669 = vadd.f32 %v583, %v668
      %v670 = vpop.f32.mrb[0].mxu0
      %v671 = vpop.f32.mrb[0].mxu0
      %v672 = vadd.f32 %v586, %v671
      %v673 = vpop.f32.mrb[0].mxu0
      %674 = vmatprep.mubr.bf16.mxu0 0
      %675 = vmatmul.mubr.bf16.gmra.mrb[0].mxu0 %v605
      %v676 = vpop.f32.mrb[0].mxu0
      %v677 = vadd.f32 %v591, %v676
      %v678 = vpop.f32.mrb[0].mxu0
      %v679 = vpop.f32.mrb[0].mxu0
      %v680 = vpop.f32.mrb[0].mxu0
      %681 = vdwg.mxu0
      %v682 = vld [vmem:[%s273 + $0x4] sm:$0xf]
      %v683 = vld [vmem:[%s273 + $0x8] sm:$0x1]
      %v686 = vunpack.c.l.b16 %v682
      %v687 = vunpack.c.l.b16 %v683
      %v688 = vpack.c.b16 %v687, %v686
      %v690 = vshrl.u32 %v688, 16
      %v692 = vshll.u32 %v688, 16
      %v694 = vrot.slane %v692, 1
      %v695 = vor.u32 %v690, %v694
      %v697 = vld [vmem:[#allocation3] sm:$0x1f]
      %v698 = vsel %vm313, %v695, %v697
      %699 = vst [vmem:[#allocation3] sm:$0x1f] %v698
      %v700 = vld [vmem:[%s273 + $0xc] sm:$0xe]
      %v701 = vld [vmem:[%s273 + $0x10] sm:$0x3]
      %v704 = vunpack.c.l.b16 %v700
      %v705 = vunpack.c.l.b16 %v701
      %v706 = vpack.c.b16 %v705, %v704
      %v707 = vrot.slane %v706, 5
      %v709 = vld [vmem:[#allocation3] sm:$0xf0]
      %v710 = vsel %vm335, %v707, %v709
      %711 = vst [vmem:[#allocation3] sm:$0xf0] %v710
      %712 = vst.msk [vmem:[#allocation3 + $0x8] sm:$0x1] %vm339, %v707
      %v713 = vld [vmem:[%s273 + $0x14] sm:$0xc]
      %v714 = vld [vmem:[%s273 + $0x18] sm:$0x7]
      %v717 = vunpack.c.l.b16 %v713
      %v718 = vunpack.c.l.b16 %v714
      %v719 = vpack.c.b16 %v718, %v717
      %v721 = vshrl.u32 %v719, 16
      %v723 = vrot.slane %v721, 1
      %v724 = vshll.u32 %v719, 16
      %v726 = vrot.slane %v724, 2
      %v727 = vor.u32 %v723, %v726
      %v729 = vld [vmem:[#allocation3 + $0x8] sm:$0x3e]
      %v730 = vsel %vm352, %v727, %v729
      %731 = vst [vmem:[#allocation3 + $0x8] sm:$0x3e] %v730
      %v732 = vld [vmem:[%s273 + $0x1c] sm:$0x8]
      %v733 = vld [vmem:[%s273 + $0x20] sm:$0xf]
      %v736 = vunpack.c.l.b16 %v732
      %v737 = vunpack.c.l.b16 %v733
      %v738 = vpack.c.b16 %v737, %v736
      %v739 = vrot.slane %v738, 6
      %v741 = vld [vmem:[#allocation3 + $0x8] sm:$0xe0]
      %v742 = vsel %vm374, %v739, %v741
      %743 = vst [vmem:[#allocation3 + $0x8] sm:$0xe0] %v742
      %744 = vst.msk [vmem:[#allocation3 + $0x10] sm:$0x3] %vm295, %v739
      %v745 = vld [vmem:[%s273 + $0x28] sm:$0xf]
      %v746 = vld [vmem:[%s273 + $0x2c] sm:$0x1]
      %v749 = vunpack.c.l.b16 %v745
      %v750 = vunpack.c.l.b16 %v746
      %v751 = vpack.c.b16 %v750, %v749
      %v753 = vshrl.u32 %v751, 16
      %v755 = vrot.slane %v753, 6
      %v756 = vshll.u32 %v751, 16
      %v758 = vrot.slane %v756, 7
      %v759 = vor.u32 %v755, %v758
      %v761 = vld [vmem:[#allocation3 + $0x10] sm:$0x7c]
      %v762 = vsel %vm390, %v759, %v761
      %763 = vst [vmem:[#allocation3 + $0x10] sm:$0x7c] %v762
      %v764 = vld [vmem:[%s273 + $0x30] sm:$0xe]
      %v765 = vld [vmem:[%s273 + $0x34] sm:$0x3]
      %v768 = vunpack.c.l.b16 %v764
      %v769 = vunpack.c.l.b16 %v765
      %v770 = vpack.c.b16 %v769, %v768
      %v771 = vrot.slane %v770, 3
      %v773 = vld [vmem:[#allocation3 + $0x10] sm:$0xc0]
      %v774 = vsel %vm412, %v771, %v773
      %775 = vst [vmem:[#allocation3 + $0x10] sm:$0xc0] %v774
      %776 = vst.msk [vmem:[#allocation3 + $0x18] sm:$0x7] %vm416, %v771
      %v777 = vld [vmem:[%s273 + $0x38] sm:$0xc]
      %v778 = vld [vmem:[%s273 + $0x3c] sm:$0x7]
      %v781 = vunpack.c.l.b16 %v777
      %v782 = vunpack.c.l.b16 %v778
      %v783 = vpack.c.b16 %v782, %v781
      %v785 = vshrl.u32 %v783, 16
      %v787 = vrot.slane %v785, 7
      %v788 = vshll.u32 %v783, 16
      %v790 = vor.u32 %v787, %v788
      %v792 = vld [vmem:[#allocation3 + $0x18] sm:$0xf8]
      %v793 = vsel %vm429, %v790, %v792
      %794 = vst [vmem:[#allocation3 + $0x18] sm:$0xf8] %v793
      %v795 = vld [vmem:[%s273 + $0x40] sm:$0x8]
      %v796 = vld [vmem:[%s273 + $0x44] sm:$0xf]
      %v799 = vunpack.c.l.b16 %v795
      %v800 = vunpack.c.l.b16 %v796
      %v801 = vpack.c.b16 %v799, %v799
      %v802 = vpack.c.b16 %v800, %v800
      %v805 = vld [vmem:[#allocation3 + $0x18] sm:$0x80]
      %v806 = vsel %vm452, %v801, %v805
      %807 = vst [vmem:[#allocation3 + $0x18] sm:$0x80] %v806
      %808 = vst.msk [vmem:[#allocation3 + $0x20] sm:$0xf] %vm280, %v802
      %v809 = vld [vmem:[#allocation3] sm:$0xff]
      %v810 = vld [vmem:[#allocation3 + $0x8] sm:$0xff]
      %v811 = vld [vmem:[#allocation3 + $0x10] sm:$0xff]
      %v812 = vld [vmem:[#allocation3 + $0x18] sm:$0xff]
      %v813 = vld [vmem:[#allocation3 + $0x20] sm:$0xf]
      %s814 = scalar_lea.vmem %s1, 8
      %v815 = vld [vmem:[%s814] sm:$0xf]
      %v817 = vsel %vm297, %v809, 0
      %v820 = vsel %vm297, %v810, 0
      %v823 = vsel %vm297, %v811, 0
      %v826 = vsel %vm297, %v812, 0
      %v829 = vsel %vm297, %v813, 0
      %v832 = vsel %vm520, %v815, 0
      %834 = vmatprep.subr.bf16.mxu0 0
      %835 = vmatpush1.bf16.msra.mxu0 %v832
      %836 = vmatprep.subr.bf16.mxu0 0
      %837 = vmatpush1.bf16.msra.mxu0 0
      %838 = vmatprep.subr.bf16.mxu0 0
      %839 = vmatpush1.bf16.msra.mxu0 0
      %840 = vmatprep.subr.bf16.mxu0 0
      %841 = vmatpush1.bf16.msra.mxu0 0
      %842 = vmatprep.subr.bf16.mxu0 0
      %843 = vmatpush1.bf16.msra.mxu0 0
      %844 = vmatprep.subr.bf16.mxu0 0
      %845 = vmatpush1.bf16.msra.mxu0 0
      %846 = vmatprep.subr.bf16.mxu0 0
      %847 = vmatpush1.bf16.msra.mxu0 0
      %848 = vmatprep.subr.bf16.mxu0 0
      %849 = vmatpush1.bf16.msra.mxu0 0
      %850 = vmatprep.subr.bf16.mxu0 0
      %851 = vmatpush1.bf16.msra.mxu0 0
      %852 = vmatprep.subr.bf16.mxu0 0
      %853 = vmatpush1.bf16.msra.mxu0 0
      %854 = vmatprep.subr.bf16.mxu0 0
      %855 = vmatpush1.bf16.msra.mxu0 0
      %856 = vmatprep.subr.bf16.mxu0 0
      %857 = vmatpush1.bf16.msra.mxu0 0
      %858 = vmatprep.subr.bf16.mxu0 0
      %859 = vmatpush1.bf16.msra.mxu0 0
      %860 = vmatprep.subr.bf16.mxu0 0
      %861 = vmatpush1.bf16.msra.mxu0 0
      %862 = vmatprep.subr.bf16.mxu0 0
      %863 = vmatpush1.bf16.msra.mxu0 0
      %864 = vmatprep.subr.bf16.mxu0 0
      %865 = vmatpush1.bf16.msra.mxu0 0
      %866 = vmatprep.mubr.bf16.mxu0 0
      %867 = vmatmul.mubr.bf16.gmra.mrb[0].mxu0 %v817
      %v868 = vpop.f32.mrb[0].mxu0
      %v869 = vadd.f32 0.0, %v868
      %v870 = vpop.f32.mrb[0].mxu0
      %v871 = vpop.f32.mrb[0].mxu0
      %v872 = vadd.f32 0.0, %v871
      %v873 = vpop.f32.mrb[0].mxu0
      %874 = vmatprep.mubr.bf16.mxu0 0
      %875 = vmatmul.mubr.bf16.gmra.mrb[0].mxu0 %v820
      %v876 = vpop.f32.mrb[0].mxu0
      %v877 = vadd.f32 0.0, %v876
      %v878 = vpop.f32.mrb[0].mxu0
      %v879 = vpop.f32.mrb[0].mxu0
      %v880 = vadd.f32 0.0, %v879
      %v881 = vpop.f32.mrb[0].mxu0
      %882 = vmatprep.mubr.bf16.mxu0 0
      %883 = vmatmul.mubr.bf16.gmra.mrb[0].mxu0 %v823
      %v884 = vpop.f32.mrb[0].mxu0
      %v885 = vadd.f32 0.0, %v884
      %v886 = vpop.f32.mrb[0].mxu0
      %v887 = vpop.f32.mrb[0].mxu0
      %v888 = vadd.f32 0.0, %v887
      %v889 = vpop.f32.mrb[0].mxu0
      %890 = vmatprep.mubr.bf16.mxu0 0
      %891 = vmatmul.mubr.bf16.gmra.mrb[0].mxu0 %v826
      %v892 = vpop.f32.mrb[0].mxu0
      %v893 = vadd.f32 0.0, %v892
      %v894 = vpop.f32.mrb[0].mxu0
      %v895 = vpop.f32.mrb[0].mxu0
      %v896 = vadd.f32 0.0, %v895
      %v897 = vpop.f32.mrb[0].mxu0
      %898 = vmatprep.mubr.bf16.mxu0 0
      %899 = vmatmul.mubr.bf16.gmra.mrb[0].mxu0 %v829
      %v900 = vpop.f32.mrb[0].mxu0
      %v901 = vadd.f32 0.0, %v900
      %v902 = vpop.f32.mrb[0].mxu0
      %v903 = vpop.f32.mrb[0].mxu0
      %v904 = vpop.f32.mrb[0].mxu0
      %905 = vdwg.mxu0
      %v906 = vadd.f32 %v645, %v869
      %v907 = vadd.f32 %v648, %v872
      %v908 = vadd.f32 %v653, %v877
      %v909 = vadd.f32 %v656, %v880
      %v910 = vadd.f32 %v661, %v885
      %v911 = vadd.f32 %v664, %v888
      %v912 = vadd.f32 %v669, %v893
      %v913 = vadd.f32 %v672, %v896
      %v914 = vadd.f32 %v677, %v901
      %v915 = vld [vmem:[#allocation3 + $0x20] sm:$0x1f]
      %s916 = scalar_lea.vmem %s1, 12
      %v917 = vld [vmem:[%s916] sm:$0xf]
      %v918 = vshrl.u32 %v809, 16
      %v920 = vshll.u32 %v809, 16
      %v922 = vrot.slane %v920, 1
      %v923 = vor.u32 %v918, %v922
      %v924 = vshll.u32 %v810, 16
      %v926 = vrot.slane %v924, 1
      %v927 = vsel %vm428, %v923, %v926
      %v928 = vshrl.u32 %v810, 16
      %v930 = vor.u32 %v928, %v926
      %v931 = vshll.u32 %v811, 16
      %v933 = vrot.slane %v931, 1
      %v934 = vsel %vm428, %v930, %v933
      %v935 = vshrl.u32 %v811, 16
      %v937 = vor.u32 %v935, %v933
      %v938 = vshll.u32 %v812, 16
      %v940 = vrot.slane %v938, 1
      %v941 = vsel %vm428, %v937, %v940
      %v942 = vshrl.u32 %v812, 16
      %v944 = vor.u32 %v942, %v940
      %v946 = vshll.u32 %v915, 16
      %v948 = vrot.slane %v946, 1
      %v949 = vsel %vm428, %v944, %v948
      %v950 = vshrl.u32 %v915, 16
      %v952 = vor.u32 %v950, %v948
      %v954 = vsel %vm297, %v927, 0
      %v957 = vsel %vm297, %v934, 0
      %v960 = vsel %vm297, %v941, 0
      %v963 = vsel %vm297, %v949, 0
      %v966 = vsel %vm297, %v952, 0
      %v969 = vsel %vm520, %v917, 0
      %971 = vmatprep.subr.bf16.mxu0 0
      %972 = vmatpush1.bf16.msra.mxu0 %v969
      %973 = vmatprep.subr.bf16.mxu0 0
      %974 = vmatpush1.bf16.msra.mxu0 0
      %975 = vmatprep.subr.bf16.mxu0 0
      %976 = vmatpush1.bf16.msra.mxu0 0
      %977 = vmatprep.subr.bf16.mxu0 0
      %978 = vmatpush1.bf16.msra.mxu0 0
      %979 = vmatprep.subr.bf16.mxu0 0
      %980 = vmatpush1.bf16.msra.mxu0 0
      %981 = vmatprep.subr.bf16.mxu0 0
      %982 = vmatpush1.bf16.msra.mxu0 0
      %983 = vmatprep.subr.bf16.mxu0 0
      %984 = vmatpush1.bf16.msra.mxu0 0
      %985 = vmatprep.subr.bf16.mxu0 0
      %986 = vmatpush1.bf16.msra.mxu0 0
      %987 = vmatprep.subr.bf16.mxu0 0
      %988 = vmatpush1.bf16.msra.mxu0 0
      %989 = vmatprep.subr.bf16.mxu0 0
      %990 = vmatpush1.bf16.msra.mxu0 0
      %991 = vmatprep.subr.bf16.mxu0 0
      %992 = vmatpush1.bf16.msra.mxu0 0
      %993 = vmatprep.subr.bf16.mxu0 0
      %994 = vmatpush1.bf16.msra.mxu0 0
      %995 = vmatprep.subr.bf16.mxu0 0
      %996 = vmatpush1.bf16.msra.mxu0 0
      %997 = vmatprep.subr.bf16.mxu0 0
      %998 = vmatpush1.bf16.msra.mxu0 0
      %999 = vmatprep.subr.bf16.mxu0 0
      %1000 = vmatpush1.bf16.msra.mxu0 0
      %1001 = vmatprep.subr.bf16.mxu0 0
      %1002 = vmatpush1.bf16.msra.mxu0 0
      %1003 = vmatprep.mubr.bf16.mxu0 0
      %1004 = vmatmul.mubr.bf16.gmra.mrb[0].mxu0 %v954
      %v1005 = vpop.f32.mrb[0].mxu0
      %v1006 = vadd.f32 0.0, %v1005
      %v1007 = vpop.f32.mrb[0].mxu0
      %v1008 = vpop.f32.mrb[0].mxu0
      %v1009 = vadd.f32 0.0, %v1008
      %v1010 = vpop.f32.mrb[0].mxu0
      %1011 = vmatprep.mubr.bf16.mxu0 0
      %1012 = vmatmul.mubr.bf16.gmra.mrb[0].mxu0 %v957
      %v1013 = vpop.f32.mrb[0].mxu0
      %v1014 = vadd.f32 0.0, %v1013
      %v1015 = vpop.f32.mrb[0].mxu0
      %v1016 = vpop.f32.mrb[0].mxu0
      %v1017 = vadd.f32 0.0, %v1016
      %v1018 = vpop.f32.mrb[0].mxu0
      %1019 = vmatprep.mubr.bf16.mxu0 0
      %1020 = vmatmul.mubr.bf16.gmra.mrb[0].mxu0 %v960
      %v1021 = vpop.f32.mrb[0].mxu0
      %v1022 = vadd.f32 0.0, %v1021
      %v1023 = vpop.f32.mrb[0].mxu0
      %v1024 = vpop.f32.mrb[0].mxu0
      %v1025 = vadd.f32 0.0, %v1024
      %v1026 = vpop.f32.mrb[0].mxu0
      %1027 = vmatprep.mubr.bf16.mxu0 0
      %1028 = vmatmul.mubr.bf16.gmra.mrb[0].mxu0 %v963
      %v1029 = vpop.f32.mrb[0].mxu0
      %v1030 = vadd.f32 0.0, %v1029
      %v1031 = vpop.f32.mrb[0].mxu0
      %v1032 = vpop.f32.mrb[0].mxu0
      %v1033 = vadd.f32 0.0, %v1032
      %v1034 = vpop.f32.mrb[0].mxu0
      %1035 = vmatprep.mubr.bf16.mxu0 0
      %1036 = vmatmul.mubr.bf16.gmra.mrb[0].mxu0 %v966
      %v1037 = vpop.f32.mrb[0].mxu0
      %v1038 = vadd.f32 0.0, %v1037
      %v1039 = vpop.f32.mrb[0].mxu0
      %v1040 = vpop.f32.mrb[0].mxu0
      %v1041 = vpop.f32.mrb[0].mxu0
      %1042 = vdwg.mxu0
      %v1043 = vadd.f32 %v906, %v1006
      %v1044 = vadd.f32 %v907, %v1009
      %v1045 = vadd.f32 %v908, %v1014
      %v1046 = vadd.f32 %v909, %v1017
      %v1047 = vadd.f32 %v910, %v1022
      %v1048 = vadd.f32 %v911, %v1025
      %v1049 = vadd.f32 %v912, %v1030
      %v1050 = vadd.f32 %v913, %v1033
      %v1051 = vadd.f32 %v914, %v1038
      %v1052 = vld [vmem:[%s273 + $0x8] sm:$0xe]
      %v1053 = vld [vmem:[%s273 + $0xc] sm:$0x3]
      %v1056 = vunpack.c.l.b16 %v1052
      %v1057 = vunpack.c.l.b16 %v1053
      %v1058 = vpack.c.b16 %v1057, %v1056
      %v1059 = vrot.slane %v1058, 1
      %v1061 = vld [vmem:[#allocation3] sm:$0x1f]
      %v1062 = vsel %vm313, %v1059, %v1061
      %1063 = vst [vmem:[#allocation3] sm:$0x1f] %v1062
      %v1064 = vld [vmem:[%s273 + $0x10] sm:$0xc]
      %v1065 = vld [vmem:[%s273 + $0x14] sm:$0x7]
      %v1068 = vunpack.c.l.b16 %v1064
      %v1069 = vunpack.c.l.b16 %v1065
      %v1070 = vpack.c.b16 %v1069, %v1068
      %v1072 = vshrl.u32 %v1070, 16
      %v1074 = vrot.slane %v1072, 5
      %v1075 = vshll.u32 %v1070, 16
      %v1077 = vrot.slane %v1075, 6
      %v1078 = vor.u32 %v1074, %v1077
      %v1080 = vld [vmem:[#allocation3] sm:$0xf0]
      %v1081 = vsel %vm335, %v1078, %v1080
      %1082 = vst [vmem:[#allocation3] sm:$0xf0] %v1081
      %1083 = vst.msk [vmem:[#allocation3 + $0x8] sm:$0x1] %vm339, %v1078
      %v1084 = vld [vmem:[%s273 + $0x18] sm:$0x8]
      %v1085 = vld [vmem:[%s273 + $0x1c] sm:$0xf]
      %v1088 = vunpack.c.l.b16 %v1084
      %v1089 = vunpack.c.l.b16 %v1085
      %v1090 = vpack.c.b16 %v1089, %v1088
      %v1091 = vrot.slane %v1090, 2
      %v1093 = vld [vmem:[#allocation3 + $0x8] sm:$0x3e]
      %v1094 = vsel %vm352, %v1091, %v1093
      %1095 = vst [vmem:[#allocation3 + $0x8] sm:$0x3e] %v1094
      %v1096 = vld [vmem:[%s273 + $0x24] sm:$0xf]
      %v1097 = vld [vmem:[%s273 + $0x28] sm:$0x1]
      %v1100 = vunpack.c.l.b16 %v1096
      %v1101 = vunpack.c.l.b16 %v1097
      %v1102 = vpack.c.b16 %v1101, %v1100
      %v1104 = vshrl.u32 %v1102, 16
      %v1106 = vrot.slane %v1104, 2
      %v1107 = vshll.u32 %v1102, 16
      %v1109 = vrot.slane %v1107, 3
      %v1110 = vor.u32 %v1106, %v1109
      %v1112 = vld [vmem:[#allocation3 + $0x8] sm:$0xe0]
      %v1113 = vsel %vm374, %v1110, %v1112
      %1114 = vst [vmem:[#allocation3 + $0x8] sm:$0xe0] %v1113
      %1115 = vst.msk [vmem:[#allocation3 + $0x10] sm:$0x3] %vm295, %v1110
      %v1116 = vld [vmem:[%s273 + $0x2c] sm:$0xe]
      %v1117 = vld [vmem:[%s273 + $0x30] sm:$0x3]
      %v1120 = vunpack.c.l.b16 %v1116
      %v1121 = vunpack.c.l.b16 %v1117
      %v1122 = vpack.c.b16 %v1121, %v1120
      %v1123 = vrot.slane %v1122, 7
      %v1125 = vld [vmem:[#allocation3 + $0x10] sm:$0x7c]
      %v1126 = vsel %vm390, %v1123, %v1125
      %1127 = vst [vmem:[#allocation3 + $0x10] sm:$0x7c] %v1126
      %v1128 = vld [vmem:[%s273 + $0x34] sm:$0xc]
      %v1129 = vld [vmem:[%s273 + $0x38] sm:$0x7]
      %v1132 = vunpack.c.l.b16 %v1128
      %v1133 = vunpack.c.l.b16 %v1129
      %v1134 = vpack.c.b16 %v1133, %v1132
      %v1136 = vshrl.u32 %v1134, 16
      %v1138 = vrot.slane %v1136, 3
      %v1139 = vshll.u32 %v1134, 16
      %v1141 = vrot.slane %v1139, 4
      %v1142 = vor.u32 %v1138, %v1141
      %v1144 = vld [vmem:[#allocation3 + $0x10] sm:$0xc0]
      %v1145 = vsel %vm412, %v1142, %v1144
      %1146 = vst [vmem:[#allocation3 + $0x10] sm:$0xc0] %v1145
      %1147 = vst.msk [vmem:[#allocation3 + $0x18] sm:$0x7] %vm416, %v1142
      %v1148 = vld [vmem:[%s273 + $0x3c] sm:$0x8]
      %v1149 = vld [vmem:[%s273 + $0x40] sm:$0xf]
      %v1152 = vunpack.c.l.b16 %v1148
      %v1153 = vunpack.c.l.b16 %v1149
      %v1154 = vpack.c.b16 %v1153, %v1152
      %v1156 = vld [vmem:[#allocation3 + $0x18] sm:$0xf8]
      %v1157 = vsel %vm429, %v1154, %v1156
      %1158 = vst [vmem:[#allocation3 + $0x18] sm:$0xf8] %v1157
      %v1159 = vld [vmem:[%s273 + $0x48] sm:$0xf]
      %v1160 = vld [vmem:[%s273 + $0x4c] sm:$0x1]
      %v1163 = vunpack.c.l.b16 %v1159
      %v1164 = vunpack.c.l.b16 %v1160
      %v1165 = vpack.c.b16 %v1164, %v1163
      %v1167 = vshll.u32 %v1165, 16
      %v1169 = vrot.slane %v1167, 1
      %v1170 = vshrl.u32 %v1165, 16
      %v1172 = vor.u32 %v1170, %v1169
      %v1175 = vld [vmem:[#allocation3 + $0x18] sm:$0x80]
      %v1176 = vsel %vm452, %v1169, %v1175
      %1177 = vst [vmem:[#allocation3 + $0x18] sm:$0x80] %v1176
      %1178 = vst.msk [vmem:[#allocation3 + $0x20] sm:$0xf] %vm280, %v1172
      %v1179 = vld [vmem:[#allocation3] sm:$0xff]
      %v1180 = vld [vmem:[#allocation3 + $0x8] sm:$0xff]
      %v1181 = vld [vmem:[#allocation3 + $0x10] sm:$0xff]
      %v1182 = vld [vmem:[#allocation3 + $0x18] sm:$0xff]
      %v1183 = vld [vmem:[#allocation3 + $0x20] sm:$0xf]
      %s1184 = scalar_lea.vmem %s1, 16
      %v1185 = vld [vmem:[%s1184] sm:$0xf]
      %v1187 = vsel %vm297, %v1179, 0
      %v1190 = vsel %vm297, %v1180, 0
      %v1193 = vsel %vm297, %v1181, 0
      %v1196 = vsel %vm297, %v1182, 0
      %v1199 = vsel %vm297, %v1183, 0
      %v1202 = vsel %vm520, %v1185, 0
      %1204 = vmatprep.subr.bf16.mxu0 0
      %1205 = vmatpush1.bf16.msra.mxu0 %v1202
      %1206 = vmatprep.subr.bf16.mxu0 0
      %1207 = vmatpush1.bf16.msra.mxu0 0
      %1208 = vmatprep.subr.bf16.mxu0 0
      %1209 = vmatpush1.bf16.msra.mxu0 0
      %1210 = vmatprep.subr.bf16.mxu0 0
      %1211 = vmatpush1.bf16.msra.mxu0 0
      %1212 = vmatprep.subr.bf16.mxu0 0
      %1213 = vmatpush1.bf16.msra.mxu0 0
      %1214 = vmatprep.subr.bf16.mxu0 0
      %1215 = vmatpush1.bf16.msra.mxu0 0
      %1216 = vmatprep.subr.bf16.mxu0 0
      %1217 = vmatpush1.bf16.msra.mxu0 0
      %1218 = vmatprep.subr.bf16.mxu0 0
      %1219 = vmatpush1.bf16.msra.mxu0 0
      %1220 = vmatprep.subr.bf16.mxu0 0
      %1221 = vmatpush1.bf16.msra.mxu0 0
      %1222 = vmatprep.subr.bf16.mxu0 0
      %1223 = vmatpush1.bf16.msra.mxu0 0
      %1224 = vmatprep.subr.bf16.mxu0 0
      %1225 = vmatpush1.bf16.msra.mxu0 0
      %1226 = vmatprep.subr.bf16.mxu0 0
      %1227 = vmatpush1.bf16.msra.mxu0 0
      %1228 = vmatprep.subr.bf16.mxu0 0
      %1229 = vmatpush1.bf16.msra.mxu0 0
      %1230 = vmatprep.subr.bf16.mxu0 0
      %1231 = vmatpush1.bf16.msra.mxu0 0
      %1232 = vmatprep.subr.bf16.mxu0 0
      %1233 = vmatpush1.bf16.msra.mxu0 0
      %1234 = vmatprep.subr.bf16.mxu0 0
      %1235 = vmatpush1.bf16.msra.mxu0 0
      %1236 = vmatprep.mubr.bf16.mxu0 0
      %1237 = vmatmul.mubr.bf16.gmra.mrb[0].mxu0 %v1187
      %v1238 = vpop.f32.mrb[0].mxu0
      %v1239 = vadd.f32 0.0, %v1238
      %v1240 = vpop.f32.mrb[0].mxu0
      %v1241 = vpop.f32.mrb[0].mxu0
      %v1242 = vadd.f32 0.0, %v1241
      %v1243 = vpop.f32.mrb[0].mxu0
      %1244 = vmatprep.mubr.bf16.mxu0 0
      %1245 = vmatmul.mubr.bf16.gmra.mrb[0].mxu0 %v1190
      %v1246 = vpop.f32.mrb[0].mxu0
      %v1247 = vadd.f32 0.0, %v1246
      %v1248 = vpop.f32.mrb[0].mxu0
      %v1249 = vpop.f32.mrb[0].mxu0
      %v1250 = vadd.f32 0.0, %v1249
      %v1251 = vpop.f32.mrb[0].mxu0
      %1252 = vmatprep.mubr.bf16.mxu0 0
      %1253 = vmatmul.mubr.bf16.gmra.mrb[0].mxu0 %v1193
      %v1254 = vpop.f32.mrb[0].mxu0
      %v1255 = vadd.f32 0.0, %v1254
      %v1256 = vpop.f32.mrb[0].mxu0
      %v1257 = vpop.f32.mrb[0].mxu0
      %v1258 = vadd.f32 0.0, %v1257
      %v1259 = vpop.f32.mrb[0].mxu0
      %1260 = vmatprep.mubr.bf16.mxu0 0
      %1261 = vmatmul.mubr.bf16.gmra.mrb[0].mxu0 %v1196
      %v1262 = vpop.f32.mrb[0].mxu0
      %v1263 = vadd.f32 0.0, %v1262
      %v1264 = vpop.f32.mrb[0].mxu0
      %v1265 = vpop.f32.mrb[0].mxu0
      %v1266 = vadd.f32 0.0, %v1265
      %v1267 = vpop.f32.mrb[0].mxu0
      %1268 = vmatprep.mubr.bf16.mxu0 0
      %1269 = vmatmul.mubr.bf16.gmra.mrb[0].mxu0 %v1199
      %v1270 = vpop.f32.mrb[0].mxu0
      %v1271 = vadd.f32 0.0, %v1270
      %v1272 = vpop.f32.mrb[0].mxu0
      %v1273 = vpop.f32.mrb[0].mxu0
      %v1274 = vpop.f32.mrb[0].mxu0
      %1275 = vdwg.mxu0
      %v1276 = vadd.f32 %v1043, %v1239
      %v1277 = vadd.f32 %v1044, %v1242
      %v1278 = vadd.f32 %v1045, %v1247
      %v1279 = vadd.f32 %v1046, %v1250
      %v1280 = vadd.f32 %v1047, %v1255
      %v1281 = vadd.f32 %v1048, %v1258
      %v1282 = vadd.f32 %v1049, %v1263
      %v1283 = vadd.f32 %v1050, %v1266
      %v1284 = vadd.f32 %v1051, %v1271
      %v1285 = vld [vmem:[#allocation3 + $0x20] sm:$0x1f]
      %s1286 = scalar_lea.vmem %s1, 20
      %v1287 = vld [vmem:[%s1286] sm:$0xf]
      %v1288 = vshrl.u32 %v1179, 16
      %v1290 = vshll.u32 %v1179, 16
      %v1292 = vrot.slane %v1290, 1
      %v1293 = vor.u32 %v1288, %v1292
      %v1294 = vshll.u32 %v1180, 16
      %v1296 = vrot.slane %v1294, 1
      %v1297 = vsel %vm428, %v1293, %v1296
      %v1298 = vshrl.u32 %v1180, 16
      %v1300 = vor.u32 %v1298, %v1296
      %v1301 = vshll.u32 %v1181, 16
      %v1303 = vrot.slane %v1301, 1
      %v1304 = vsel %vm428, %v1300, %v1303
      %v1305 = vshrl.u32 %v1181, 16
      %v1307 = vor.u32 %v1305, %v1303
      %v1308 = vshll.u32 %v1182, 16
      %v1310 = vrot.slane %v1308, 1
      %v1311 = vsel %vm428, %v1307, %v1310
      %v1312 = vshrl.u32 %v1182, 16
      %v1314 = vor.u32 %v1312, %v1310
      %v1316 = vshll.u32 %v1285, 16
      %v1318 = vrot.slane %v1316, 1
      %v1319 = vsel %vm428, %v1314, %v1318
      %v1320 = vshrl.u32 %v1285, 16
      %v1322 = vor.u32 %v1320, %v1318
      %v1324 = vsel %vm297, %v1297, 0
      %v1327 = vsel %vm297, %v1304, 0
      %v1330 = vsel %vm297, %v1311, 0
      %v1333 = vsel %vm297, %v1319, 0
      %v1336 = vsel %vm297, %v1322, 0
      %v1339 = vsel %vm520, %v1287, 0
      %1341 = vmatprep.subr.bf16.mxu0 0
      %1342 = vmatpush1.bf16.msra.mxu0 %v1339
      %1343 = vmatprep.subr.bf16.mxu0 0
      %1344 = vmatpush1.bf16.msra.mxu0 0
      %1345 = vmatprep.subr.bf16.mxu0 0
      %1346 = vmatpush1.bf16.msra.mxu0 0
      %1347 = vmatprep.subr.bf16.mxu0 0
      %1348 = vmatpush1.bf16.msra.mxu0 0
      %1349 = vmatprep.subr.bf16.mxu0 0
      %1350 = vmatpush1.bf16.msra.mxu0 0
      %1351 = vmatprep.subr.bf16.mxu0 0
      %1352 = vmatpush1.bf16.msra.mxu0 0
      %1353 = vmatprep.subr.bf16.mxu0 0
      %1354 = vmatpush1.bf16.msra.mxu0 0
      %1355 = vmatprep.subr.bf16.mxu0 0
      %1356 = vmatpush1.bf16.msra.mxu0 0
      %1357 = vmatprep.subr.bf16.mxu0 0
      %1358 = vmatpush1.bf16.msra.mxu0 0
      %1359 = vmatprep.subr.bf16.mxu0 0
      %1360 = vmatpush1.bf16.msra.mxu0 0
      %1361 = vmatprep.subr.bf16.mxu0 0
      %1362 = vmatpush1.bf16.msra.mxu0 0
      %1363 = vmatprep.subr.bf16.mxu0 0
      %1364 = vmatpush1.bf16.msra.mxu0 0
      %1365 = vmatprep.subr.bf16.mxu0 0
      %1366 = vmatpush1.bf16.msra.mxu0 0
      %1367 = vmatprep.subr.bf16.mxu0 0
      %1368 = vmatpush1.bf16.msra.mxu0 0
      %1369 = vmatprep.subr.bf16.mxu0 0
      %1370 = vmatpush1.bf16.msra.mxu0 0
      %1371 = vmatprep.subr.bf16.mxu0 0
      %1372 = vmatpush1.bf16.msra.mxu0 0
      %1373 = vmatprep.mubr.bf16.mxu0 0
      %1374 = vmatmul.mubr.bf16.gmra.mrb[0].mxu0 %v1324
      %v1375 = vpop.f32.mrb[0].mxu0
      %v1376 = vadd.f32 0.0, %v1375
      %v1377 = vpop.f32.mrb[0].mxu0
      %v1378 = vpop.f32.mrb[0].mxu0
      %v1379 = vadd.f32 0.0, %v1378
      %v1380 = vpop.f32.mrb[0].mxu0
      %1381 = vmatprep.mubr.bf16.mxu0 0
      %1382 = vmatmul.mubr.bf16.gmra.mrb[0].mxu0 %v1327
      %v1383 = vpop.f32.mrb[0].mxu0
      %v1384 = vadd.f32 0.0, %v1383
      %v1385 = vpop.f32.mrb[0].mxu0
      %v1386 = vpop.f32.mrb[0].mxu0
      %v1387 = vadd.f32 0.0, %v1386
      %v1388 = vpop.f32.mrb[0].mxu0
      %1389 = vmatprep.mubr.bf16.mxu0 0
      %1390 = vmatmul.mubr.bf16.gmra.mrb[0].mxu0 %v1330
      %v1391 = vpop.f32.mrb[0].mxu0
      %v1392 = vadd.f32 0.0, %v1391
      %v1393 = vpop.f32.mrb[0].mxu0
      %v1394 = vpop.f32.mrb[0].mxu0
      %v1395 = vadd.f32 0.0, %v1394
      %v1396 = vpop.f32.mrb[0].mxu0
      %1397 = vmatprep.mubr.bf16.mxu0 0
      %1398 = vmatmul.mubr.bf16.gmra.mrb[0].mxu0 %v1333
      %v1399 = vpop.f32.mrb[0].mxu0
      %v1400 = vadd.f32 0.0, %v1399
      %v1401 = vpop.f32.mrb[0].mxu0
      %v1402 = vpop.f32.mrb[0].mxu0
      %v1403 = vadd.f32 0.0, %v1402
      %v1404 = vpop.f32.mrb[0].mxu0
      %1405 = vmatprep.mubr.bf16.mxu0 0
      %1406 = vmatmul.mubr.bf16.gmra.mrb[0].mxu0 %v1336
      %v1407 = vpop.f32.mrb[0].mxu0
      %v1408 = vadd.f32 0.0, %v1407
      %v1409 = vpop.f32.mrb[0].mxu0
      %v1410 = vpop.f32.mrb[0].mxu0
      %v1411 = vpop.f32.mrb[0].mxu0
      %1412 = vdwg.mxu0
      %v1413 = vadd.f32 %v1276, %v1376
      %v1414 = vadd.f32 %v1277, %v1379
      %v1415 = vadd.f32 %v1278, %v1384
      %v1416 = vadd.f32 %v1279, %v1387
      %v1417 = vadd.f32 %v1280, %v1392
      %v1418 = vadd.f32 %v1281, %v1395
      %v1419 = vadd.f32 %v1282, %v1400
      %v1420 = vadd.f32 %v1283, %v1403
      %v1421 = vadd.f32 %v1284, %v1408
      %v1422 = vld [vmem:[%s2] sm:$0x1]
      %v1424 = vlaneseq
      %v1425 = vshrl.u32 %v1424, 7
      %v1426 = vsub.s32 0, %v1425
      %v1427 = vrot.slane %v1422, %v1426
      %v1429 = vadd.f32 %v1413, %v1427
      %v1430 = vadd.f32 %v1414, %v1427
      %v1431 = vadd.f32 %v1415, %v1427
      %v1432 = vadd.f32 %v1416, %v1427
      %v1433 = vadd.f32 %v1417, %v1427
      %v1434 = vadd.f32 %v1418, %v1427
      %v1435 = vadd.f32 %v1419, %v1427
      %v1436 = vadd.f32 %v1420, %v1427
      %v1437 = vadd.f32 %v1421, %v1427
      %vm1438 = vcmp.ge.f32.partialorder %v1429, 0.0
      %vm1439 = vcmp.ge.f32.partialorder %v1430, 0.0
      %vm1440 = vcmp.ge.f32.partialorder %v1431, 0.0
      %vm1441 = vcmp.ge.f32.partialorder %v1432, 0.0
      %vm1442 = vcmp.ge.f32.partialorder %v1433, 0.0
      %vm1443 = vcmp.ge.f32.partialorder %v1434, 0.0
      %vm1444 = vcmp.ge.f32.partialorder %v1435, 0.0
      %vm1445 = vcmp.ge.f32.partialorder %v1436, 0.0
      %vm1446 = vcmp.ge.f32.partialorder %v1437, 0.0
      %v1447 = vmul.f32 %v1429, 0.2
      %v1448 = vmul.f32 %v1430, 0.2
      %v1449 = vmul.f32 %v1431, 0.2
      %v1450 = vmul.f32 %v1432, 0.2
      %v1451 = vmul.f32 %v1433, 0.2
      %v1452 = vmul.f32 %v1434, 0.2
      %v1453 = vmul.f32 %v1435, 0.2
      %v1454 = vmul.f32 %v1436, 0.2
      %v1455 = vmul.f32 %v1437, 0.2
      %v1456 = vsel %vm1438, %v1429, %v1447
      %v1457 = vsel %vm1439, %v1430, %v1448
      %v1458 = vsel %vm1440, %v1431, %v1449
      %v1459 = vsel %vm1441, %v1432, %v1450
      %v1460 = vsel %vm1442, %v1433, %v1451
      %v1461 = vsel %vm1443, %v1434, %v1452
      %v1462 = vsel %vm1444, %v1435, %v1453
      %v1463 = vsel %vm1445, %v1436, %v1454
      %v1464 = vsel %vm1446, %v1437, %v1455
      %v1465 = vpack.c.bf16 %v1457, %v1456
      %v1466 = vpack.c.bf16 %v1459, %v1458
      %v1467 = vpack.c.bf16 %v1461, %v1460
      %v1468 = vpack.c.bf16 %v1463, %v1462
      %v1469 = vpack.c.bf16 %v1464, %v1464
      %v1471 = vunpack.c.l.b16 %v1465
      %v1472 = vpack.c.b16 %v1471, %v1471
      %v1474 = vshrl.u32 %v1472, 16
      %v1476 = vrot.slane %v1474, 6
      %v1477 = vshll.u32 %v1472, 16
      %v1479 = vrot.slane %v1477, 7
      %v1480 = vor.u32 %v1476, %v1479
      %v1481 = vrot.slane %v1480, 4
      %vm1484 = vcmask 60417
      %vm1485 = vsmask.f32 7942
      %vm1486 = vmand %vm1484, %vm1485
      %v1487 = vld [vmem:[#allocation2 + $0x8] sm:$0xe]
      %v1488 = vsel %vm1486, %v1480, %v1487
      %1489 = vst [vmem:[#allocation2 + $0x8] sm:$0xe] %v1488
      %vm1490 = vcmask 58368
      %vm1491 = vsmask.f32 1280
      %vm1492 = vmand %vm1490, %vm1491
      %v1493 = vld [vmem:[#allocation2 + $0xc] sm:$0x3]
      %v1494 = vsel %vm1492, %v1481, %v1493
      %1495 = vst [vmem:[#allocation2 + $0xc] sm:$0x3] %v1494
      %v1497 = vunpack.c.h.b16 %v1465
      %v1498 = vunpack.c.l.b16 %v1466
      %v1499 = vpack.c.b16 %v1497, %v1497
      %v1500 = vpack.c.b16 %v1498, %v1498
      %vm1501 = vcmask 1041408
      %vm1502 = vcmask 1045508
      %vm1503 = vmor %vm1501, %vm1502
      %v1504 = vrot.slane %v1499, 6
      %v1505 = vrot.slane %v1504, 4
      %v1506 = vrot.slane %v1500, 6
      %v1507 = vsel %vm1503, %v1505, %v1506
      %vm1510 = vcmask 60418
      %vm1511 = vsmask.f32 7946
      %vm1512 = vmand %vm1510, %vm1511
      %v1513 = vld [vmem:[#allocation2 + $0xc] sm:$0xc]
      %v1514 = vsel %vm1512, %v1504, %v1513
      %1515 = vst [vmem:[#allocation2 + $0xc] sm:$0xc] %v1514
      %vm1516 = vcmask 59392
      %vm1517 = vsmask.f32 2304
      %vm1518 = vmand %vm1516, %vm1517
      %v1519 = vld [vmem:[#allocation2 + $0x10] sm:$0x7]
      %v1520 = vsel %vm1518, %v1507, %v1519
      %1521 = vst [vmem:[#allocation2 + $0x10] sm:$0x7] %v1520
      %v1522 = vunpack.c.h.b16 %v1466
      %v1523 = vpack.c.b16 %v1522, %v1522
      %vm1524 = vsmask.f32 6416
      %vm1525 = vmor %vm1517, %vm1524
      %v1527 = vshll.u32 %v1500, 16
      %v1529 = vrot.slane %v1527, 6
      %v1530 = vshrl.u32 %v1500, 16
      %v1532 = vrot.slane %v1530, 5
      %v1533 = vor.u32 %v1532, %v1529
      %v1534 = vrot.slane %v1533, 4
      %v1536 = vshrl.u32 %v1523, 16
      %v1538 = vrot.slane %v1536, 5
      %v1539 = vshll.u32 %v1523, 16
      %v1541 = vrot.slane %v1539, 6
      %v1542 = vor.u32 %v1538, %v1541
      %v1543 = vsel %vm1525, %v1534, %v1542
      %vm1546 = vcmask 60419
      %vm1547 = vsmask.f32 7950
      %vm1548 = vmand %vm1546, %vm1547
      %v1549 = vld [vmem:[#allocation2 + $0x10] sm:$0x8]
      %v1550 = vsel %vm1548, %v1529, %v1549
      %1551 = vst [vmem:[#allocation2 + $0x10] sm:$0x8] %v1550
      %vm1552 = vcmask 60416
      %vm1553 = vsmask.f32 3328
      %vm1554 = vmand %vm1552, %vm1553
      %v1555 = vld [vmem:[#allocation2 + $0x14] sm:$0xf]
      %v1556 = vsel %vm1554, %v1543, %v1555
      %1557 = vst [vmem:[#allocation2 + $0x14] sm:$0xf] %v1556
      %v1559 = vunpack.c.l.b16 %v1467
      %v1560 = vpack.c.b16 %v1559, %v1559
      %vm1561 = vcmask 1042432
      %vm1562 = vcmask 1046532
      %vm1563 = vmor %vm1561, %vm1562
      %v1564 = vrot.slane %v1523, 5
      %v1565 = vrot.slane %v1564, 4
      %v1566 = vrot.slane %v1560, 5
      %v1567 = vsel %vm1563, %v1565, %v1566
      %v1568 = vrot.slane %v1566, 4
      %vm1571 = vsmask.f32 7938
      %vm1572 = vmand %vm1552, %vm1571
      %v1573 = vld [vmem:[#allocation2 + $0x18] sm:$0xf]
      %v1574 = vsel %vm1572, %v1567, %v1573
      %1575 = vst [vmem:[#allocation2 + $0x18] sm:$0xf] %v1574
      %vm1576 = vcmask 57344
      %vm1577 = vsmask.f32 256
      %vm1578 = vmand %vm1576, %vm1577
      %v1579 = vld [vmem:[#allocation2 + $0x1c] sm:$0x1]
      %v1580 = vsel %vm1578, %v1568, %v1579
      %1581 = vst [vmem:[#allocation2 + $0x1c] sm:$0x1] %v1580
      %v1582 = vunpack.c.h.b16 %v1467
      %v1583 = vpack.c.b16 %v1582, %v1582
      %vm1584 = vsmask.f32 7440
      %vm1585 = vmor %vm1553, %vm1584
      %v1587 = vshrl.u32 %v1560, 16
      %v1589 = vrot.slane %v1587, 4
      %v1590 = vshll.u32 %v1560, 16
      %v1592 = vrot.slane %v1590, 5
      %v1593 = vor.u32 %v1589, %v1592
      %v1594 = vrot.slane %v1593, 4
      %v1596 = vshll.u32 %v1583, 16
      %v1598 = vrot.slane %v1596, 5
      %v1599 = vsel %vm1585, %v1594, %v1598
      %v1600 = vshrl.u32 %v1583, 16
      %v1602 = vrot.slane %v1600, 4
      %v1603 = vor.u32 %v1602, %v1598
      %v1604 = vrot.slane %v1603, 4
      %v1607 = vld [vmem:[#allocation2 + $0x1c] sm:$0xe]
      %v1608 = vsel %vm1486, %v1599, %v1607
      %1609 = vst [vmem:[#allocation2 + $0x1c] sm:$0xe] %v1608
      %v1610 = vld [vmem:[#allocation2 + $0x20] sm:$0x3]
      %v1611 = vsel %vm1492, %v1604, %v1610
      %1612 = vst [vmem:[#allocation2 + $0x20] sm:$0x3] %v1611
      %v1614 = vunpack.c.l.b16 %v1468
      %v1615 = vpack.c.b16 %v1614, %v1614
      %v1618 = vld [vmem:[#allocation2 + $0x20] sm:$0xc]
      %v1619 = vsel %vm1512, %v1583, %v1618
      %1620 = vst [vmem:[#allocation2 + $0x20] sm:$0xc] %v1619
      %v1621 = vld [vmem:[#allocation2 + $0x24] sm:$0x7]
      %v1622 = vsel %vm1518, %v1615, %v1621
      %1623 = vst [vmem:[#allocation2 + $0x24] sm:$0x7] %v1622
      %v1624 = vunpack.c.h.b16 %v1468
      %v1625 = vpack.c.b16 %v1624, %v1624
      %vm1626 = vsmask.f32 4368
      %vm1627 = vmor %vm1577, %vm1626
      %v1629 = vshll.u32 %v1615, 16
      %v1631 = vshrl.u32 %v1615, 16
      %v1633 = vrot.slane %v1631, 7
      %v1634 = vrot.slane %v1633, 4
      %v1636 = vshrl.u32 %v1625, 16
      %v1638 = vrot.slane %v1636, 7
      %v1639 = vshll.u32 %v1625, 16
      %v1641 = vor.u32 %v1638, %v1639
      %v1642 = vsel %vm1627, %v1634, %v1641
      %v1645 = vld [vmem:[#allocation2 + $0x24] sm:$0x8]
      %v1646 = vsel %vm1548, %v1629, %v1645
      %1647 = vst [vmem:[#allocation2 + $0x24] sm:$0x8] %v1646
      %v1648 = vld [vmem:[#allocation2 + $0x28] sm:$0xf]
      %v1649 = vsel %vm1554, %v1642, %v1648
      %1650 = vst [vmem:[#allocation2 + $0x28] sm:$0xf] %v1649
      %v1652 = vunpack.c.l.b16 %v1469
      %v1653 = vpack.c.b16 %v1652, %v1652
      %vm1654 = vcmask 1040384
      %vm1655 = vcmask 1044484
      %vm1656 = vmor %vm1654, %vm1655
      %v1657 = vrot.slane %v1625, 7
      %v1658 = vrot.slane %v1657, 4
      %v1659 = vrot.slane %v1653, 7
      %v1660 = vsel %vm1656, %v1658, %v1659
      %v1661 = vrot.slane %v1659, 4
      %v1664 = vld [vmem:[#allocation2 + $0x2c] sm:$0xf]
      %v1665 = vsel %vm1572, %v1660, %v1664
      %1666 = vst [vmem:[#allocation2 + $0x2c] sm:$0xf] %v1665
      %v1667 = vld [vmem:[#allocation2 + $0x30] sm:$0x1]
      %v1668 = vsel %vm1578, %v1661, %v1667
      %1669 = vst [vmem:[#allocation2 + $0x30] sm:$0x1] %v1668
      %v1670 = vld [vmem:[#allocation2 + $0x4] sm:$0xf]
      %v1671 = vld [vmem:[#allocation2 + $0x8] sm:$0xf]
      %v1672 = vld [vmem:[#allocation2 + $0xc] sm:$0xf]
      %v1673 = vld [vmem:[#allocation2 + $0x10] sm:$0xf]
      %v1674 = vld [vmem:[#allocation2 + $0x14] sm:$0xf]
      %v1675 = vld [vmem:[#allocation2 + $0x18] sm:$0xf]
      %v1676 = vld [vmem:[#allocation2 + $0x1c] sm:$0xf]
      %v1677 = vld [vmem:[#allocation2 + $0x20] sm:$0xf]
      %v1678 = vld [vmem:[#allocation2 + $0x24] sm:$0xf]
      %v1679 = vld [vmem:[#allocation2 + $0x28] sm:$0xf]
      %v1680 = vld [vmem:[%s3] sm:$0xf]
      %v1681 = vld [vmem:[#allocation2 + $0x2c] sm:$0x1]
      %s1682 = scalar_lea.vmem %s3, 4
      %v1683 = vld [vmem:[%s1682] sm:$0xf]
      %v1695 = vunpack.c.l.b16 %v1670
      %v1696 = vunpack.c.l.b16 %v1671
      %v1697 = vunpack.c.l.b16 %v1672
      %v1698 = vunpack.c.l.b16 %v1673
      %v1699 = vunpack.c.l.b16 %v1674
      %v1700 = vunpack.c.l.b16 %v1675
      %v1701 = vunpack.c.l.b16 %v1676
      %v1702 = vunpack.c.l.b16 %v1677
      %v1703 = vunpack.c.l.b16 %v1678
      %v1704 = vunpack.c.l.b16 %v1679
      %v1705 = vunpack.c.l.b16 %v1681
      %v1706 = vpack.c.b16 %v1696, %v1695
      %v1707 = vpack.c.b16 %v1698, %v1697
      %v1708 = vpack.c.b16 %v1700, %v1699
      %v1709 = vpack.c.b16 %v1702, %v1701
      %v1710 = vpack.c.b16 %v1704, %v1703
      %v1711 = vpack.c.b16 %v1705, %v1705
      %v1713 = vshrl.u32 %v1706, 16
      %v1715 = vshll.u32 %v1706, 16
      %v1717 = vrot.slane %v1715, 1
      %v1718 = vor.u32 %v1713, %v1717
      %v1720 = vshll.u32 %v1707, 16
      %v1722 = vrot.slane %v1720, 1
      %v1723 = vsel %vm428, %v1718, %v1722
      %v1724 = vshrl.u32 %v1707, 16
      %v1726 = vor.u32 %v1724, %v1722
      %v1728 = vshll.u32 %v1708, 16
      %v1730 = vrot.slane %v1728, 1
      %v1731 = vsel %vm428, %v1726, %v1730
      %v1732 = vshrl.u32 %v1708, 16
      %v1734 = vor.u32 %v1732, %v1730
      %v1736 = vshll.u32 %v1709, 16
      %v1738 = vrot.slane %v1736, 1
      %v1739 = vsel %vm428, %v1734, %v1738
      %v1740 = vshrl.u32 %v1709, 16
      %v1742 = vor.u32 %v1740, %v1738
      %v1744 = vshll.u32 %v1710, 16
      %v1746 = vrot.slane %v1744, 1
      %v1747 = vsel %vm428, %v1742, %v1746
      %v1748 = vshrl.u32 %v1710, 16
      %v1750 = vor.u32 %v1748, %v1746
      %v1752 = vshll.u32 %v1711, 16
      %v1754 = vrot.slane %v1752, 1
      %v1755 = vsel %vm428, %v1750, %v1754
      %v1757 = vsel %vm297, %v1723, 0
      %v1760 = vsel %vm297, %v1731, 0
      %v1763 = vsel %vm297, %v1739, 0
      %v1766 = vsel %vm297, %v1747, 0
      %v1769 = vsel %vm297, %v1755, 0
      %v1772 = vsel %vm520, %v1683, 0
      %1774 = vmatprep.subr.bf16.mxu0 0
      %1775 = vmatpush1.bf16.msra.mxu0 %v1772
      %1776 = vmatprep.subr.bf16.mxu0 0
      %1777 = vmatpush1.bf16.msra.mxu0 0
      %1778 = vmatprep.subr.bf16.mxu0 0
      %1779 = vmatpush1.bf16.msra.mxu0 0
      %1780 = vmatprep.subr.bf16.mxu0 0
      %1781 = vmatpush1.bf16.msra.mxu0 0
      %1782 = vmatprep.subr.bf16.mxu0 0
      %1783 = vmatpush1.bf16.msra.mxu0 0
      %1784 = vmatprep.subr.bf16.mxu0 0
      %1785 = vmatpush1.bf16.msra.mxu0 0
      %1786 = vmatprep.subr.bf16.mxu0 0
      %1787 = vmatpush1.bf16.msra.mxu0 0
      %1788 = vmatprep.subr.bf16.mxu0 0
      %1789 = vmatpush1.bf16.msra.mxu0 0
      %1790 = vmatprep.subr.bf16.mxu0 0
      %1791 = vmatpush1.bf16.msra.mxu0 0
      %1792 = vmatprep.subr.bf16.mxu0 0
      %1793 = vmatpush1.bf16.msra.mxu0 0
      %1794 = vmatprep.subr.bf16.mxu0 0
      %1795 = vmatpush1.bf16.msra.mxu0 0
      %1796 = vmatprep.subr.bf16.mxu0 0
      %1797 = vmatpush1.bf16.msra.mxu0 0
      %1798 = vmatprep.subr.bf16.mxu0 0
      %1799 = vmatpush1.bf16.msra.mxu0 0
      %1800 = vmatprep.subr.bf16.mxu0 0
      %1801 = vmatpush1.bf16.msra.mxu0 0
      %1802 = vmatprep.subr.bf16.mxu0 0
      %1803 = vmatpush1.bf16.msra.mxu0 0
      %1804 = vmatprep.subr.bf16.mxu0 0
      %1805 = vmatpush1.bf16.msra.mxu0 0
      %1806 = vmatprep.mubr.bf16.mxu0 0
      %1807 = vmatmul.mubr.bf16.gmra.mrb[0].mxu0 %v1757
      %v1808 = vpop.f32.mrb[0].mxu0
      %v1809 = vadd.f32 0.0, %v1808
      %v1810 = vpop.f32.mrb[0].mxu0
      %v1811 = vpop.f32.mrb[0].mxu0
      %v1812 = vadd.f32 0.0, %v1811
      %v1813 = vpop.f32.mrb[0].mxu0
      %1814 = vmatprep.mubr.bf16.mxu0 0
      %1815 = vmatmul.mubr.bf16.gmra.mrb[0].mxu0 %v1760
      %v1816 = vpop.f32.mrb[0].mxu0
      %v1817 = vadd.f32 0.0, %v1816
      %v1818 = vpop.f32.mrb[0].mxu0
      %v1819 = vpop.f32.mrb[0].mxu0
      %v1820 = vadd.f32 0.0, %v1819
      %v1821 = vpop.f32.mrb[0].mxu0
      %1822 = vmatprep.mubr.bf16.mxu0 0
      %1823 = vmatmul.mubr.bf16.gmra.mrb[0].mxu0 %v1763
      %v1824 = vpop.f32.mrb[0].mxu0
      %v1825 = vadd.f32 0.0, %v1824
      %v1826 = vpop.f32.mrb[0].mxu0
      %v1827 = vpop.f32.mrb[0].mxu0
      %v1828 = vadd.f32 0.0, %v1827
      %v1829 = vpop.f32.mrb[0].mxu0
      %1830 = vmatprep.mubr.bf16.mxu0 0
      %1831 = vmatmul.mubr.bf16.gmra.mrb[0].mxu0 %v1766
      %v1832 = vpop.f32.mrb[0].mxu0
      %v1833 = vadd.f32 0.0, %v1832
      %v1834 = vpop.f32.mrb[0].mxu0
      %v1835 = vpop.f32.mrb[0].mxu0
      %v1836 = vadd.f32 0.0, %v1835
      %v1837 = vpop.f32.mrb[0].mxu0
      %1838 = vmatprep.mubr.bf16.mxu0 0
      %1839 = vmatmul.mubr.bf16.gmra.mrb[0].mxu0 %v1769
      %v1840 = vpop.f32.mrb[0].mxu0
      %v1841 = vadd.f32 0.0, %v1840
      %v1842 = vpop.f32.mrb[0].mxu0
      %v1843 = vpop.f32.mrb[0].mxu0
      %v1844 = vadd.f32 0.0, %v1843
      %v1845 = vpop.f32.mrb[0].mxu0
      %1846 = vdwg.mxu0
      %v1847 = vsel %vm297, %v1706, 0
      %v1849 = vsel %vm297, %v1707, 0
      %v1851 = vsel %vm297, %v1708, 0
      %v1853 = vsel %vm297, %v1709, 0
      %v1855 = vsel %vm297, %v1710, 0
      %v1858 = vsel %vm520, %v1680, 0
      %1860 = vmatprep.subr.bf16.mxu0 0
      %1861 = vmatpush1.bf16.msra.mxu0 %v1858
      %1862 = vmatprep.subr.bf16.mxu0 0
      %1863 = vmatpush1.bf16.msra.mxu0 0
      %1864 = vmatprep.subr.bf16.mxu0 0
      %1865 = vmatpush1.bf16.msra.mxu0 0
      %1866 = vmatprep.subr.bf16.mxu0 0
      %1867 = vmatpush1.bf16.msra.mxu0 0
      %1868 = vmatprep.subr.bf16.mxu0 0
      %1869 = vmatpush1.bf16.msra.mxu0 0
      %1870 = vmatprep.subr.bf16.mxu0 0
      %1871 = vmatpush1.bf16.msra.mxu0 0
      %1872 = vmatprep.subr.bf16.mxu0 0
      %1873 = vmatpush1.bf16.msra.mxu0 0
      %1874 = vmatprep.subr.bf16.mxu0 0
      %1875 = vmatpush1.bf16.msra.mxu0 0
      %1876 = vmatprep.subr.bf16.mxu0 0
      %1877 = vmatpush1.bf16.msra.mxu0 0
      %1878 = vmatprep.subr.bf16.mxu0 0
      %1879 = vmatpush1.bf16.msra.mxu0 0
      %1880 = vmatprep.subr.bf16.mxu0 0
      %1881 = vmatpush1.bf16.msra.mxu0 0
      %1882 = vmatprep.subr.bf16.mxu0 0
      %1883 = vmatpush1.bf16.msra.mxu0 0
      %1884 = vmatprep.subr.bf16.mxu0 0
      %1885 = vmatpush1.bf16.msra.mxu0 0
      %1886 = vmatprep.subr.bf16.mxu0 0
      %1887 = vmatpush1.bf16.msra.mxu0 0
      %1888 = vmatprep.subr.bf16.mxu0 0
      %1889 = vmatpush1.bf16.msra.mxu0 0
      %1890 = vmatprep.subr.bf16.mxu0 0
      %1891 = vmatpush1.bf16.msra.mxu0 0
      %1892 = vmatprep.mubr.bf16.mxu0 0
      %1893 = vmatmul.mubr.bf16.gmra.mrb[0].mxu0 %v1847
      %v1894 = vpop.f32.mrb[0].mxu0
      %v1895 = vadd.f32 %v1809, %v1894
      %v1896 = vpop.f32.mrb[0].mxu0
      %v1897 = vpop.f32.mrb[0].mxu0
      %v1898 = vadd.f32 %v1812, %v1897
      %v1899 = vpop.f32.mrb[0].mxu0
      %1900 = vmatprep.mubr.bf16.mxu0 0
      %1901 = vmatmul.mubr.bf16.gmra.mrb[0].mxu0 %v1849
      %v1902 = vpop.f32.mrb[0].mxu0
      %v1903 = vadd.f32 %v1817, %v1902
      %v1904 = vpop.f32.mrb[0].mxu0
      %v1905 = vpop.f32.mrb[0].mxu0
      %v1906 = vadd.f32 %v1820, %v1905
      %v1907 = vpop.f32.mrb[0].mxu0
      %1908 = vmatprep.mubr.bf16.mxu0 0
      %1909 = vmatmul.mubr.bf16.gmra.mrb[0].mxu0 %v1851
      %v1910 = vpop.f32.mrb[0].mxu0
      %v1911 = vadd.f32 %v1825, %v1910
      %v1912 = vpop.f32.mrb[0].mxu0
      %v1913 = vpop.f32.mrb[0].mxu0
      %v1914 = vadd.f32 %v1828, %v1913
      %v1915 = vpop.f32.mrb[0].mxu0
      %1916 = vmatprep.mubr.bf16.mxu0 0
      %1917 = vmatmul.mubr.bf16.gmra.mrb[0].mxu0 %v1853
      %v1918 = vpop.f32.mrb[0].mxu0
      %v1919 = vadd.f32 %v1833, %v1918
      %v1920 = vpop.f32.mrb[0].mxu0
      %v1921 = vpop.f32.mrb[0].mxu0
      %v1922 = vadd.f32 %v1836, %v1921
      %v1923 = vpop.f32.mrb[0].mxu0
      %1924 = vmatprep.mubr.bf16.mxu0 0
      %1925 = vmatmul.mubr.bf16.gmra.mrb[0].mxu0 %v1855
      %v1926 = vpop.f32.mrb[0].mxu0
      %v1927 = vadd.f32 %v1841, %v1926
      %v1928 = vpop.f32.mrb[0].mxu0
      %v1929 = vpop.f32.mrb[0].mxu0
      %v1930 = vadd.f32 %v1844, %v1929
      %v1931 = vpop.f32.mrb[0].mxu0
      %1932 = vdwg.mxu0
      %v1933 = vld [vmem:[#allocation2 + $0x4] sm:$0xe]
      %s1934 = scalar_lea.vmem %s3, 8
      %v1935 = vld [vmem:[%s1934] sm:$0xf]
      %v1937 = vunpack.c.l.b16 %v1933
      %v1938 = vpack.c.b16 %v1696, %v1937
      %vm1939 = vcmask 1046528
      %v1940 = vrot.slane %v1938, 1
      %v1941 = vrot.slane %v1707, 1
      %v1942 = vsel %vm1939, %v1940, %v1941
      %v1943 = vrot.slane %v1708, 1
      %v1944 = vsel %vm1939, %v1941, %v1943
      %v1945 = vrot.slane %v1709, 1
      %v1946 = vsel %vm1939, %v1943, %v1945
      %v1947 = vrot.slane %v1710, 1
      %v1948 = vsel %vm1939, %v1945, %v1947
      %v1949 = vrot.slane %v1711, 1
      %v1950 = vsel %vm1939, %v1947, %v1949
      %v1952 = vsel %vm297, %v1942, 0
      %v1955 = vsel %vm297, %v1944, 0
      %v1958 = vsel %vm297, %v1946, 0
      %v1961 = vsel %vm297, %v1948, 0
      %v1964 = vsel %vm297, %v1950, 0
      %v1967 = vsel %vm520, %v1935, 0
      %1969 = vmatprep.subr.bf16.mxu0 0
      %1970 = vmatpush1.bf16.msra.mxu0 %v1967
      %1971 = vmatprep.subr.bf16.mxu0 0
      %1972 = vmatpush1.bf16.msra.mxu0 0
      %1973 = vmatprep.subr.bf16.mxu0 0
      %1974 = vmatpush1.bf16.msra.mxu0 0
      %1975 = vmatprep.subr.bf16.mxu0 0
      %1976 = vmatpush1.bf16.msra.mxu0 0
      %1977 = vmatprep.subr.bf16.mxu0 0
      %1978 = vmatpush1.bf16.msra.mxu0 0
      %1979 = vmatprep.subr.bf16.mxu0 0
      %1980 = vmatpush1.bf16.msra.mxu0 0
      %1981 = vmatprep.subr.bf16.mxu0 0
      %1982 = vmatpush1.bf16.msra.mxu0 0
      %1983 = vmatprep.subr.bf16.mxu0 0
      %1984 = vmatpush1.bf16.msra.mxu0 0
      %1985 = vmatprep.subr.bf16.mxu0 0
      %1986 = vmatpush1.bf16.msra.mxu0 0
      %1987 = vmatprep.subr.bf16.mxu0 0
      %1988 = vmatpush1.bf16.msra.mxu0 0
      %1989 = vmatprep.subr.bf16.mxu0 0
      %1990 = vmatpush1.bf16.msra.mxu0 0
      %1991 = vmatprep.subr.bf16.mxu0 0
      %1992 = vmatpush1.bf16.msra.mxu0 0
      %1993 = vmatprep.subr.bf16.mxu0 0
      %1994 = vmatpush1.bf16.msra.mxu0 0
      %1995 = vmatprep.subr.bf16.mxu0 0
      %1996 = vmatpush1.bf16.msra.mxu0 0
      %1997 = vmatprep.subr.bf16.mxu0 0
      %1998 = vmatpush1.bf16.msra.mxu0 0
      %1999 = vmatprep.subr.bf16.mxu0 0
      %2000 = vmatpush1.bf16.msra.mxu0 0
      %2001 = vmatprep.mubr.bf16.mxu0 0
      %2002 = vmatmul.mubr.bf16.gmra.mrb[0].mxu0 %v1952
      %v2003 = vpop.f32.mrb[0].mxu0
      %v2004 = vadd.f32 0.0, %v2003
      %v2005 = vpop.f32.mrb[0].mxu0
      %v2006 = vpop.f32.mrb[0].mxu0
      %v2007 = vadd.f32 0.0, %v2006
      %v2008 = vpop.f32.mrb[0].mxu0
      %2009 = vmatprep.mubr.bf16.mxu0 0
      %2010 = vmatmul.mubr.bf16.gmra.mrb[0].mxu0 %v1955
      %v2011 = vpop.f32.mrb[0].mxu0
      %v2012 = vadd.f32 0.0, %v2011
      %v2013 = vpop.f32.mrb[0].mxu0
      %v2014 = vpop.f32.mrb[0].mxu0
      %v2015 = vadd.f32 0.0, %v2014
      %v2016 = vpop.f32.mrb[0].mxu0
      %2017 = vmatprep.mubr.bf16.mxu0 0
      %2018 = vmatmul.mubr.bf16.gmra.mrb[0].mxu0 %v1958
      %v2019 = vpop.f32.mrb[0].mxu0
      %v2020 = vadd.f32 0.0, %v2019
      %v2021 = vpop.f32.mrb[0].mxu0
      %v2022 = vpop.f32.mrb[0].mxu0
      %v2023 = vadd.f32 0.0, %v2022
      %v2024 = vpop.f32.mrb[0].mxu0
      %2025 = vmatprep.mubr.bf16.mxu0 0
      %2026 = vmatmul.mubr.bf16.gmra.mrb[0].mxu0 %v1961
      %v2027 = vpop.f32.mrb[0].mxu0
      %v2028 = vadd.f32 0.0, %v2027
      %v2029 = vpop.f32.mrb[0].mxu0
      %v2030 = vpop.f32.mrb[0].mxu0
      %v2031 = vadd.f32 0.0, %v2030
      %v2032 = vpop.f32.mrb[0].mxu0
      %2033 = vmatprep.mubr.bf16.mxu0 0
      %2034 = vmatmul.mubr.bf16.gmra.mrb[0].mxu0 %v1964
      %v2035 = vpop.f32.mrb[0].mxu0
      %v2036 = vadd.f32 0.0, %v2035
      %v2037 = vpop.f32.mrb[0].mxu0
      %v2038 = vpop.f32.mrb[0].mxu0
      %v2039 = vadd.f32 0.0, %v2038
      %v2040 = vpop.f32.mrb[0].mxu0
      %2041 = vdwg.mxu0
      %v2042 = vadd.f32 %v1895, %v2004
      %v2043 = vadd.f32 %v1898, %v2007
      %v2044 = vadd.f32 %v1903, %v2012
      %v2045 = vadd.f32 %v1906, %v2015
      %v2046 = vadd.f32 %v1911, %v2020
      %v2047 = vadd.f32 %v1914, %v2023
      %v2048 = vadd.f32 %v1919, %v2028
      %v2049 = vadd.f32 %v1922, %v2031
      %v2050 = vadd.f32 %v1927, %v2036
      %v2051 = vadd.f32 %v1930, %v2039
      %v2052 = vld [vmem:[#allocation2 + $0x8] sm:$0xe]
      %v2053 = vld [vmem:[#allocation2 + $0xc] sm:$0xf]
      %v2054 = vld [vmem:[#allocation2 + $0x10] sm:$0xf]
      %v2055 = vld [vmem:[#allocation2 + $0x14] sm:$0xf]
      %v2056 = vld [vmem:[#allocation2 + $0x18] sm:$0xf]
      %v2057 = vld [vmem:[#allocation2 + $0x1c] sm:$0xf]
      %v2058 = vld [vmem:[#allocation2 + $0x20] sm:$0xf]
      %v2059 = vld [vmem:[#allocation2 + $0x24] sm:$0xf]
      %v2060 = vld [vmem:[#allocation2 + $0x28] sm:$0xf]
      %v2061 = vld [vmem:[#allocation2 + $0x2c] sm:$0xf]
      %v2062 = vld [vmem:[#allocation2 + $0x30] sm:$0x1]
      %s2063 = scalar_lea.vmem %s3, 12
      %v2064 = vld [vmem:[%s2063] sm:$0xf]
      %v2076 = vunpack.c.l.b16 %v2052
      %v2077 = vunpack.c.l.b16 %v2053
      %v2078 = vunpack.c.l.b16 %v2054
      %v2079 = vunpack.c.l.b16 %v2055
      %v2080 = vunpack.c.l.b16 %v2056
      %v2081 = vunpack.c.l.b16 %v2057
      %v2082 = vunpack.c.l.b16 %v2058
      %v2083 = vunpack.c.l.b16 %v2059
      %v2084 = vunpack.c.l.b16 %v2060
      %v2085 = vunpack.c.l.b16 %v2061
      %v2086 = vunpack.c.l.b16 %v2062
      %v2087 = vpack.c.b16 %v2077, %v2076
      %v2088 = vpack.c.b16 %v2079, %v2078
      %v2089 = vpack.c.b16 %v2081, %v2080
      %v2090 = vpack.c.b16 %v2083, %v2082
      %v2091 = vpack.c.b16 %v2085, %v2084
      %v2092 = vpack.c.b16 %v2086, %v2086
      %v2093 = vrot.slane %v2087, 1
      %v2094 = vrot.slane %v2088, 1
      %v2095 = vsel %vm1939, %v2093, %v2094
      %v2096 = vrot.slane %v2089, 1
      %v2097 = vsel %vm1939, %v2094, %v2096
      %v2098 = vrot.slane %v2090, 1
      %v2099 = vsel %vm1939, %v2096, %v2098
      %v2100 = vrot.slane %v2091, 1
      %v2101 = vsel %vm1939, %v2098, %v2100
      %v2102 = vrot.slane %v2092, 1
      %v2103 = vsel %vm1939, %v2100, %v2102
      %v2105 = vsel %vm297, %v2095, 0
      %v2108 = vsel %vm297, %v2097, 0
      %v2111 = vsel %vm297, %v2099, 0
      %v2114 = vsel %vm297, %v2101, 0
      %v2117 = vsel %vm297, %v2103, 0
      %v2120 = vsel %vm520, %v2064, 0
      %2122 = vmatprep.subr.bf16.mxu0 0
      %2123 = vmatpush1.bf16.msra.mxu0 %v2120
      %2124 = vmatprep.subr.bf16.mxu0 0
      %2125 = vmatpush1.bf16.msra.mxu0 0
      %2126 = vmatprep.subr.bf16.mxu0 0
      %2127 = vmatpush1.bf16.msra.mxu0 0
      %2128 = vmatprep.subr.bf16.mxu0 0
      %2129 = vmatpush1.bf16.msra.mxu0 0
      %2130 = vmatprep.subr.bf16.mxu0 0
      %2131 = vmatpush1.bf16.msra.mxu0 0
      %2132 = vmatprep.subr.bf16.mxu0 0
      %2133 = vmatpush1.bf16.msra.mxu0 0
      %2134 = vmatprep.subr.bf16.mxu0 0
      %2135 = vmatpush1.bf16.msra.mxu0 0
      %2136 = vmatprep.subr.bf16.mxu0 0
      %2137 = vmatpush1.bf16.msra.mxu0 0
      %2138 = vmatprep.subr.bf16.mxu0 0
      %2139 = vmatpush1.bf16.msra.mxu0 0
      %2140 = vmatprep.subr.bf16.mxu0 0
      %2141 = vmatpush1.bf16.msra.mxu0 0
      %2142 = vmatprep.subr.bf16.mxu0 0
      %2143 = vmatpush1.bf16.msra.mxu0 0
      %2144 = vmatprep.subr.bf16.mxu0 0
      %2145 = vmatpush1.bf16.msra.mxu0 0
      %2146 = vmatprep.subr.bf16.mxu0 0
      %2147 = vmatpush1.bf16.msra.mxu0 0
      %2148 = vmatprep.subr.bf16.mxu0 0
      %2149 = vmatpush1.bf16.msra.mxu0 0
      %2150 = vmatprep.subr.bf16.mxu0 0
      %2151 = vmatpush1.bf16.msra.mxu0 0
      %2152 = vmatprep.subr.bf16.mxu0 0
      %2153 = vmatpush1.bf16.msra.mxu0 0
      %2154 = vmatprep.mubr.bf16.mxu0 0
      %2155 = vmatmul.mubr.bf16.gmra.mrb[0].mxu0 %v2105
      %v2156 = vpop.f32.mrb[0].mxu0
      %v2157 = vadd.f32 0.0, %v2156
      %v2158 = vpop.f32.mrb[0].mxu0
      %v2159 = vpop.f32.mrb[0].mxu0
      %v2160 = vadd.f32 0.0, %v2159
      %v2161 = vpop.f32.mrb[0].mxu0
      %2162 = vmatprep.mubr.bf16.mxu0 0
      %2163 = vmatmul.mubr.bf16.gmra.mrb[0].mxu0 %v2108
      %v2164 = vpop.f32.mrb[0].mxu0
      %v2165 = vadd.f32 0.0, %v2164
      %v2166 = vpop.f32.mrb[0].mxu0
      %v2167 = vpop.f32.mrb[0].mxu0
      %v2168 = vadd.f32 0.0, %v2167
      %v2169 = vpop.f32.mrb[0].mxu0
      %2170 = vmatprep.mubr.bf16.mxu0 0
      %2171 = vmatmul.mubr.bf16.gmra.mrb[0].mxu0 %v2111
      %v2172 = vpop.f32.mrb[0].mxu0
      %v2173 = vadd.f32 0.0, %v2172
      %v2174 = vpop.f32.mrb[0].mxu0
      %v2175 = vpop.f32.mrb[0].mxu0
      %v2176 = vadd.f32 0.0, %v2175
      %v2177 = vpop.f32.mrb[0].mxu0
      %2178 = vmatprep.mubr.bf16.mxu0 0
      %2179 = vmatmul.mubr.bf16.gmra.mrb[0].mxu0 %v2114
      %v2180 = vpop.f32.mrb[0].mxu0
      %v2181 = vadd.f32 0.0, %v2180
      %v2182 = vpop.f32.mrb[0].mxu0
      %v2183 = vpop.f32.mrb[0].mxu0
      %v2184 = vadd.f32 0.0, %v2183
      %v2185 = vpop.f32.mrb[0].mxu0
      %2186 = vmatprep.mubr.bf16.mxu0 0
      %2187 = vmatmul.mubr.bf16.gmra.mrb[0].mxu0 %v2117
      %v2188 = vpop.f32.mrb[0].mxu0
      %v2189 = vadd.f32 0.0, %v2188
      %v2190 = vpop.f32.mrb[0].mxu0
      %v2191 = vpop.f32.mrb[0].mxu0
      %v2192 = vadd.f32 0.0, %v2191
      %v2193 = vpop.f32.mrb[0].mxu0
      %2194 = vdwg.mxu0
      %v2195 = vadd.f32 %v2042, %v2157
      %v2196 = vadd.f32 %v2043, %v2160
      %v2197 = vadd.f32 %v2044, %v2165
      %v2198 = vadd.f32 %v2045, %v2168
      %v2199 = vadd.f32 %v2046, %v2173
      %v2200 = vadd.f32 %v2047, %v2176
      %v2201 = vadd.f32 %v2048, %v2181
      %v2202 = vadd.f32 %v2049, %v2184
      %v2203 = vadd.f32 %v2050, %v2189
      %v2204 = vadd.f32 %v2051, %v2192
      %v2205 = vld [vmem:[#allocation2 + $0x30] sm:$0x3]
      %s2206 = scalar_lea.vmem %s3, 16
      %v2207 = vld [vmem:[%s2206] sm:$0xf]
      %v2209 = vunpack.c.l.b16 %v2205
      %v2210 = vpack.c.b16 %v2209, %v2209
      %v2212 = vshrl.u32 %v2087, 16
      %v2214 = vrot.slane %v2212, 1
      %v2215 = vshll.u32 %v2087, 16
      %v2217 = vrot.slane %v2215, 2
      %v2218 = vor.u32 %v2214, %v2217
      %v2220 = vshrl.u32 %v2088, 16
      %v2222 = vrot.slane %v2220, 1
      %v2223 = vshll.u32 %v2088, 16
      %v2225 = vrot.slane %v2223, 2
      %v2226 = vor.u32 %v2222, %v2225
      %v2227 = vsel %vm389, %v2218, %v2226
      %v2229 = vshrl.u32 %v2089, 16
      %v2231 = vrot.slane %v2229, 1
      %v2232 = vshll.u32 %v2089, 16
      %v2234 = vrot.slane %v2232, 2
      %v2235 = vor.u32 %v2231, %v2234
      %v2236 = vsel %vm389, %v2226, %v2235
      %v2238 = vshrl.u32 %v2090, 16
      %v2240 = vrot.slane %v2238, 1
      %v2241 = vshll.u32 %v2090, 16
      %v2243 = vrot.slane %v2241, 2
      %v2244 = vor.u32 %v2240, %v2243
      %v2245 = vsel %vm389, %v2235, %v2244
      %v2247 = vshrl.u32 %v2091, 16
      %v2249 = vrot.slane %v2247, 1
      %v2250 = vshll.u32 %v2091, 16
      %v2252 = vrot.slane %v2250, 2
      %v2253 = vor.u32 %v2249, %v2252
      %v2254 = vsel %vm389, %v2244, %v2253
      %v2256 = vshrl.u32 %v2210, 16
      %v2258 = vrot.slane %v2256, 1
      %v2259 = vshll.u32 %v2210, 16
      %v2261 = vrot.slane %v2259, 2
      %v2262 = vor.u32 %v2258, %v2261
      %v2263 = vsel %vm389, %v2253, %v2262
      %v2265 = vsel %vm297, %v2227, 0
      %v2268 = vsel %vm297, %v2236, 0
      %v2271 = vsel %vm297, %v2245, 0
      %v2274 = vsel %vm297, %v2254, 0
      %v2277 = vsel %vm297, %v2263, 0
      %v2280 = vsel %vm520, %v2207, 0
      %2282 = vmatprep.subr.bf16.mxu0 0
      %2283 = vmatpush1.bf16.msra.mxu0 %v2280
      %2284 = vmatprep.subr.bf16.mxu0 0
      %2285 = vmatpush1.bf16.msra.mxu0 0
      %2286 = vmatprep.subr.bf16.mxu0 0
      %2287 = vmatpush1.bf16.msra.mxu0 0
      %2288 = vmatprep.subr.bf16.mxu0 0
      %2289 = vmatpush1.bf16.msra.mxu0 0
      %2290 = vmatprep.subr.bf16.mxu0 0
      %2291 = vmatpush1.bf16.msra.mxu0 0
      %2292 = vmatprep.subr.bf16.mxu0 0
      %2293 = vmatpush1.bf16.msra.mxu0 0
      %2294 = vmatprep.subr.bf16.mxu0 0
      %2295 = vmatpush1.bf16.msra.mxu0 0
      %2296 = vmatprep.subr.bf16.mxu0 0
      %2297 = vmatpush1.bf16.msra.mxu0 0
      %2298 = vmatprep.subr.bf16.mxu0 0
      %2299 = vmatpush1.bf16.msra.mxu0 0
      %2300 = vmatprep.subr.bf16.mxu0 0
      %2301 = vmatpush1.bf16.msra.mxu0 0
      %2302 = vmatprep.subr.bf16.mxu0 0
      %2303 = vmatpush1.bf16.msra.mxu0 0
      %2304 = vmatprep.subr.bf16.mxu0 0
      %2305 = vmatpush1.bf16.msra.mxu0 0
      %2306 = vmatprep.subr.bf16.mxu0 0
      %2307 = vmatpush1.bf16.msra.mxu0 0
      %2308 = vmatprep.subr.bf16.mxu0 0
      %2309 = vmatpush1.bf16.msra.mxu0 0
      %2310 = vmatprep.subr.bf16.mxu0 0
      %2311 = vmatpush1.bf16.msra.mxu0 0
      %2312 = vmatprep.subr.bf16.mxu0 0
      %2313 = vmatpush1.bf16.msra.mxu0 0
      %2314 = vmatprep.mubr.bf16.mxu0 0
      %2315 = vmatmul.mubr.bf16.gmra.mrb[0].mxu0 %v2265
      %v2316 = vpop.f32.mrb[0].mxu0
      %v2317 = vadd.f32 0.0, %v2316
      %v2318 = vpop.f32.mrb[0].mxu0
      %v2319 = vpop.f32.mrb[0].mxu0
      %v2320 = vadd.f32 0.0, %v2319
      %v2321 = vpop.f32.mrb[0].mxu0
      %2322 = vmatprep.mubr.bf16.mxu0 0
      %2323 = vmatmul.mubr.bf16.gmra.mrb[0].mxu0 %v2268
      %v2324 = vpop.f32.mrb[0].mxu0
      %v2325 = vadd.f32 0.0, %v2324
      %v2326 = vpop.f32.mrb[0].mxu0
      %v2327 = vpop.f32.mrb[0].mxu0
      %v2328 = vadd.f32 0.0, %v2327
      %v2329 = vpop.f32.mrb[0].mxu0
      %2330 = vmatprep.mubr.bf16.mxu0 0
      %2331 = vmatmul.mubr.bf16.gmra.mrb[0].mxu0 %v2271
      %v2332 = vpop.f32.mrb[0].mxu0
      %v2333 = vadd.f32 0.0, %v2332
      %v2334 = vpop.f32.mrb[0].mxu0
      %v2335 = vpop.f32.mrb[0].mxu0
      %v2336 = vadd.f32 0.0, %v2335
      %v2337 = vpop.f32.mrb[0].mxu0
      %2338 = vmatprep.mubr.bf16.mxu0 0
      %2339 = vmatmul.mubr.bf16.gmra.mrb[0].mxu0 %v2274
      %v2340 = vpop.f32.mrb[0].mxu0
      %v2341 = vadd.f32 0.0, %v2340
      %v2342 = vpop.f32.mrb[0].mxu0
      %v2343 = vpop.f32.mrb[0].mxu0
      %v2344 = vadd.f32 0.0, %v2343
      %v2345 = vpop.f32.mrb[0].mxu0
      %2346 = vmatprep.mubr.bf16.mxu0 0
      %2347 = vmatmul.mubr.bf16.gmra.mrb[0].mxu0 %v2277
      %v2348 = vpop.f32.mrb[0].mxu0
      %v2349 = vadd.f32 0.0, %v2348
      %v2350 = vpop.f32.mrb[0].mxu0
      %v2351 = vpop.f32.mrb[0].mxu0
      %v2352 = vadd.f32 0.0, %v2351
      %v2353 = vpop.f32.mrb[0].mxu0
      %2354 = vdwg.mxu0
      %v2355 = vadd.f32 %v2195, %v2317
      %v2356 = vadd.f32 %v2196, %v2320
      %v2357 = vadd.f32 %v2197, %v2325
      %v2358 = vadd.f32 %v2198, %v2328
      %v2359 = vadd.f32 %v2199, %v2333
      %v2360 = vadd.f32 %v2200, %v2336
      %v2361 = vadd.f32 %v2201, %v2341
      %v2362 = vadd.f32 %v2202, %v2344
      %v2363 = vadd.f32 %v2203, %v2349
      %v2364 = vadd.f32 %v2204, %v2352
      %v2365 = vld [vmem:[#allocation2 + $0x8] sm:$0xc]
      %s2366 = scalar_lea.vmem %s3, 20
      %v2367 = vld [vmem:[%s2366] sm:$0xf]
      %v2369 = vunpack.c.l.b16 %v2365
      %v2370 = vpack.c.b16 %v2077, %v2369
      %vm2371 = vcmask 1045504
      %v2372 = vrot.slane %v2370, 2
      %v2373 = vrot.slane %v2088, 2
      %v2374 = vsel %vm2371, %v2372, %v2373
      %v2375 = vrot.slane %v2089, 2
      %v2376 = vsel %vm2371, %v2373, %v2375
      %v2377 = vrot.slane %v2090, 2
      %v2378 = vsel %vm2371, %v2375, %v2377
      %v2379 = vrot.slane %v2091, 2
      %v2380 = vsel %vm2371, %v2377, %v2379
      %v2381 = vrot.slane %v2210, 2
      %v2382 = vsel %vm2371, %v2379, %v2381
      %v2384 = vsel %vm297, %v2374, 0
      %v2387 = vsel %vm297, %v2376, 0
      %v2390 = vsel %vm297, %v2378, 0
      %v2393 = vsel %vm297, %v2380, 0
      %v2396 = vsel %vm297, %v2382, 0
      %v2399 = vsel %vm520, %v2367, 0
      %2401 = vmatprep.subr.bf16.mxu0 0
      %2402 = vmatpush1.bf16.msra.mxu0 %v2399
      %2403 = vmatprep.subr.bf16.mxu0 0
      %2404 = vmatpush1.bf16.msra.mxu0 0
      %2405 = vmatprep.subr.bf16.mxu0 0
      %2406 = vmatpush1.bf16.msra.mxu0 0
      %2407 = vmatprep.subr.bf16.mxu0 0
      %2408 = vmatpush1.bf16.msra.mxu0 0
      %2409 = vmatprep.subr.bf16.mxu0 0
      %2410 = vmatpush1.bf16.msra.mxu0 0
      %2411 = vmatprep.subr.bf16.mxu0 0
      %2412 = vmatpush1.bf16.msra.mxu0 0
      %2413 = vmatprep.subr.bf16.mxu0 0
      %2414 = vmatpush1.bf16.msra.mxu0 0
      %2415 = vmatprep.subr.bf16.mxu0 0
      %2416 = vmatpush1.bf16.msra.mxu0 0
      %2417 = vmatprep.subr.bf16.mxu0 0
      %2418 = vmatpush1.bf16.msra.mxu0 0
      %2419 = vmatprep.subr.bf16.mxu0 0
      %2420 = vmatpush1.bf16.msra.mxu0 0
      %2421 = vmatprep.subr.bf16.mxu0 0
      %2422 = vmatpush1.bf16.msra.mxu0 0
      %2423 = vmatprep.subr.bf16.mxu0 0
      %2424 = vmatpush1.bf16.msra.mxu0 0
      %2425 = vmatprep.subr.bf16.mxu0 0
      %2426 = vmatpush1.bf16.msra.mxu0 0
      %2427 = vmatprep.subr.bf16.mxu0 0
      %2428 = vmatpush1.bf16.msra.mxu0 0
      %2429 = vmatprep.subr.bf16.mxu0 0
      %2430 = vmatpush1.bf16.msra.mxu0 0
      %2431 = vmatprep.subr.bf16.mxu0 0
      %2432 = vmatpush1.bf16.msra.mxu0 0
      %2433 = vmatprep.mubr.bf16.mxu0 0
      %2434 = vmatmul.mubr.bf16.gmra.mrb[0].mxu0 %v2384
      %v2435 = vpop.f32.mrb[0].mxu0
      %v2436 = vadd.f32 0.0, %v2435
      %v2437 = vpop.f32.mrb[0].mxu0
      %v2438 = vpop.f32.mrb[0].mxu0
      %v2439 = vadd.f32 0.0, %v2438
      %v2440 = vpop.f32.mrb[0].mxu0
      %2441 = vmatprep.mubr.bf16.mxu0 0
      %2442 = vmatmul.mubr.bf16.gmra.mrb[0].mxu0 %v2387
      %v2443 = vpop.f32.mrb[0].mxu0
      %v2444 = vadd.f32 0.0, %v2443
      %v2445 = vpop.f32.mrb[0].mxu0
      %v2446 = vpop.f32.mrb[0].mxu0
      %v2447 = vadd.f32 0.0, %v2446
      %v2448 = vpop.f32.mrb[0].mxu0
      %2449 = vmatprep.mubr.bf16.mxu0 0
      %2450 = vmatmul.mubr.bf16.gmra.mrb[0].mxu0 %v2390
      %v2451 = vpop.f32.mrb[0].mxu0
      %v2452 = vadd.f32 0.0, %v2451
      %v2453 = vpop.f32.mrb[0].mxu0
      %v2454 = vpop.f32.mrb[0].mxu0
      %v2455 = vadd.f32 0.0, %v2454
      %v2456 = vpop.f32.mrb[0].mxu0
      %2457 = vmatprep.mubr.bf16.mxu0 0
      %2458 = vmatmul.mubr.bf16.gmra.mrb[0].mxu0 %v2393
      %v2459 = vpop.f32.mrb[0].mxu0
      %v2460 = vadd.f32 0.0, %v2459
      %v2461 = vpop.f32.mrb[0].mxu0
      %v2462 = vpop.f32.mrb[0].mxu0
      %v2463 = vadd.f32 0.0, %v2462
      %v2464 = vpop.f32.mrb[0].mxu0
      %2465 = vmatprep.mubr.bf16.mxu0 0
      %2466 = vmatmul.mubr.bf16.gmra.mrb[0].mxu0 %v2396
      %v2467 = vpop.f32.mrb[0].mxu0
      %v2468 = vadd.f32 0.0, %v2467
      %v2469 = vpop.f32.mrb[0].mxu0
      %v2470 = vpop.f32.mrb[0].mxu0
      %v2471 = vadd.f32 0.0, %v2470
      %v2472 = vpop.f32.mrb[0].mxu0
      %2473 = vdwg.mxu0
      %v2474 = vadd.f32 %v2355, %v2436
      %v2475 = vadd.f32 %v2356, %v2439
      %v2476 = vadd.f32 %v2357, %v2444
      %v2477 = vadd.f32 %v2358, %v2447
      %v2478 = vadd.f32 %v2359, %v2452
      %v2479 = vadd.f32 %v2360, %v2455
      %v2480 = vadd.f32 %v2361, %v2460
      %v2481 = vadd.f32 %v2362, %v2463
      %v2482 = vadd.f32 %v2363, %v2468
      %v2483 = vadd.f32 %v2364, %v2471
      %v2484 = vld [vmem:[#allocation2 + $0xc] sm:$0xc]
      %v2485 = vld [vmem:[#allocation2 + $0x10] sm:$0xf]
      %v2486 = vld [vmem:[#allocation2 + $0x14] sm:$0xf]
      %v2487 = vld [vmem:[#allocation2 + $0x18] sm:$0xf]
      %v2488 = vld [vmem:[#allocation2 + $0x1c] sm:$0xf]
      %v2489 = vld [vmem:[#allocation2 + $0x20] sm:$0xf]
      %v2490 = vld [vmem:[#allocation2 + $0x24] sm:$0xf]
      %v2491 = vld [vmem:[#allocation2 + $0x28] sm:$0xf]
      %v2492 = vld [vmem:[#allocation2 + $0x2c] sm:$0xf]
      %v2493 = vld [vmem:[#allocation2 + $0x30] sm:$0xf]
      %v2494 = vld [vmem:[#allocation2 + $0x34] sm:$0x3]
      %s2495 = scalar_lea.vmem %s3, 24
      %v2496 = vld [vmem:[%s2495] sm:$0xf]
      %v2508 = vunpack.c.l.b16 %v2484
      %v2509 = vunpack.c.l.b16 %v2485
      %v2510 = vunpack.c.l.b16 %v2486
      %v2511 = vunpack.c.l.b16 %v2487
      %v2512 = vunpack.c.l.b16 %v2488
      %v2513 = vunpack.c.l.b16 %v2489
      %v2514 = vunpack.c.l.b16 %v2490
      %v2515 = vunpack.c.l.b16 %v2491
      %v2516 = vunpack.c.l.b16 %v2492
      %v2517 = vunpack.c.l.b16 %v2493
      %v2518 = vunpack.c.l.b16 %v2494
      %v2519 = vpack.c.b16 %v2509, %v2508
      %v2520 = vpack.c.b16 %v2511, %v2510
      %v2521 = vpack.c.b16 %v2513, %v2512
      %v2522 = vpack.c.b16 %v2515, %v2514
      %v2523 = vpack.c.b16 %v2517, %v2516
      %v2524 = vpack.c.b16 %v2518, %v2518
      %v2525 = vrot.slane %v2519, 2
      %v2526 = vrot.slane %v2520, 2
      %v2527 = vsel %vm2371, %v2525, %v2526
      %v2528 = vrot.slane %v2521, 2
      %v2529 = vsel %vm2371, %v2526, %v2528
      %v2530 = vrot.slane %v2522, 2
      %v2531 = vsel %vm2371, %v2528, %v2530
      %v2532 = vrot.slane %v2523, 2
      %v2533 = vsel %vm2371, %v2530, %v2532
      %v2534 = vrot.slane %v2524, 2
      %v2535 = vsel %vm2371, %v2532, %v2534
      %v2537 = vsel %vm297, %v2527, 0
      %v2540 = vsel %vm297, %v2529, 0
      %v2543 = vsel %vm297, %v2531, 0
      %v2546 = vsel %vm297, %v2533, 0
      %v2549 = vsel %vm297, %v2535, 0
      %v2552 = vsel %vm520, %v2496, 0
      %2554 = vmatprep.subr.bf16.mxu0 0
      %2555 = vmatpush1.bf16.msra.mxu0 %v2552
      %2556 = vmatprep.subr.bf16.mxu0 0
      %2557 = vmatpush1.bf16.msra.mxu0 0
      %2558 = vmatprep.subr.bf16.mxu0 0
      %2559 = vmatpush1.bf16.msra.mxu0 0
      %2560 = vmatprep.subr.bf16.mxu0 0
      %2561 = vmatpush1.bf16.msra.mxu0 0
      %2562 = vmatprep.subr.bf16.mxu0 0
      %2563 = vmatpush1.bf16.msra.mxu0 0
      %2564 = vmatprep.subr.bf16.mxu0 0
      %2565 = vmatpush1.bf16.msra.mxu0 0
      %2566 = vmatprep.subr.bf16.mxu0 0
      %2567 = vmatpush1.bf16.msra.mxu0 0
      %2568 = vmatprep.subr.bf16.mxu0 0
      %2569 = vmatpush1.bf16.msra.mxu0 0
      %2570 = vmatprep.subr.bf16.mxu0 0
      %2571 = vmatpush1.bf16.msra.mxu0 0
      %2572 = vmatprep.subr.bf16.mxu0 0
      %2573 = vmatpush1.bf16.msra.mxu0 0
      %2574 = vmatprep.subr.bf16.mxu0 0
      %2575 = vmatpush1.bf16.msra.mxu0 0
      %2576 = vmatprep.subr.bf16.mxu0 0
      %2577 = vmatpush1.bf16.msra.mxu0 0
      %2578 = vmatprep.subr.bf16.mxu0 0
      %2579 = vmatpush1.bf16.msra.mxu0 0
      %2580 = vmatprep.subr.bf16.mxu0 0
      %2581 = vmatpush1.bf16.msra.mxu0 0
      %2582 = vmatprep.subr.bf16.mxu0 0
      %2583 = vmatpush1.bf16.msra.mxu0 0
      %2584 = vmatprep.subr.bf16.mxu0 0
      %2585 = vmatpush1.bf16.msra.mxu0 0
      %2586 = vmatprep.mubr.bf16.mxu0 0
      %2587 = vmatmul.mubr.bf16.gmra.mrb[0].mxu0 %v2537
      %v2588 = vpop.f32.mrb[0].mxu0
      %v2589 = vadd.f32 0.0, %v2588
      %v2590 = vpop.f32.mrb[0].mxu0
      %v2591 = vpop.f32.mrb[0].mxu0
      %v2592 = vadd.f32 0.0, %v2591
      %v2593 = vpop.f32.mrb[0].mxu0
      %2594 = vmatprep.mubr.bf16.mxu0 0
      %2595 = vmatmul.mubr.bf16.gmra.mrb[0].mxu0 %v2540
      %v2596 = vpop.f32.mrb[0].mxu0
      %v2597 = vadd.f32 0.0, %v2596
      %v2598 = vpop.f32.mrb[0].mxu0
      %v2599 = vpop.f32.mrb[0].mxu0
      %v2600 = vadd.f32 0.0, %v2599
      %v2601 = vpop.f32.mrb[0].mxu0
      %2602 = vmatprep.mubr.bf16.mxu0 0
      %2603 = vmatmul.mubr.bf16.gmra.mrb[0].mxu0 %v2543
      %v2604 = vpop.f32.mrb[0].mxu0
      %v2605 = vadd.f32 0.0, %v2604
      %v2606 = vpop.f32.mrb[0].mxu0
      %v2607 = vpop.f32.mrb[0].mxu0
      %v2608 = vadd.f32 0.0, %v2607
      %v2609 = vpop.f32.mrb[0].mxu0
      %2610 = vmatprep.mubr.bf16.mxu0 0
      %2611 = vmatmul.mubr.bf16.gmra.mrb[0].mxu0 %v2546
      %v2612 = vpop.f32.mrb[0].mxu0
      %v2613 = vadd.f32 0.0, %v2612
      %v2614 = vpop.f32.mrb[0].mxu0
      %v2615 = vpop.f32.mrb[0].mxu0
      %v2616 = vadd.f32 0.0, %v2615
      %v2617 = vpop.f32.mrb[0].mxu0
      %2618 = vmatprep.mubr.bf16.mxu0 0
      %2619 = vmatmul.mubr.bf16.gmra.mrb[0].mxu0 %v2549
      %v2620 = vpop.f32.mrb[0].mxu0
      %v2621 = vadd.f32 0.0, %v2620
      %v2622 = vpop.f32.mrb[0].mxu0
      %v2623 = vpop.f32.mrb[0].mxu0
      %v2624 = vadd.f32 0.0, %v2623
      %v2625 = vpop.f32.mrb[0].mxu0
      %2626 = vdwg.mxu0
      %v2627 = vadd.f32 %v2474, %v2589
      %v2628 = vadd.f32 %v2475, %v2592
      %v2629 = vadd.f32 %v2476, %v2597
      %v2630 = vadd.f32 %v2477, %v2600
      %v2631 = vadd.f32 %v2478, %v2605
      %v2632 = vadd.f32 %v2479, %v2608
      %v2633 = vadd.f32 %v2480, %v2613
      %v2634 = vadd.f32 %v2481, %v2616
      %v2635 = vadd.f32 %v2482, %v2621
      %v2636 = vadd.f32 %v2483, %v2624
      %v2637 = vld [vmem:[#allocation2 + $0x34] sm:$0x7]
      %s2638 = scalar_lea.vmem %s3, 28
      %v2639 = vld [vmem:[%s2638] sm:$0xf]
      %v2641 = vunpack.c.l.b16 %v2637
      %v2642 = vpack.c.b16 %v2641, %v2641
      %v2644 = vshrl.u32 %v2519, 16
      %v2646 = vrot.slane %v2644, 2
      %v2647 = vshll.u32 %v2519, 16
      %v2649 = vrot.slane %v2647, 3
      %v2650 = vor.u32 %v2646, %v2649
      %v2652 = vshrl.u32 %v2520, 16
      %v2654 = vrot.slane %v2652, 2
      %v2655 = vshll.u32 %v2520, 16
      %v2657 = vrot.slane %v2655, 3
      %v2658 = vor.u32 %v2654, %v2657
      %v2659 = vsel %vm351, %v2650, %v2658
      %v2661 = vshrl.u32 %v2521, 16
      %v2663 = vrot.slane %v2661, 2
      %v2664 = vshll.u32 %v2521, 16
      %v2666 = vrot.slane %v2664, 3
      %v2667 = vor.u32 %v2663, %v2666
      %v2668 = vsel %vm351, %v2658, %v2667
      %v2670 = vshrl.u32 %v2522, 16
      %v2672 = vrot.slane %v2670, 2
      %v2673 = vshll.u32 %v2522, 16
      %v2675 = vrot.slane %v2673, 3
      %v2676 = vor.u32 %v2672, %v2675
      %v2677 = vsel %vm351, %v2667, %v2676
      %v2679 = vshrl.u32 %v2523, 16
      %v2681 = vrot.slane %v2679, 2
      %v2682 = vshll.u32 %v2523, 16
      %v2684 = vrot.slane %v2682, 3
      %v2685 = vor.u32 %v2681, %v2684
      %v2686 = vsel %vm351, %v2676, %v2685
      %v2688 = vshrl.u32 %v2642, 16
      %v2690 = vrot.slane %v2688, 2
      %v2691 = vshll.u32 %v2642, 16
      %v2693 = vrot.slane %v2691, 3
      %v2694 = vor.u32 %v2690, %v2693
      %v2695 = vsel %vm351, %v2685, %v2694
      %v2697 = vsel %vm297, %v2659, 0
      %v2700 = vsel %vm297, %v2668, 0
      %v2703 = vsel %vm297, %v2677, 0
      %v2706 = vsel %vm297, %v2686, 0
      %v2709 = vsel %vm297, %v2695, 0
      %v2712 = vsel %vm520, %v2639, 0
      %2714 = vmatprep.subr.bf16.mxu0 0
      %2715 = vmatpush1.bf16.msra.mxu0 %v2712
      %2716 = vmatprep.subr.bf16.mxu0 0
      %2717 = vmatpush1.bf16.msra.mxu0 0
      %2718 = vmatprep.subr.bf16.mxu0 0
      %2719 = vmatpush1.bf16.msra.mxu0 0
      %2720 = vmatprep.subr.bf16.mxu0 0
      %2721 = vmatpush1.bf16.msra.mxu0 0
      %2722 = vmatprep.subr.bf16.mxu0 0
      %2723 = vmatpush1.bf16.msra.mxu0 0
      %2724 = vmatprep.subr.bf16.mxu0 0
      %2725 = vmatpush1.bf16.msra.mxu0 0
      %2726 = vmatprep.subr.bf16.mxu0 0
      %2727 = vmatpush1.bf16.msra.mxu0 0
      %2728 = vmatprep.subr.bf16.mxu0 0
      %2729 = vmatpush1.bf16.msra.mxu0 0
      %2730 = vmatprep.subr.bf16.mxu0 0
      %2731 = vmatpush1.bf16.msra.mxu0 0
      %2732 = vmatprep.subr.bf16.mxu0 0
      %2733 = vmatpush1.bf16.msra.mxu0 0
      %2734 = vmatprep.subr.bf16.mxu0 0
      %2735 = vmatpush1.bf16.msra.mxu0 0
      %2736 = vmatprep.subr.bf16.mxu0 0
      %2737 = vmatpush1.bf16.msra.mxu0 0
      %2738 = vmatprep.subr.bf16.mxu0 0
      %2739 = vmatpush1.bf16.msra.mxu0 0
      %2740 = vmatprep.subr.bf16.mxu0 0
      %2741 = vmatpush1.bf16.msra.mxu0 0
      %2742 = vmatprep.subr.bf16.mxu0 0
      %2743 = vmatpush1.bf16.msra.mxu0 0
      %2744 = vmatprep.subr.bf16.mxu0 0
      %2745 = vmatpush1.bf16.msra.mxu0 0
      %2746 = vmatprep.mubr.bf16.mxu0 0
      %2747 = vmatmul.mubr.bf16.gmra.mrb[0].mxu0 %v2697
      %v2748 = vpop.f32.mrb[0].mxu0
      %v2749 = vadd.f32 0.0, %v2748
      %v2750 = vpop.f32.mrb[0].mxu0
      %v2751 = vpop.f32.mrb[0].mxu0
      %v2752 = vadd.f32 0.0, %v2751
      %v2753 = vpop.f32.mrb[0].mxu0
      %2754 = vmatprep.mubr.bf16.mxu0 0
      %2755 = vmatmul.mubr.bf16.gmra.mrb[0].mxu0 %v2700
      %v2756 = vpop.f32.mrb[0].mxu0
      %v2757 = vadd.f32 0.0, %v2756
      %v2758 = vpop.f32.mrb[0].mxu0
      %v2759 = vpop.f32.mrb[0].mxu0
      %v2760 = vadd.f32 0.0, %v2759
      %v2761 = vpop.f32.mrb[0].mxu0
      %2762 = vmatprep.mubr.bf16.mxu0 0
      %2763 = vmatmul.mubr.bf16.gmra.mrb[0].mxu0 %v2703
      %v2764 = vpop.f32.mrb[0].mxu0
      %v2765 = vadd.f32 0.0, %v2764
      %v2766 = vpop.f32.mrb[0].mxu0
      %v2767 = vpop.f32.mrb[0].mxu0
      %v2768 = vadd.f32 0.0, %v2767
      %v2769 = vpop.f32.mrb[0].mxu0
      %2770 = vmatprep.mubr.bf16.mxu0 0
      %2771 = vmatmul.mubr.bf16.gmra.mrb[0].mxu0 %v2706
      %v2772 = vpop.f32.mrb[0].mxu0
      %v2773 = vadd.f32 0.0, %v2772
      %v2774 = vpop.f32.mrb[0].mxu0
      %v2775 = vpop.f32.mrb[0].mxu0
      %v2776 = vadd.f32 0.0, %v2775
      %v2777 = vpop.f32.mrb[0].mxu0
      %2778 = vmatprep.mubr.bf16.mxu0 0
      %2779 = vmatmul.mubr.bf16.gmra.mrb[0].mxu0 %v2709
      %v2780 = vpop.f32.mrb[0].mxu0
      %v2781 = vadd.f32 0.0, %v2780
      %v2782 = vpop.f32.mrb[0].mxu0
      %v2783 = vpop.f32.mrb[0].mxu0
      %v2784 = vadd.f32 0.0, %v2783
      %v2785 = vpop.f32.mrb[0].mxu0
      %2786 = vdwg.mxu0
      %v2787 = vadd.f32 %v2627, %v2749
      %v2788 = vadd.f32 %v2628, %v2752
      %v2789 = vadd.f32 %v2629, %v2757
      %v2790 = vadd.f32 %v2630, %v2760
      %v2791 = vadd.f32 %v2631, %v2765
      %v2792 = vadd.f32 %v2632, %v2768
      %v2793 = vadd.f32 %v2633, %v2773
      %v2794 = vadd.f32 %v2634, %v2776
      %v2795 = vadd.f32 %v2635, %v2781
      %v2796 = vadd.f32 %v2636, %v2784
      %v2797 = vld [vmem:[#allocation2 + $0xc] sm:$0x8]
      %s2798 = scalar_lea.vmem %s3, 32
      %v2799 = vld [vmem:[%s2798] sm:$0xf]
      %v2801 = vunpack.c.l.b16 %v2797
      %v2802 = vpack.c.b16 %v2509, %v2801
      %vm2803 = vcmask 1044480
      %v2804 = vrot.slane %v2802, 3
      %v2805 = vrot.slane %v2520, 3
      %v2806 = vsel %vm2803, %v2804, %v2805
      %v2807 = vrot.slane %v2521, 3
      %v2808 = vsel %vm2803, %v2805, %v2807
      %v2809 = vrot.slane %v2522, 3
      %v2810 = vsel %vm2803, %v2807, %v2809
      %v2811 = vrot.slane %v2523, 3
      %v2812 = vsel %vm2803, %v2809, %v2811
      %v2813 = vrot.slane %v2642, 3
      %v2814 = vsel %vm2803, %v2811, %v2813
      %v2816 = vsel %vm297, %v2806, 0
      %v2819 = vsel %vm297, %v2808, 0
      %v2822 = vsel %vm297, %v2810, 0
      %v2825 = vsel %vm297, %v2812, 0
      %v2828 = vsel %vm297, %v2814, 0
      %v2831 = vsel %vm520, %v2799, 0
      %2833 = vmatprep.subr.bf16.mxu0 0
      %2834 = vmatpush1.bf16.msra.mxu0 %v2831
      %2835 = vmatprep.subr.bf16.mxu0 0
      %2836 = vmatpush1.bf16.msra.mxu0 0
      %2837 = vmatprep.subr.bf16.mxu0 0
      %2838 = vmatpush1.bf16.msra.mxu0 0
      %2839 = vmatprep.subr.bf16.mxu0 0
      %2840 = vmatpush1.bf16.msra.mxu0 0
      %2841 = vmatprep.subr.bf16.mxu0 0
      %2842 = vmatpush1.bf16.msra.mxu0 0
      %2843 = vmatprep.subr.bf16.mxu0 0
      %2844 = vmatpush1.bf16.msra.mxu0 0
      %2845 = vmatprep.subr.bf16.mxu0 0
      %2846 = vmatpush1.bf16.msra.mxu0 0
      %2847 = vmatprep.subr.bf16.mxu0 0
      %2848 = vmatpush1.bf16.msra.mxu0 0
      %2849 = vmatprep.subr.bf16.mxu0 0
      %2850 = vmatpush1.bf16.msra.mxu0 0
      %2851 = vmatprep.subr.bf16.mxu0 0
      %2852 = vmatpush1.bf16.msra.mxu0 0
      %2853 = vmatprep.subr.bf16.mxu0 0
      %2854 = vmatpush1.bf16.msra.mxu0 0
      %2855 = vmatprep.subr.bf16.mxu0 0
      %2856 = vmatpush1.bf16.msra.mxu0 0
      %2857 = vmatprep.subr.bf16.mxu0 0
      %2858 = vmatpush1.bf16.msra.mxu0 0
      %2859 = vmatprep.subr.bf16.mxu0 0
      %2860 = vmatpush1.bf16.msra.mxu0 0
      %2861 = vmatprep.subr.bf16.mxu0 0
      %2862 = vmatpush1.bf16.msra.mxu0 0
      %2863 = vmatprep.subr.bf16.mxu0 0
      %2864 = vmatpush1.bf16.msra.mxu0 0
      %2865 = vmatprep.mubr.bf16.mxu0 0
      %2866 = vmatmul.mubr.bf16.gmra.mrb[0].mxu0 %v2816
      %v2867 = vpop.f32.mrb[0].mxu0
      %v2868 = vadd.f32 0.0, %v2867
      %v2869 = vpop.f32.mrb[0].mxu0
      %v2870 = vpop.f32.mrb[0].mxu0
      %v2871 = vadd.f32 0.0, %v2870
      %v2872 = vpop.f32.mrb[0].mxu0
      %2873 = vmatprep.mubr.bf16.mxu0 0
      %2874 = vmatmul.mubr.bf16.gmra.mrb[0].mxu0 %v2819
      %v2875 = vpop.f32.mrb[0].mxu0
      %v2876 = vadd.f32 0.0, %v2875
      %v2877 = vpop.f32.mrb[0].mxu0
      %v2878 = vpop.f32.mrb[0].mxu0
      %v2879 = vadd.f32 0.0, %v2878
      %v2880 = vpop.f32.mrb[0].mxu0
      %2881 = vmatprep.mubr.bf16.mxu0 0
      %2882 = vmatmul.mubr.bf16.gmra.mrb[0].mxu0 %v2822
      %v2883 = vpop.f32.mrb[0].mxu0
      %v2884 = vadd.f32 0.0, %v2883
      %v2885 = vpop.f32.mrb[0].mxu0
      %v2886 = vpop.f32.mrb[0].mxu0
      %v2887 = vadd.f32 0.0, %v2886
      %v2888 = vpop.f32.mrb[0].mxu0
      %2889 = vmatprep.mubr.bf16.mxu0 0
      %2890 = vmatmul.mubr.bf16.gmra.mrb[0].mxu0 %v2825
      %v2891 = vpop.f32.mrb[0].mxu0
      %v2892 = vadd.f32 0.0, %v2891
      %v2893 = vpop.f32.mrb[0].mxu0
      %v2894 = vpop.f32.mrb[0].mxu0
      %v2895 = vadd.f32 0.0, %v2894
      %v2896 = vpop.f32.mrb[0].mxu0
      %2897 = vmatprep.mubr.bf16.mxu0 0
      %2898 = vmatmul.mubr.bf16.gmra.mrb[0].mxu0 %v2828
      %v2899 = vpop.f32.mrb[0].mxu0
      %v2900 = vadd.f32 0.0, %v2899
      %v2901 = vpop.f32.mrb[0].mxu0
      %v2902 = vpop.f32.mrb[0].mxu0
      %v2903 = vadd.f32 0.0, %v2902
      %v2904 = vpop.f32.mrb[0].mxu0
      %2905 = vdwg.mxu0
      %v2906 = vadd.f32 %v2787, %v2868
      %v2907 = vadd.f32 %v2788, %v2871
      %v2908 = vadd.f32 %v2789, %v2876
      %v2909 = vadd.f32 %v2790, %v2879
      %v2910 = vadd.f32 %v2791, %v2884
      %v2911 = vadd.f32 %v2792, %v2887
      %v2912 = vadd.f32 %v2793, %v2892
      %v2913 = vadd.f32 %v2794, %v2895
      %v2914 = vadd.f32 %v2795, %v2900
      %v2915 = vadd.f32 %v2796, %v2903
      %v2916 = vld [vmem:[%s4] sm:$0x1]
      %v2918 = vlaneseq
      %v2919 = vshrl.u32 %v2918, 7
      %v2920 = vsub.s32 0, %v2919
      %v2921 = vrot.slane %v2916, %v2920
      %v2923 = vadd.f32 %v2906, %v2921
      %v2924 = vadd.f32 %v2907, %v2921
      %v2925 = vadd.f32 %v2908, %v2921
      %v2926 = vadd.f32 %v2909, %v2921
      %v2927 = vadd.f32 %v2910, %v2921
      %v2928 = vadd.f32 %v2911, %v2921
      %v2929 = vadd.f32 %v2912, %v2921
      %v2930 = vadd.f32 %v2913, %v2921
      %v2931 = vadd.f32 %v2914, %v2921
      %v2932 = vadd.f32 %v2915, %v2921
      %vm2933 = vcmp.ge.f32.partialorder %v2923, 0.0
      %vm2934 = vcmp.ge.f32.partialorder %v2924, 0.0
      %vm2935 = vcmp.ge.f32.partialorder %v2925, 0.0
      %vm2936 = vcmp.ge.f32.partialorder %v2926, 0.0
      %vm2937 = vcmp.ge.f32.partialorder %v2927, 0.0
      %vm2938 = vcmp.ge.f32.partialorder %v2928, 0.0
      %vm2939 = vcmp.ge.f32.partialorder %v2929, 0.0
      %vm2940 = vcmp.ge.f32.partialorder %v2930, 0.0
      %vm2941 = vcmp.ge.f32.partialorder %v2931, 0.0
      %vm2942 = vcmp.ge.f32.partialorder %v2932, 0.0
      %v2943 = vmul.f32 %v2923, 0.2
      %v2944 = vmul.f32 %v2924, 0.2
      %v2945 = vmul.f32 %v2925, 0.2
      %v2946 = vmul.f32 %v2926, 0.2
      %v2947 = vmul.f32 %v2927, 0.2
      %v2948 = vmul.f32 %v2928, 0.2
      %v2949 = vmul.f32 %v2929, 0.2
      %v2950 = vmul.f32 %v2930, 0.2
      %v2951 = vmul.f32 %v2931, 0.2
      %v2952 = vmul.f32 %v2932, 0.2
      %v2953 = vsel %vm2933, %v2923, %v2943
      %v2954 = vsel %vm2934, %v2924, %v2944
      %v2955 = vsel %vm2935, %v2925, %v2945
      %v2956 = vsel %vm2936, %v2926, %v2946
      %v2957 = vsel %vm2937, %v2927, %v2947
      %v2958 = vsel %vm2938, %v2928, %v2948
      %v2959 = vsel %vm2939, %v2929, %v2949
      %v2960 = vsel %vm2940, %v2930, %v2950
      %v2961 = vsel %vm2941, %v2931, %v2951
      %v2962 = vsel %vm2942, %v2932, %v2952
      %v2963 = vld [vmem:[%s273 + $0x4] sm:$0xf]
      %v2964 = vld [vmem:[%s273 + $0x8] sm:$0x1]
      %v2965 = vld [vmem:[%s5] sm:$0xf]
      %v2968 = vunpack.c.l.b16 %v2963
      %v2969 = vunpack.c.l.b16 %v2964
      %v2970 = vpack.c.b16 %v2969, %v2968
      %v2972 = vshrl.u32 %v2970, 16
      %v2974 = vshll.u32 %v2970, 16
      %v2976 = vrot.slane %v2974, 1
      %v2977 = vor.u32 %v2972, %v2976
      %v2979 = vsel %vm297, %v2977, 0
      %v2982 = vsel %vm520, %v2965, 0
      %2984 = vmatprep.subr.bf16.mxu0 0
      %2985 = vmatpush1.bf16.msra.mxu0 %v2982
      %2986 = vmatprep.subr.bf16.mxu0 0
      %2987 = vmatpush1.bf16.msra.mxu0 0
      %2988 = vmatprep.subr.bf16.mxu0 0
      %2989 = vmatpush1.bf16.msra.mxu0 0
      %2990 = vmatprep.subr.bf16.mxu0 0
      %2991 = vmatpush1.bf16.msra.mxu0 0
      %2992 = vmatprep.subr.bf16.mxu0 0
      %2993 = vmatpush1.bf16.msra.mxu0 0
      %2994 = vmatprep.subr.bf16.mxu0 0
      %2995 = vmatpush1.bf16.msra.mxu0 0
      %2996 = vmatprep.subr.bf16.mxu0 0
      %2997 = vmatpush1.bf16.msra.mxu0 0
      %2998 = vmatprep.subr.bf16.mxu0 0
      %2999 = vmatpush1.bf16.msra.mxu0 0
      %3000 = vmatprep.subr.bf16.mxu0 0
      %3001 = vmatpush1.bf16.msra.mxu0 0
      %3002 = vmatprep.subr.bf16.mxu0 0
      %3003 = vmatpush1.bf16.msra.mxu0 0
      %3004 = vmatprep.subr.bf16.mxu0 0
      %3005 = vmatpush1.bf16.msra.mxu0 0
      %3006 = vmatprep.subr.bf16.mxu0 0
      %3007 = vmatpush1.bf16.msra.mxu0 0
      %3008 = vmatprep.subr.bf16.mxu0 0
      %3009 = vmatpush1.bf16.msra.mxu0 0
      %3010 = vmatprep.subr.bf16.mxu0 0
      %3011 = vmatpush1.bf16.msra.mxu0 0
      %3012 = vmatprep.subr.bf16.mxu0 0
      %3013 = vmatpush1.bf16.msra.mxu0 0
      %3014 = vmatprep.subr.bf16.mxu0 0
      %3015 = vmatpush1.bf16.msra.mxu0 0
      %3016 = vmatprep.mubr.bf16.mxu0 0
      %3017 = vmatmul.mubr.bf16.gmra.mrb[0].mxu0 %v2979
      %v3018 = vpop.f32.mrb[0].mxu0
      %v3019 = vadd.f32 0.0, %v3018
      %v3020 = vpop.f32.mrb[0].mxu0
      %v3021 = vpop.f32.mrb[0].mxu0
      %v3022 = vpop.f32.mrb[0].mxu0
      %3023 = vdwg.mxu0
      %v3024 = vadd.f32 %v2953, %v3019
      %v3025 = vld [vmem:[%s6] sm:$0x1]
      %v3027 = vlaneseq
      %v3028 = vshrl.u32 %v3027, 7
      %v3029 = vsub.s32 0, %v3028
      %v3030 = vrot.slane %v3025, %v3029
      %v3032 = vadd.f32 %v3024, %v3030
      %3033 = vst.msk [vmem:[%s278] sm:$0xff] %vm297, %v3032
      %v3034 = vld [vmem:[%s273 + $0xc] sm:$0xe]
      %v3035 = vld [vmem:[%s273 + $0x10] sm:$0x3]
      %v3036 = vld [vmem:[%s5] sm:$0xf]
      %v3039 = vunpack.c.l.b16 %v3034
      %v3040 = vunpack.c.l.b16 %v3035
      %v3041 = vpack.c.b16 %v3040, %v3039
      %v3043 = vshrl.u32 %v3041, 16
      %v3045 = vrot.slane %v3043, 1
      %v3046 = vshll.u32 %v3041, 16
      %v3048 = vrot.slane %v3046, 2
      %v3049 = vor.u32 %v3045, %v3048
      %v3051 = vsel %vm297, %v3049, 0
      %v3054 = vsel %vm520, %v3036, 0
      %3056 = vmatprep.subr.bf16.mxu0 0
      %3057 = vmatpush1.bf16.msra.mxu0 %v3054
      %3058 = vmatprep.subr.bf16.mxu0 0
      %3059 = vmatpush1.bf16.msra.mxu0 0
      %3060 = vmatprep.subr.bf16.mxu0 0
      %3061 = vmatpush1.bf16.msra.mxu0 0
      %3062 = vmatprep.subr.bf16.mxu0 0
      %3063 = vmatpush1.bf16.msra.mxu0 0
      %3064 = vmatprep.subr.bf16.mxu0 0
      %3065 = vmatpush1.bf16.msra.mxu0 0
      %3066 = vmatprep.subr.bf16.mxu0 0
      %3067 = vmatpush1.bf16.msra.mxu0 0
      %3068 = vmatprep.subr.bf16.mxu0 0
      %3069 = vmatpush1.bf16.msra.mxu0 0
      %3070 = vmatprep.subr.bf16.mxu0 0
      %3071 = vmatpush1.bf16.msra.mxu0 0
      %3072 = vmatprep.subr.bf16.mxu0 0
      %3073 = vmatpush1.bf16.msra.mxu0 0
      %3074 = vmatprep.subr.bf16.mxu0 0
      %3075 = vmatpush1.bf16.msra.mxu0 0
      %3076 = vmatprep.subr.bf16.mxu0 0
      %3077 = vmatpush1.bf16.msra.mxu0 0
      %3078 = vmatprep.subr.bf16.mxu0 0
      %3079 = vmatpush1.bf16.msra.mxu0 0
      %3080 = vmatprep.subr.bf16.mxu0 0
      %3081 = vmatpush1.bf16.msra.mxu0 0
      %3082 = vmatprep.subr.bf16.mxu0 0
      %3083 = vmatpush1.bf16.msra.mxu0 0
      %3084 = vmatprep.subr.bf16.mxu0 0
      %3085 = vmatpush1.bf16.msra.mxu0 0
      %3086 = vmatprep.subr.bf16.mxu0 0
      %3087 = vmatpush1.bf16.msra.mxu0 0
      %3088 = vmatprep.mubr.bf16.mxu0 0
      %3089 = vmatmul.mubr.bf16.gmra.mrb[0].mxu0 %v3051
      %v3090 = vpop.f32.mrb[0].mxu0
      %v3091 = vadd.f32 0.0, %v3090
      %v3092 = vpop.f32.mrb[0].mxu0
      %v3093 = vpop.f32.mrb[0].mxu0
      %v3094 = vpop.f32.mrb[0].mxu0
      %3095 = vdwg.mxu0
      %v3097 = vrot.slane %v3091, 6
      %v3099 = vadd.f32 %v2954, %v3097
      %v3100 = vadd.f32 %v2955, %v3097
      %v3101 = vld [vmem:[%s6] sm:$0x1]
      %v3103 = vlaneseq
      %v3104 = vshrl.u32 %v3103, 7
      %v3105 = vsub.s32 0, %v3104
      %v3106 = vrot.slane %v3101, %v3105
      %v3108 = vadd.f32 %v3099, %v3106
      %v3109 = vadd.f32 %v3100, %v3106
      %s3110 = scalar_lea.vmem %s278, 8
      %vm3111 = vcmask 64514
      %3112 = vst.msk [vmem:[%s3110 - $0x2] sm:$0xfc] %vm3111, %v3108
      %3113 = vst.msk [vmem:[%s3110 + $0x6] sm:$0x3] %vm295, %v3109
      %v3114 = vld [vmem:[%s273 + $0x14] sm:$0xc]
      %v3115 = vld [vmem:[%s273 + $0x18] sm:$0x7]
      %v3116 = vld [vmem:[%s5] sm:$0xf]
      %v3119 = vunpack.c.l.b16 %v3114
      %v3120 = vunpack.c.l.b16 %v3115
      %v3121 = vpack.c.b16 %v3120, %v3119
      %v3123 = vshrl.u32 %v3121, 16
      %v3125 = vrot.slane %v3123, 2
      %v3126 = vshll.u32 %v3121, 16
      %v3128 = vrot.slane %v3126, 3
      %v3129 = vor.u32 %v3125, %v3128
      %v3131 = vsel %vm297, %v3129, 0
      %v3134 = vsel %vm520, %v3116, 0
      %3136 = vmatprep.subr.bf16.mxu0 0
      %3137 = vmatpush1.bf16.msra.mxu0 %v3134
      %3138 = vmatprep.subr.bf16.mxu0 0
      %3139 = vmatpush1.bf16.msra.mxu0 0
      %3140 = vmatprep.subr.bf16.mxu0 0
      %3141 = vmatpush1.bf16.msra.mxu0 0
      %3142 = vmatprep.subr.bf16.mxu0 0
      %3143 = vmatpush1.bf16.msra.mxu0 0
      %3144 = vmatprep.subr.bf16.mxu0 0
      %3145 = vmatpush1.bf16.msra.mxu0 0
      %3146 = vmatprep.subr.bf16.mxu0 0
      %3147 = vmatpush1.bf16.msra.mxu0 0
      %3148 = vmatprep.subr.bf16.mxu0 0
      %3149 = vmatpush1.bf16.msra.mxu0 0
      %3150 = vmatprep.subr.bf16.mxu0 0
      %3151 = vmatpush1.bf16.msra.mxu0 0
      %3152 = vmatprep.subr.bf16.mxu0 0
      %3153 = vmatpush1.bf16.msra.mxu0 0
      %3154 = vmatprep.subr.bf16.mxu0 0
      %3155 = vmatpush1.bf16.msra.mxu0 0
      %3156 = vmatprep.subr.bf16.mxu0 0
      %3157 = vmatpush1.bf16.msra.mxu0 0
      %3158 = vmatprep.subr.bf16.mxu0 0
      %3159 = vmatpush1.bf16.msra.mxu0 0
      %3160 = vmatprep.subr.bf16.mxu0 0
      %3161 = vmatpush1.bf16.msra.mxu0 0
      %3162 = vmatprep.subr.bf16.mxu0 0
      %3163 = vmatpush1.bf16.msra.mxu0 0
      %3164 = vmatprep.subr.bf16.mxu0 0
      %3165 = vmatpush1.bf16.msra.mxu0 0
      %3166 = vmatprep.subr.bf16.mxu0 0
      %3167 = vmatpush1.bf16.msra.mxu0 0
      %3168 = vmatprep.mubr.bf16.mxu0 0
      %3169 = vmatmul.mubr.bf16.gmra.mrb[0].mxu0 %v3131
      %v3170 = vpop.f32.mrb[0].mxu0
      %v3171 = vadd.f32 0.0, %v3170
      %v3172 = vpop.f32.mrb[0].mxu0
      %v3173 = vpop.f32.mrb[0].mxu0
      %v3174 = vpop.f32.mrb[0].mxu0
      %3175 = vdwg.mxu0
      %v3177 = vrot.slane %v3171, 4
      %v3179 = vadd.f32 %v2955, %v3177
      %v3180 = vadd.f32 %v2956, %v3177
      %v3181 = vld [vmem:[%s6] sm:$0x1]
      %v3183 = vlaneseq
      %v3184 = vshrl.u32 %v3183, 7
      %v3185 = vsub.s32 0, %v3184
      %v3186 = vrot.slane %v3181, %v3185
      %v3188 = vadd.f32 %v3179, %v3186
      %v3189 = vadd.f32 %v3180, %v3186
      %s3190 = scalar_lea.vmem %s278, 16
      %vm3191 = vcmask 64516
      %3192 = vst.msk [vmem:[%s3190 - $0x4] sm:$0xf0] %vm3191, %v3188
      %3193 = vst.msk [vmem:[%s3190 + $0x4] sm:$0xf] %vm280, %v3189
      %v3194 = vld [vmem:[%s273 + $0x1c] sm:$0x8]
      %v3195 = vld [vmem:[%s273 + $0x20] sm:$0xf]
      %v3196 = vld [vmem:[%s5] sm:$0xf]
      %v3199 = vunpack.c.l.b16 %v3194
      %v3200 = vunpack.c.l.b16 %v3195
      %v3201 = vpack.c.b16 %v3200, %v3199
      %v3203 = vshrl.u32 %v3201, 16
      %v3205 = vrot.slane %v3203, 3
      %v3206 = vshll.u32 %v3201, 16
      %v3208 = vrot.slane %v3206, 4
      %v3209 = vor.u32 %v3205, %v3208
      %v3211 = vsel %vm297, %v3209, 0
      %v3214 = vsel %vm520, %v3196, 0
      %3216 = vmatprep.subr.bf16.mxu0 0
      %3217 = vmatpush1.bf16.msra.mxu0 %v3214
      %3218 = vmatprep.subr.bf16.mxu0 0
      %3219 = vmatpush1.bf16.msra.mxu0 0
      %3220 = vmatprep.subr.bf16.mxu0 0
      %3221 = vmatpush1.bf16.msra.mxu0 0
      %3222 = vmatprep.subr.bf16.mxu0 0
      %3223 = vmatpush1.bf16.msra.mxu0 0
      %3224 = vmatprep.subr.bf16.mxu0 0
      %3225 = vmatpush1.bf16.msra.mxu0 0
      %3226 = vmatprep.subr.bf16.mxu0 0
      %3227 = vmatpush1.bf16.msra.mxu0 0
      %3228 = vmatprep.subr.bf16.mxu0 0
      %3229 = vmatpush1.bf16.msra.mxu0 0
      %3230 = vmatprep.subr.bf16.mxu0 0
      %3231 = vmatpush1.bf16.msra.mxu0 0
      %3232 = vmatprep.subr.bf16.mxu0 0
      %3233 = vmatpush1.bf16.msra.mxu0 0
      %3234 = vmatprep.subr.bf16.mxu0 0
      %3235 = vmatpush1.bf16.msra.mxu0 0
      %3236 = vmatprep.subr.bf16.mxu0 0
      %3237 = vmatpush1.bf16.msra.mxu0 0
      %3238 = vmatprep.subr.bf16.mxu0 0
      %3239 = vmatpush1.bf16.msra.mxu0 0
      %3240 = vmatprep.subr.bf16.mxu0 0
      %3241 = vmatpush1.bf16.msra.mxu0 0
      %3242 = vmatprep.subr.bf16.mxu0 0
      %3243 = vmatpush1.bf16.msra.mxu0 0
      %3244 = vmatprep.subr.bf16.mxu0 0
      %3245 = vmatpush1.bf16.msra.mxu0 0
      %3246 = vmatprep.subr.bf16.mxu0 0
      %3247 = vmatpush1.bf16.msra.mxu0 0
      %3248 = vmatprep.mubr.bf16.mxu0 0
      %3249 = vmatmul.mubr.bf16.gmra.mrb[0].mxu0 %v3211
      %v3250 = vpop.f32.mrb[0].mxu0
      %v3251 = vadd.f32 0.0, %v3250
      %v3252 = vpop.f32.mrb[0].mxu0
      %v3253 = vpop.f32.mrb[0].mxu0
      %v3254 = vpop.f32.mrb[0].mxu0
      %3255 = vdwg.mxu0
      %v3257 = vrot.slane %v3251, 2
      %v3259 = vadd.f32 %v2956, %v3257
      %v3260 = vadd.f32 %v2957, %v3257
      %v3261 = vld [vmem:[%s6] sm:$0x1]
      %v3263 = vlaneseq
      %v3264 = vshrl.u32 %v3263, 7
      %v3265 = vsub.s32 0, %v3264
      %v3266 = vrot.slane %v3261, %v3265
      %v3268 = vadd.f32 %v3259, %v3266
      %v3269 = vadd.f32 %v3260, %v3266
      %s3270 = scalar_lea.vmem %s278, 24
      %vm3271 = vcmask 64518
      %3272 = vst.msk [vmem:[%s3270 - $0x6] sm:$0xc0] %vm3271, %v3268
      %vm3273 = vcmask 62464
      %3274 = vst.msk [vmem:[%s3270 + $0x2] sm:$0x3f] %vm3273, %v3269
      %v3275 = vld [vmem:[%s273 + $0x28] sm:$0xf]
      %v3276 = vld [vmem:[%s273 + $0x2c] sm:$0x1]
      %v3277 = vld [vmem:[%s5] sm:$0xf]
      %v3280 = vunpack.c.l.b16 %v3275
      %v3281 = vunpack.c.l.b16 %v3276
      %v3282 = vpack.c.b16 %v3281, %v3280
      %v3284 = vshrl.u32 %v3282, 16
      %v3286 = vshll.u32 %v3282, 16
      %v3288 = vrot.slane %v3286, 1
      %v3289 = vor.u32 %v3284, %v3288
      %v3291 = vsel %vm297, %v3289, 0
      %v3294 = vsel %vm520, %v3277, 0
      %3296 = vmatprep.subr.bf16.mxu0 0
      %3297 = vmatpush1.bf16.msra.mxu0 %v3294
      %3298 = vmatprep.subr.bf16.mxu0 0
      %3299 = vmatpush1.bf16.msra.mxu0 0
      %3300 = vmatprep.subr.bf16.mxu0 0
      %3301 = vmatpush1.bf16.msra.mxu0 0
      %3302 = vmatprep.subr.bf16.mxu0 0
      %3303 = vmatpush1.bf16.msra.mxu0 0
      %3304 = vmatprep.subr.bf16.mxu0 0
      %3305 = vmatpush1.bf16.msra.mxu0 0
      %3306 = vmatprep.subr.bf16.mxu0 0
      %3307 = vmatpush1.bf16.msra.mxu0 0
      %3308 = vmatprep.subr.bf16.mxu0 0
      %3309 = vmatpush1.bf16.msra.mxu0 0
      %3310 = vmatprep.subr.bf16.mxu0 0
      %3311 = vmatpush1.bf16.msra.mxu0 0
      %3312 = vmatprep.subr.bf16.mxu0 0
      %3313 = vmatpush1.bf16.msra.mxu0 0
      %3314 = vmatprep.subr.bf16.mxu0 0
      %3315 = vmatpush1.bf16.msra.mxu0 0
      %3316 = vmatprep.subr.bf16.mxu0 0
      %3317 = vmatpush1.bf16.msra.mxu0 0
      %3318 = vmatprep.subr.bf16.mxu0 0
      %3319 = vmatpush1.bf16.msra.mxu0 0
      %3320 = vmatprep.subr.bf16.mxu0 0
      %3321 = vmatpush1.bf16.msra.mxu0 0
      %3322 = vmatprep.subr.bf16.mxu0 0
      %3323 = vmatpush1.bf16.msra.mxu0 0
      %3324 = vmatprep.subr.bf16.mxu0 0
      %3325 = vmatpush1.bf16.msra.mxu0 0
      %3326 = vmatprep.subr.bf16.mxu0 0
      %3327 = vmatpush1.bf16.msra.mxu0 0
      %3328 = vmatprep.mubr.bf16.mxu0 0
      %3329 = vmatmul.mubr.bf16.gmra.mrb[0].mxu0 %v3291
      %v3330 = vpop.f32.mrb[0].mxu0
      %v3331 = vadd.f32 0.0, %v3330
      %v3332 = vpop.f32.mrb[0].mxu0
      %v3333 = vpop.f32.mrb[0].mxu0
      %v3334 = vpop.f32.mrb[0].mxu0
      %3335 = vdwg.mxu0
      %v3336 = vadd.f32 %v2958, %v3331
      %v3337 = vld [vmem:[%s6] sm:$0x1]
      %v3339 = vlaneseq
      %v3340 = vshrl.u32 %v3339, 7
      %v3341 = vsub.s32 0, %v3340
      %v3342 = vrot.slane %v3337, %v3341
      %v3344 = vadd.f32 %v3336, %v3342
      %s3345 = scalar_lea.vmem %s278, 32
      %3346 = vst.msk [vmem:[%s3345] sm:$0xff] %vm297, %v3344
      %v3347 = vld [vmem:[%s273 + $0x30] sm:$0xe]
      %v3348 = vld [vmem:[%s273 + $0x34] sm:$0x3]
      %v3349 = vld [vmem:[%s5] sm:$0xf]
      %v3352 = vunpack.c.l.b16 %v3347
      %v3353 = vunpack.c.l.b16 %v3348
      %v3354 = vpack.c.b16 %v3353, %v3352
      %v3356 = vshrl.u32 %v3354, 16
      %v3358 = vrot.slane %v3356, 1
      %v3359 = vshll.u32 %v3354, 16
      %v3361 = vrot.slane %v3359, 2
      %v3362 = vor.u32 %v3358, %v3361
      %v3364 = vsel %vm297, %v3362, 0
      %v3367 = vsel %vm520, %v3349, 0
      %3369 = vmatprep.subr.bf16.mxu0 0
      %3370 = vmatpush1.bf16.msra.mxu0 %v3367
      %3371 = vmatprep.subr.bf16.mxu0 0
      %3372 = vmatpush1.bf16.msra.mxu0 0
      %3373 = vmatprep.subr.bf16.mxu0 0
      %3374 = vmatpush1.bf16.msra.mxu0 0
      %3375 = vmatprep.subr.bf16.mxu0 0
      %3376 = vmatpush1.bf16.msra.mxu0 0
      %3377 = vmatprep.subr.bf16.mxu0 0
      %3378 = vmatpush1.bf16.msra.mxu0 0
      %3379 = vmatprep.subr.bf16.mxu0 0
      %3380 = vmatpush1.bf16.msra.mxu0 0
      %3381 = vmatprep.subr.bf16.mxu0 0
      %3382 = vmatpush1.bf16.msra.mxu0 0
      %3383 = vmatprep.subr.bf16.mxu0 0
      %3384 = vmatpush1.bf16.msra.mxu0 0
      %3385 = vmatprep.subr.bf16.mxu0 0
      %3386 = vmatpush1.bf16.msra.mxu0 0
      %3387 = vmatprep.subr.bf16.mxu0 0
      %3388 = vmatpush1.bf16.msra.mxu0 0
      %3389 = vmatprep.subr.bf16.mxu0 0
      %3390 = vmatpush1.bf16.msra.mxu0 0
      %3391 = vmatprep.subr.bf16.mxu0 0
      %3392 = vmatpush1.bf16.msra.mxu0 0
      %3393 = vmatprep.subr.bf16.mxu0 0
      %3394 = vmatpush1.bf16.msra.mxu0 0
      %3395 = vmatprep.subr.bf16.mxu0 0
      %3396 = vmatpush1.bf16.msra.mxu0 0
      %3397 = vmatprep.subr.bf16.mxu0 0
      %3398 = vmatpush1.bf16.msra.mxu0 0
      %3399 = vmatprep.subr.bf16.mxu0 0
      %3400 = vmatpush1.bf16.msra.mxu0 0
      %3401 = vmatprep.mubr.bf16.mxu0 0
      %3402 = vmatmul.mubr.bf16.gmra.mrb[0].mxu0 %v3364
      %v3403 = vpop.f32.mrb[0].mxu0
      %v3404 = vadd.f32 0.0, %v3403
      %v3405 = vpop.f32.mrb[0].mxu0
      %v3406 = vpop.f32.mrb[0].mxu0
      %v3407 = vpop.f32.mrb[0].mxu0
      %3408 = vdwg.mxu0
      %v3410 = vrot.slane %v3404, 6
      %v3412 = vadd.f32 %v2959, %v3410
      %v3413 = vadd.f32 %v2960, %v3410
      %v3414 = vld [vmem:[%s6] sm:$0x1]
      %v3416 = vlaneseq
      %v3417 = vshrl.u32 %v3416, 7
      %v3418 = vsub.s32 0, %v3417
      %v3419 = vrot.slane %v3414, %v3418
      %v3421 = vadd.f32 %v3412, %v3419
      %v3422 = vadd.f32 %v3413, %v3419
      %s3423 = scalar_lea.vmem %s278, 40
      %3424 = vst.msk [vmem:[%s3423 - $0x2] sm:$0xfc] %vm3111, %v3421
      %3425 = vst.msk [vmem:[%s3423 + $0x6] sm:$0x3] %vm295, %v3422
      %v3426 = vld [vmem:[%s273 + $0x38] sm:$0xc]
      %v3427 = vld [vmem:[%s273 + $0x3c] sm:$0x7]
      %v3428 = vld [vmem:[%s5] sm:$0xf]
      %v3431 = vunpack.c.l.b16 %v3426
      %v3432 = vunpack.c.l.b16 %v3427
      %v3433 = vpack.c.b16 %v3432, %v3431
      %v3435 = vshrl.u32 %v3433, 16
      %v3437 = vrot.slane %v3435, 2
      %v3438 = vshll.u32 %v3433, 16
      %v3440 = vrot.slane %v3438, 3
      %v3441 = vor.u32 %v3437, %v3440
      %v3443 = vsel %vm297, %v3441, 0
      %v3446 = vsel %vm520, %v3428, 0
      %3448 = vmatprep.subr.bf16.mxu0 0
      %3449 = vmatpush1.bf16.msra.mxu0 %v3446
      %3450 = vmatprep.subr.bf16.mxu0 0
      %3451 = vmatpush1.bf16.msra.mxu0 0
      %3452 = vmatprep.subr.bf16.mxu0 0
      %3453 = vmatpush1.bf16.msra.mxu0 0
      %3454 = vmatprep.subr.bf16.mxu0 0
      %3455 = vmatpush1.bf16.msra.mxu0 0
      %3456 = vmatprep.subr.bf16.mxu0 0
      %3457 = vmatpush1.bf16.msra.mxu0 0
      %3458 = vmatprep.subr.bf16.mxu0 0
      %3459 = vmatpush1.bf16.msra.mxu0 0
      %3460 = vmatprep.subr.bf16.mxu0 0
      %3461 = vmatpush1.bf16.msra.mxu0 0
      %3462 = vmatprep.subr.bf16.mxu0 0
      %3463 = vmatpush1.bf16.msra.mxu0 0
      %3464 = vmatprep.subr.bf16.mxu0 0
      %3465 = vmatpush1.bf16.msra.mxu0 0
      %3466 = vmatprep.subr.bf16.mxu0 0
      %3467 = vmatpush1.bf16.msra.mxu0 0
      %3468 = vmatprep.subr.bf16.mxu0 0
      %3469 = vmatpush1.bf16.msra.mxu0 0
      %3470 = vmatprep.subr.bf16.mxu0 0
      %3471 = vmatpush1.bf16.msra.mxu0 0
      %3472 = vmatprep.subr.bf16.mxu0 0
      %3473 = vmatpush1.bf16.msra.mxu0 0
      %3474 = vmatprep.subr.bf16.mxu0 0
      %3475 = vmatpush1.bf16.msra.mxu0 0
      %3476 = vmatprep.subr.bf16.mxu0 0
      %3477 = vmatpush1.bf16.msra.mxu0 0
      %3478 = vmatprep.subr.bf16.mxu0 0
      %3479 = vmatpush1.bf16.msra.mxu0 0
      %3480 = vmatprep.mubr.bf16.mxu0 0
      %3481 = vmatmul.mubr.bf16.gmra.mrb[0].mxu0 %v3443
      %v3482 = vpop.f32.mrb[0].mxu0
      %v3483 = vadd.f32 0.0, %v3482
      %v3484 = vpop.f32.mrb[0].mxu0
      %v3485 = vpop.f32.mrb[0].mxu0
      %v3486 = vpop.f32.mrb[0].mxu0
      %3487 = vdwg.mxu0
      %v3489 = vrot.slane %v3483, 4
      %v3491 = vadd.f32 %v2960, %v3489
      %v3492 = vadd.f32 %v2961, %v3489
      %v3493 = vld [vmem:[%s6] sm:$0x1]
      %v3495 = vlaneseq
      %v3496 = vshrl.u32 %v3495, 7
      %v3497 = vsub.s32 0, %v3496
      %v3498 = vrot.slane %v3493, %v3497
      %v3500 = vadd.f32 %v3491, %v3498
      %v3501 = vadd.f32 %v3492, %v3498
      %s3502 = scalar_lea.vmem %s278, 48
      %3503 = vst.msk [vmem:[%s3502 - $0x4] sm:$0xf0] %vm3191, %v3500
      %3504 = vst.msk [vmem:[%s3502 + $0x4] sm:$0xf] %vm280, %v3501
      %v3505 = vld [vmem:[%s273 + $0x40] sm:$0x8]
      %v3506 = vld [vmem:[%s273 + $0x44] sm:$0xf]
      %v3507 = vld [vmem:[%s5] sm:$0xf]
      %v3510 = vunpack.c.l.b16 %v3505
      %v3511 = vunpack.c.l.b16 %v3506
      %v3512 = vpack.c.b16 %v3511, %v3510
      %v3514 = vshrl.u32 %v3512, 16
      %v3516 = vrot.slane %v3514, 3
      %v3517 = vshll.u32 %v3512, 16
      %v3519 = vrot.slane %v3517, 4
      %v3520 = vor.u32 %v3516, %v3519
      %v3522 = vsel %vm297, %v3520, 0
      %v3525 = vsel %vm520, %v3507, 0
      %3527 = vmatprep.subr.bf16.mxu0 0
      %3528 = vmatpush1.bf16.msra.mxu0 %v3525
      %3529 = vmatprep.subr.bf16.mxu0 0
      %3530 = vmatpush1.bf16.msra.mxu0 0
      %3531 = vmatprep.subr.bf16.mxu0 0
      %3532 = vmatpush1.bf16.msra.mxu0 0
      %3533 = vmatprep.subr.bf16.mxu0 0
      %3534 = vmatpush1.bf16.msra.mxu0 0
      %3535 = vmatprep.subr.bf16.mxu0 0
      %3536 = vmatpush1.bf16.msra.mxu0 0
      %3537 = vmatprep.subr.bf16.mxu0 0
      %3538 = vmatpush1.bf16.msra.mxu0 0
      %3539 = vmatprep.subr.bf16.mxu0 0
      %3540 = vmatpush1.bf16.msra.mxu0 0
      %3541 = vmatprep.subr.bf16.mxu0 0
      %3542 = vmatpush1.bf16.msra.mxu0 0
      %3543 = vmatprep.subr.bf16.mxu0 0
      %3544 = vmatpush1.bf16.msra.mxu0 0
      %3545 = vmatprep.subr.bf16.mxu0 0
      %3546 = vmatpush1.bf16.msra.mxu0 0
      %3547 = vmatprep.subr.bf16.mxu0 0
      %3548 = vmatpush1.bf16.msra.mxu0 0
      %3549 = vmatprep.subr.bf16.mxu0 0
      %3550 = vmatpush1.bf16.msra.mxu0 0
      %3551 = vmatprep.subr.bf16.mxu0 0
      %3552 = vmatpush1.bf16.msra.mxu0 0
      %3553 = vmatprep.subr.bf16.mxu0 0
      %3554 = vmatpush1.bf16.msra.mxu0 0
      %3555 = vmatprep.subr.bf16.mxu0 0
      %3556 = vmatpush1.bf16.msra.mxu0 0
      %3557 = vmatprep.subr.bf16.mxu0 0
      %3558 = vmatpush1.bf16.msra.mxu0 0
      %3559 = vmatprep.mubr.bf16.mxu0 0
      %3560 = vmatmul.mubr.bf16.gmra.mrb[0].mxu0 %v3522
      %v3561 = vpop.f32.mrb[0].mxu0
      %v3562 = vadd.f32 0.0, %v3561
      %v3563 = vpop.f32.mrb[0].mxu0
      %v3564 = vpop.f32.mrb[0].mxu0
      %v3565 = vpop.f32.mrb[0].mxu0
      %3566 = vdwg.mxu0
      %v3568 = vrot.slane %v3562, 2
      %v3570 = vadd.f32 %v2961, %v3568
      %v3571 = vadd.f32 %v2962, %v3568
      %v3572 = vld [vmem:[%s6] sm:$0x1]
      %v3574 = vlaneseq
      %v3575 = vshrl.u32 %v3574, 7
      %v3576 = vsub.s32 0, %v3575
      %v3577 = vrot.slane %v3572, %v3576
      %v3579 = vadd.f32 %v3570, %v3577
      %v3580 = vadd.f32 %v3571, %v3577
      %s3581 = scalar_lea.vmem %s278, 56
      %3582 = vst.msk [vmem:[%s3581 - $0x6] sm:$0xc0] %vm3271, %v3579
      %3583 = vst.msk [vmem:[%s3581 + $0x2] sm:$0x3f] %vm3273, %v3580
      %p3584 = scmp.lt.s32.totalorder %s18, 1
      %s3585 = scalar_select %p3584, %s18, 1
      %s3586 = smul.addr %s3585, 8
      %s3587 = smul.addr %s3586, 8
      %s3588 = scalar_lea.vmem %s7, %s3587
      // Predicated region
      $region49: #{dis_block_forward.1} parent=47 // pred_check
        %p3589 = pneg %p188
      $region50: #{dis_block_forward.1} parent=47 // pred_check_branch
        %3591 = sbr.rel (%p3589) target = $region52
      $region51: #{dis_block_forward.1} parent=47 // pred_region
        _
      $region52: #{dis_block_forward.1} parent=47 // pred_fallthru
        _
    $region48: #{dis_block_forward.1} parent=5 // pred_fallthru
      _
    %p3592 = scmp.le.s32.totalorder 2, %s13
    // Predicated region
    $region53: #{dis_block_forward.1} parent=5 // pred_check
      %p3593 = pneg %p3592
    $region54: #{dis_block_forward.1} parent=5 // pred_check_branch
      %3595 = sbr.rel (%p3593) target = $region56
    $region55: #{dis_block_forward.1} parent=5 // pred_region
      %s3596 = ssub.s32 %s13, 2
      // Predicated region
      $region57: #{dis_block_forward.1} parent=55 // pred_check
        %p3597 = pneg %p194
      $region58: #{dis_block_forward.1} parent=55 // pred_check_branch
        %3599 = sbr.rel (%p3597) target = $region60
      $region59: #{dis_block_forward.1} parent=55 // pred_region
        %p3600 = scmp.lt.s32.totalorder %s19, 1
        %s3601 = scalar_select %p3600, %s19, 1
        %s3602 = smul.addr %s3601, 8
        %s3603 = smul.addr %s3602, 8
        %s3604 = scalar_lea.vmem %s7, %s3603
      $region60: #{dis_block_forward.1} parent=55 // pred_fallthru
        _
    $region56: #{dis_block_forward.1} parent=5 // pred_fallthru
      _
  $region6: #{dis_block_forward.1} parent=0 // loop_footer
    %s17 = sadd.s32 1, %s13
  $region7: #{dis_block_forward.1} parent=0 // loop_footer_branch
    %12 = sbr.rel target = $region3
  $region8: #{dis_block_forward.1} parent=0 // loop_exit
    _

</llo_original>
